<compile_context>
chip_gen: v6e
topology: v6e:2x2x1
jax: 0.10.0
libtpu: 0.0.40
codegen_flags: <defaults>
</compile_context>

<pallas_src>
import functools
import math

import jax
import jax.numpy as jnp
from jax import lax
from jax.experimental import pallas as pl
from jax.experimental.pallas import tpu as pltpu


def _round_up(x, m):
    return ((x + m - 1) // m) * m


def _vmem_limit_bytes():
    """Generation-aware VMEM budget: leave ~16 MiB headroom for Mosaic scratch."""
    try:
        cap = pltpu.get_tpu_info().vmem_capacity_bytes
    except Exception:
        cap = 128 * 1024 * 1024
    return int(max(32 * 1024 * 1024,
                   min(cap - 16 * 1024 * 1024, 112 * 1024 * 1024)))


def _conv_kernel(x_ref, w_ref, scale_ref, shift_ref, o_ref, *,
                 kh, kw, stride, tr, ow_p, relu):
    """One grid step: TR output rows x OW_P cols x OC_TILE channels.

    x_ref:     (s*s, band_h, Ws, Cp)  bf16 phase-decomposed input row band
    w_ref:     (KH*KW, Cp, OC_TILE)   bf16 weight taps of this OC chunk
    scale_ref: (1, OC_TILE) f32       folded BN scale
    shift_ref: (1, OC_TILE) f32       folded BN shift (+ conv bias)
    o_ref:     (TR*OW_P, OC_TILE)     flat lane-dense output tile
    """
    cp = x_ref.shape[-1]
    oc_tile = o_ref.shape[-1]
    m = tr * ow_p
    acc = jnp.zeros((m, oc_tile), jnp.float32)
    for i in range(kh):                       # static unroll over kernel taps
        a, p = divmod(i, stride)
        for j in range(kw):
            b, q = divmod(j, stride)
            phase = p * stride + q
            # Static C-last slice: lane dim untouched, sublane-only slice; the
            # (tr, ow_p, cp) -> (m, cp) flatten is a free view (ow_p % 8 == 0).
            xs = x_ref[phase, pl.ds(a, tr), pl.ds(b, ow_p), :]
            acc += jnp.dot(xs.reshape(m, cp), w_ref[i * kw + j],
                           preferred_element_type=jnp.float32)
    y = acc * scale_ref[...] + shift_ref[...]   # folded bias + BatchNorm affine
    if relu:
        y = jnp.maximum(y, 0.0)
    o_ref[...] = y.astype(o_ref.dtype)          # single unmasked lane-dense store


def prepare_conv_params(weight, bias, bn_scale=None, bn_shift=None,
                        compute_dtype=jnp.bfloat16, c_align=128, oc_align=128):
    """weight (OC, C, KH, KW) OIHW -> (w_taps (KH*KW, Cp, OCp) bf16, scale, shift)."""
    oc, c, kh, kw = weight.shape
    cp = _round_up(c, c_align)
    ocp = _round_up(oc, oc_align)
    w = jnp.transpose(weight, (2, 3, 1, 0)).reshape(kh * kw, c, oc)
    w = jnp.pad(w, ((0, 0), (0, cp - c), (0, ocp - oc))).astype(compute_dtype)
    scale = (jnp.ones((oc,), jnp.float32) if bn_scale is None
             else bn_scale.astype(jnp.float32))
    shift_bn = (jnp.zeros((oc,), jnp.float32) if bn_shift is None
                else bn_shift.astype(jnp.float32))
    shift = bias.astype(jnp.float32) * scale + shift_bn   # fold conv bias
    scale = jnp.pad(scale, (0, ocp - oc))
    shift = jnp.pad(shift, (0, ocp - oc))
    return w, scale, shift


def conv2d_forward(x, w_taps, scale, shift, *, kh, kw, in_channels, out_channels,
                   stride=1, padding=0, relu=True,
                   compute_dtype=jnp.bfloat16, target_m=512, out_dtype=None):
    """x: (N, C, H, W) NCHW. w_taps/scale/shift from prepare_conv_params."""
    n, c, h, w = x.shape
    taps, cp, ocp = w_taps.shape
    assert taps == kh * kw and c == in_channels and cp >= c, "weight/input mismatch"
    s = stride
    out_dtype = out_dtype or compute_dtype    # bf16 output: half the stores/HBM

    hp, wp = h + 2 * padding, w + 2 * padding
    oh = (hp - kh) // s + 1
    ow = (wp - kw) // s + 1
    assert oh > 0 and ow > 0, "output spatial size must be positive"

    # Row tile: multiple of 8, targeting m = tr*ow_p ~ target_m MXU rows.
    # TODO(synk): also tile output columns for very wide feature maps (ow >> 64)
    # so the accumulator stays ~256-512 rows.
    ow_p = _round_up(ow, 8)
    tr = max(8, (target_m // ow_p) // 8 * 8)
    tr = min(tr, _round_up(oh, 8))
    ohp = _round_up(oh, tr)
    n_row = ohp // tr

    a_max = (kh - 1) // s
    b_max = (kw - 1) // s
    hs = ohp + a_max                      # phase rows needed overall
    ws = ow_p + b_max                     # phase cols needed per row band
    band_h = tr + a_max                   # phase rows needed per row tile
    h_need, w_need = s * hs, s * ws

    # Zero pad (conv padding + alignment), crop so the phase reshape is exact.
    xp = jnp.pad(x, ((0, 0), (0, 0),
                     (padding, max(0, h_need - hp) + padding),
                     (padding, max(0, w_need - wp) + padding)))
    xp = xp[:, :, :h_need, :w_need]
    # Phase decomposition, channels-last:
    #   ph[n, p*s+q, i, j, ch] = x_pad[n, ch, i*s+p, j*s+q]
    xp = xp.reshape(n, c, hs, s, ws, s).transpose(0, 3, 5, 2, 4, 1)
    xp = xp.reshape(n, s * s, hs, ws, c).astype(compute_dtype)
    xp = jnp.pad(xp, ((0, 0), (0, 0), (0, 0), (0, 0), (0, cp - c)))
    # Row-band on the host (duplicating the a_max overlap rows) so the kernel's
    # x block is a small, non-overlapping, pipelined band per row tile.
    rows = jnp.arange(n_row)[:, None] * tr + jnp.arange(band_h)[None, :]
    xb = xp[:, :, rows]                            # (n, s*s, n_row, band_h, ws, cp)
    xb = xb.transpose(0, 2, 1, 3, 4, 5)            # (n, n_row, s*s, band_h, ws, cp)

    # OC chunk: lane-dense 128/256-wide MXU tiles.
    # TODO(synk): keep 128 on v5e (128-deep MXU, store-bound) via get_tpu_info.
    oc_tile = 256 if (ocp % 256 == 0) else 128
    n_oc = ocp // oc_tile

    w_taps = w_taps.astype(compute_dtype)
    scale = scale.reshape(1, ocp).astype(jnp.float32)
    shift = shift.reshape(1, ocp).astype(jnp.float32)

    kernel = functools.partial(_conv_kernel, kh=kh, kw=kw, stride=s,
                               tr=tr, ow_p=ow_p, relu=relu)

    m = tr * ow_p
    out_bytes = n * ohp * ow_p * ocp * jnp.dtype(out_dtype).itemsize
    cost = pl.CostEstimate(
        flops=2 * n * ohp * ow_p * kh * kw * cp * ocp,
        transcendentals=0,
        bytes_accessed=(xb.size * xb.dtype.itemsize
                        + w_taps.size * w_taps.dtype.itemsize + out_bytes))

    out = pl.pallas_call(
        kernel,
        out_shape=jax.ShapeDtypeStruct((n, ohp * ow_p, ocp), out_dtype),
        grid_spec=pltpu.PrefetchScalarGridSpec(
            num_scalar_prefetch=0,
            grid=(n, n_row, n_oc),
            in_specs=[
                # One row band per (batch, row-tile); constant across the OC axis
                # so it is DMA'd once per (b, r).
                # TODO(synk): pipeline_mode=pl.Buffered(1) on the grid-invariant
                # operands once single-buffering is available in this JAX version.
                pl.BlockSpec((None, None, s * s, band_h, ws, cp),
                             lambda b, r, j: (b, r, 0, 0, 0, 0)),
                pl.BlockSpec((kh * kw, cp, oc_tile), lambda b, r, j: (0, 0, j)),
                pl.BlockSpec((1, oc_tile), lambda b, r, j: (0, j)),
                pl.BlockSpec((1, oc_tile), lambda b, r, j: (0, j)),
            ],
            out_specs=pl.BlockSpec((None, m, oc_tile), lambda b, r, j: (b, r, j)),
        ),
        compiler_params=pltpu.CompilerParams(
            dimension_semantics=("parallel", "parallel", "parallel"),
            vmem_limit_bytes=_vmem_limit_bytes()),
        cost_estimate=cost,
    )(xb, w_taps, scale, shift)

    # TODO(synk): when chaining layers, keep the NHWC/OCp slab and skip this
    # host-side crop + NCHW transpose (it is an extra HBM read+write).
    out = out.reshape(n, ohp, ow_p, ocp)[:, :oh, :ow, :out_channels]
    return out.transpose(0, 3, 1, 2)       # back to NCHW (PyTorch convention)


class Conv2dPallas:
    """Mirrors FRCNN/vgg.py Conv2d(in, out, k, stride, relu, same_padding, bn)."""

    def __init__(self, key, in_channels, out_channels, kernel_size, stride=1,
                 relu=True, same_padding=False, bn=False,
                 compute_dtype=jnp.bfloat16):
        self.padding = int((kernel_size - 1) / 2) if same_padding else 0
        self.stride = stride
        self.relu = relu
        self.kernel_size = kernel_size
        self.in_channels = in_channels
        self.out_channels = out_channels
        self.compute_dtype = compute_dtype

        kkey, bkey = jax.random.split(key, 2)
        fan_in = in_channels * kernel_size * kernel_size
        bound = 1.0 / math.sqrt(fan_in)     # PyTorch default uniform init range
        self.weight = jax.random.uniform(
            kkey, (out_channels, in_channels, kernel_size, kernel_size),
            jnp.float32, -bound, bound)
        self.bias = jax.random.uniform(bkey, (out_channels,), jnp.float32,
                                       -bound, bound)

        if bn:
            # Inference-mode BatchNorm2d(eps=1e-3, momentum=0): running stats stay
            # at (mean=0, var=1), gamma=1, beta=0 -> pure per-channel affine.
            # TODO(synk): training-mode BN (batch statistics) not implemented.
            eps = 0.001
            gamma = jnp.ones((out_channels,), jnp.float32)
            beta = jnp.zeros((out_channels,), jnp.float32)
            bn_scale = gamma / jnp.sqrt(1.0 + eps)
            bn_shift = beta
        else:
            bn_scale = bn_shift = None
        self.bn_scale = bn_scale

        # Weight laid out ONCE as (KH*KW, Cp, OCp) bf16; conv bias folded into shift.
        self.w_taps, self.scale, self.shift = prepare_conv_params(
            self.weight, self.bias, bn_scale, bn_shift, compute_dtype)

    def __call__(self, x):
        return conv2d_forward(
            x, self.w_taps, self.scale, self.shift,
            kh=self.kernel_size, kw=self.kernel_size,
            in_channels=self.in_channels, out_channels=self.out_channels,
            stride=self.stride, padding=self.padding, relu=self.relu,
            compute_dtype=self.compute_dtype)


if __name__ == "__main__":
    key = jax.random.PRNGKey(0)
    xkey, mkey1, mkey2, mkey3 = jax.random.split(key, 4)

    # Small NCHW input consistent with the module.
    x = jax.random.normal(xkey, (2, 4, 16, 16), jnp.float32)

    def ref_conv(layer, xin, bn=False):
        y = lax.conv_general_dilated(
            xin, layer.weight, window_strides=(layer.stride, layer.stride),
            padding=[(layer.padding, layer.padding)] * 2,
            dimension_numbers=("NCHW", "OIHW", "NCHW"))
        y = y + layer.bias.reshape(1, -1, 1, 1)
        if bn:
            y = y * layer.bn_scale.reshape(1, -1, 1, 1)
        if layer.relu:
            y = jnp.maximum(y, 0.0)
        return y

    # 1) conv + ReLU, same padding, no BN.
    layer = Conv2dPallas(mkey1, in_channels=4, out_channels=8, kernel_size=3,
                         stride=1, relu=True, same_padding=True, bn=False)
    out = jax.block_until_ready(layer(x)).astype(jnp.float32)
    assert out.shape == (2, 8, 16, 16), out.shape
    ref = ref_conv(layer, x, bn=False)
    # bf16 operands/output -> relaxed tolerance vs f32 reference.
    assert jnp.allclose(out, ref, atol=5e-2, rtol=5e-2), \
        float(jnp.max(jnp.abs(out - ref)))

    # 2) conv + folded inference BN + ReLU.
    layer_bn = Conv2dPallas(mkey2, in_channels=4, out_channels=8, kernel_size=3,
                            stride=1, relu=True, same_padding=True, bn=True)
    out_bn = jax.block_until_ready(layer_bn(x)).astype(jnp.float32)
    ref_bn = ref_conv(layer_bn, x, bn=True)
    assert jnp.allclose(out_bn, ref_bn, atol=5e-2, rtol=5e-2)

    # 3) strided conv (stride=2, valid padding), no ReLU -> exercises phases.
    layer_s2 = Conv2dPallas(mkey3, in_channels=4, out_channels=8, kernel_size=3,
                            stride=2, relu=False, same_padding=False, bn=False)
    out_s2 = jax.block_until_ready(layer_s2(x)).astype(jnp.float32)
    assert out_s2.shape == (2, 8, 7, 7), out_s2.shape
    ref_s2 = ref_conv(layer_s2, x, bn=False)
    assert jnp.allclose(out_s2, ref_s2, atol=5e-2, rtol=5e-2)

    print("KERNEL_OK")
</pallas_src>

<mosaic_0001>
module attributes {stable_mosaic.version = 11 : i64} {
  func.func @_conv_kernel(%arg0: i32, %arg1: i32, %arg2: i32, %arg3: memref<1x1x1x18x18x128xbf16, #tpu.memory_space<vmem>>, %arg4: memref<9x128x128xbf16, #tpu.memory_space<vmem>>, %arg5: memref<1x128xf32, #tpu.memory_space<vmem>>, %arg6: memref<1x128xf32, #tpu.memory_space<vmem>>, %arg7: memref<1x256x128xbf16, #tpu.memory_space<vmem>>) attributes {dimension_semantics = [#tpu.dimension_semantics<parallel>, #tpu.dimension_semantics<parallel>, #tpu.dimension_semantics<parallel>], iteration_bounds = array<i64: 2, 1, 1>, scalar_prefetch = 0 : i64, scratch_operands = 0 : i64, tpu.core_type = #tpu.core_type<tc>, window_params = [{transform_indices = @transform_0, window_bounds = array<i64: 1, 1, 1, 18, 18, 128>}, {transform_indices = @transform_1, window_bounds = array<i64: 9, 128, 128>}, {transform_indices = @transform_2, window_bounds = array<i64: 1, 128>}, {transform_indices = @transform_3, window_bounds = array<i64: 1, 128>}, {transform_indices = @transform_4, window_bounds = array<i64: 1, 256, 128>}]} {
    %cst = arith.constant 0.000000e+00 : f32
    %0 = vector.broadcast %cst : f32 to vector<256x128xf32>
    %c0 = arith.constant 0 : index
    %c0_0 = arith.constant 0 : index
    %c0_1 = arith.constant 0 : index
    %c0_2 = arith.constant 0 : index
    %c0_3 = arith.constant 0 : index
    %c0_4 = arith.constant 0 : index
    %1 = vector.load %arg3[%c0, %c0_0, %c0_1, %c0_2, %c0_3, %c0_4] : memref<1x1x1x18x18x128xbf16, #tpu.memory_space<vmem>>, vector<1x1x1x16x16x128xbf16>
    %2 = vector.shape_cast %1 : vector<1x1x1x16x16x128xbf16> to vector<16x16x128xbf16>
    %3 = vector.shape_cast %2 : vector<16x16x128xbf16> to vector<256x128xbf16>
    %c0_5 = arith.constant 0 : index
    %c0_6 = arith.constant 0 : index
    %c0_7 = arith.constant 0 : index
    %4 = vector.load %arg4[%c0_5, %c0_6, %c0_7] : memref<9x128x128xbf16, #tpu.memory_space<vmem>>, vector<1x128x128xbf16>
    %5 = vector.shape_cast %4 : vector<1x128x128xbf16> to vector<128x128xbf16>
    %cst_8 = arith.constant dense<0.000000e+00> : vector<256x128xf32>
    %6 = tpu.matmul %3, %5, %cst_8 {dimension_numbers = #tpu.dot_dimension_numbers<[1], [0], [0], [1], [0, 0, 1, 1], [], []>} : vector<256x128xbf16>, vector<128x128xbf16>, vector<256x128xf32> -> vector<256x128xf32>
    %7 = arith.addf %0, %6 : vector<256x128xf32>
    %c0_9 = arith.constant 0 : index
    %c0_10 = arith.constant 0 : index
    %c0_11 = arith.constant 0 : index
    %c0_12 = arith.constant 0 : index
    %c1 = arith.constant 1 : index
    %c0_13 = arith.constant 0 : index
    %8 = vector.load %arg3[%c0_9, %c0_10, %c0_11, %c0_12, %c1, %c0_13] : memref<1x1x1x18x18x128xbf16, #tpu.memory_space<vmem>>, vector<1x1x1x16x16x128xbf16>
    %9 = vector.shape_cast %8 : vector<1x1x1x16x16x128xbf16> to vector<16x16x128xbf16>
    %10 = vector.shape_cast %9 : vector<16x16x128xbf16> to vector<256x128xbf16>
    %c1_14 = arith.constant 1 : index
    %c0_15 = arith.constant 0 : index
    %c0_16 = arith.constant 0 : index
    %11 = vector.load %arg4[%c1_14, %c0_15, %c0_16] : memref<9x128x128xbf16, #tpu.memory_space<vmem>>, vector<1x128x128xbf16>
    %12 = vector.shape_cast %11 : vector<1x128x128xbf16> to vector<128x128xbf16>
    %cst_17 = arith.constant dense<0.000000e+00> : vector<256x128xf32>
    %13 = tpu.matmul %10, %12, %cst_17 {dimension_numbers = #tpu.dot_dimension_numbers<[1], [0], [0], [1], [0, 0, 1, 1], [], []>} : vector<256x128xbf16>, vector<128x128xbf16>, vector<256x128xf32> -> vector<256x128xf32>
    %14 = arith.addf %7, %13 : vector<256x128xf32>
    %c0_18 = arith.constant 0 : index
    %c0_19 = arith.constant 0 : index
    %c0_20 = arith.constant 0 : index
    %c0_21 = arith.constant 0 : index
    %c2 = arith.constant 2 : index
    %c0_22 = arith.constant 0 : index
    %15 = vector.load %arg3[%c0_18, %c0_19, %c0_20, %c0_21, %c2, %c0_22] : memref<1x1x1x18x18x128xbf16, #tpu.memory_space<vmem>>, vector<1x1x1x16x16x128xbf16>
    %16 = vector.shape_cast %15 : vector<1x1x1x16x16x128xbf16> to vector<16x16x128xbf16>
    %17 = vector.shape_cast %16 : vector<16x16x128xbf16> to vector<256x128xbf16>
    %c2_23 = arith.constant 2 : index
    %c0_24 = arith.constant 0 : index
    %c0_25 = arith.constant 0 : index
    %18 = vector.load %arg4[%c2_23, %c0_24, %c0_25] : memref<9x128x128xbf16, #tpu.memory_space<vmem>>, vector<1x128x128xbf16>
    %19 = vector.shape_cast %18 : vector<1x128x128xbf16> to vector<128x128xbf16>
    %cst_26 = arith.constant dense<0.000000e+00> : vector<256x128xf32>
    %20 = tpu.matmul %17, %19, %cst_26 {dimension_numbers = #tpu.dot_dimension_numbers<[1], [0], [0], [1], [0, 0, 1, 1], [], []>} : vector<256x128xbf16>, vector<128x128xbf16>, vector<256x128xf32> -> vector<256x128xf32>
    %21 = arith.addf %14, %20 : vector<256x128xf32>
    %c0_27 = arith.constant 0 : index
    %c0_28 = arith.constant 0 : index
    %c0_29 = arith.constant 0 : index
    %c1_30 = arith.constant 1 : index
    %c0_31 = arith.constant 0 : index
    %c0_32 = arith.constant 0 : index
    %22 = vector.load %arg3[%c0_27, %c0_28, %c0_29, %c1_30, %c0_31, %c0_32] : memref<1x1x1x18x18x128xbf16, #tpu.memory_space<vmem>>, vector<1x1x1x16x16x128xbf16>
    %23 = vector.shape_cast %22 : vector<1x1x1x16x16x128xbf16> to vector<16x16x128xbf16>
    %24 = vector.shape_cast %23 : vector<16x16x128xbf16> to vector<256x128xbf16>
    %c3 = arith.constant 3 : index
    %c0_33 = arith.constant 0 : index
    %c0_34 = arith.constant 0 : index
    %25 = vector.load %arg4[%c3, %c0_33, %c0_34] : memref<9x128x128xbf16, #tpu.memory_space<vmem>>, vector<1x128x128xbf16>
    %26 = vector.shape_cast %25 : vector<1x128x128xbf16> to vector<128x128xbf16>
    %cst_35 = arith.constant dense<0.000000e+00> : vector<256x128xf32>
    %27 = tpu.matmul %24, %26, %cst_35 {dimension_numbers = #tpu.dot_dimension_numbers<[1], [0], [0], [1], [0, 0, 1, 1], [], []>} : vector<256x128xbf16>, vector<128x128xbf16>, vector<256x128xf32> -> vector<256x128xf32>
    %28 = arith.addf %21, %27 : vector<256x128xf32>
    %c0_36 = arith.constant 0 : index
    %c0_37 = arith.constant 0 : index
    %c0_38 = arith.constant 0 : index
    %c1_39 = arith.constant 1 : index
    %c1_40 = arith.constant 1 : index
    %c0_41 = arith.constant 0 : index
    %29 = vector.load %arg3[%c0_36, %c0_37, %c0_38, %c1_39, %c1_40, %c0_41] : memref<1x1x1x18x18x128xbf16, #tpu.memory_space<vmem>>, vector<1x1x1x16x16x128xbf16>
    %30 = vector.shape_cast %29 : vector<1x1x1x16x16x128xbf16> to vector<16x16x128xbf16>
    %31 = vector.shape_cast %30 : vector<16x16x128xbf16> to vector<256x128xbf16>
    %c4 = arith.constant 4 : index
    %c0_42 = arith.constant 0 : index
    %c0_43 = arith.constant 0 : index
    %32 = vector.load %arg4[%c4, %c0_42, %c0_43] : memref<9x128x128xbf16, #tpu.memory_space<vmem>>, vector<1x128x128xbf16>
    %33 = vector.shape_cast %32 : vector<1x128x128xbf16> to vector<128x128xbf16>
    %cst_44 = arith.constant dense<0.000000e+00> : vector<256x128xf32>
    %34 = tpu.matmul %31, %33, %cst_44 {dimension_numbers = #tpu.dot_dimension_numbers<[1], [0], [0], [1], [0, 0, 1, 1], [], []>} : vector<256x128xbf16>, vector<128x128xbf16>, vector<256x128xf32> -> vector<256x128xf32>
    %35 = arith.addf %28, %34 : vector<256x128xf32>
    %c0_45 = arith.constant 0 : index
    %c0_46 = arith.constant 0 : index
    %c0_47 = arith.constant 0 : index
    %c1_48 = arith.constant 1 : index
    %c2_49 = arith.constant 2 : index
    %c0_50 = arith.constant 0 : index
    %36 = vector.load %arg3[%c0_45, %c0_46, %c0_47, %c1_48, %c2_49, %c0_50] : memref<1x1x1x18x18x128xbf16, #tpu.memory_space<vmem>>, vector<1x1x1x16x16x128xbf16>
    %37 = vector.shape_cast %36 : vector<1x1x1x16x16x128xbf16> to vector<16x16x128xbf16>
    %38 = vector.shape_cast %37 : vector<16x16x128xbf16> to vector<256x128xbf16>
    %c5 = arith.constant 5 : index
    %c0_51 = arith.constant 0 : index
    %c0_52 = arith.constant 0 : index
    %39 = vector.load %arg4[%c5, %c0_51, %c0_52] : memref<9x128x128xbf16, #tpu.memory_space<vmem>>, vector<1x128x128xbf16>
    %40 = vector.shape_cast %39 : vector<1x128x128xbf16> to vector<128x128xbf16>
    %cst_53 = arith.constant dense<0.000000e+00> : vector<256x128xf32>
    %41 = tpu.matmul %38, %40, %cst_53 {dimension_numbers = #tpu.dot_dimension_numbers<[1], [0], [0], [1], [0, 0, 1, 1], [], []>} : vector<256x128xbf16>, vector<128x128xbf16>, vector<256x128xf32> -> vector<256x128xf32>
    %42 = arith.addf %35, %41 : vector<256x128xf32>
    %c0_54 = arith.constant 0 : index
    %c0_55 = arith.constant 0 : index
    %c0_56 = arith.constant 0 : index
    %c2_57 = arith.constant 2 : index
    %c0_58 = arith.constant 0 : index
    %c0_59 = arith.constant 0 : index
    %43 = vector.load %arg3[%c0_54, %c0_55, %c0_56, %c2_57, %c0_58, %c0_59] : memref<1x1x1x18x18x128xbf16, #tpu.memory_space<vmem>>, vector<1x1x1x16x16x128xbf16>
    %44 = vector.shape_cast %43 : vector<1x1x1x16x16x128xbf16> to vector<16x16x128xbf16>
    %45 = vector.shape_cast %44 : vector<16x16x128xbf16> to vector<256x128xbf16>
    %c6 = arith.constant 6 : index
    %c0_60 = arith.constant 0 : index
    %c0_61 = arith.constant 0 : index
    %46 = vector.load %arg4[%c6, %c0_60, %c0_61] : memref<9x128x128xbf16, #tpu.memory_space<vmem>>, vector<1x128x128xbf16>
    %47 = vector.shape_cast %46 : vector<1x128x128xbf16> to vector<128x128xbf16>
    %cst_62 = arith.constant dense<0.000000e+00> : vector<256x128xf32>
    %48 = tpu.matmul %45, %47, %cst_62 {dimension_numbers = #tpu.dot_dimension_numbers<[1], [0], [0], [1], [0, 0, 1, 1], [], []>} : vector<256x128xbf16>, vector<128x128xbf16>, vector<256x128xf32> -> vector<256x128xf32>
    %49 = arith.addf %42, %48 : vector<256x128xf32>
    %c0_63 = arith.constant 0 : index
    %c0_64 = arith.constant 0 : index
    %c0_65 = arith.constant 0 : index
    %c2_66 = arith.constant 2 : index
    %c1_67 = arith.constant 1 : index
    %c0_68 = arith.constant 0 : index
    %50 = vector.load %arg3[%c0_63, %c0_64, %c0_65, %c2_66, %c1_67, %c0_68] : memref<1x1x1x18x18x128xbf16, #tpu.memory_space<vmem>>, vector<1x1x1x16x16x128xbf16>
    %51 = vector.shape_cast %50 : vector<1x1x1x16x16x128xbf16> to vector<16x16x128xbf16>
    %52 = vector.shape_cast %51 : vector<16x16x128xbf16> to vector<256x128xbf16>
    %c7 = arith.constant 7 : index
    %c0_69 = arith.constant 0 : index
    %c0_70 = arith.constant 0 : index
    %53 = vector.load %arg4[%c7, %c0_69, %c0_70] : memref<9x128x128xbf16, #tpu.memory_space<vmem>>, vector<1x128x128xbf16>
    %54 = vector.shape_cast %53 : vector<1x128x128xbf16> to vector<128x128xbf16>
    %cst_71 = arith.constant dense<0.000000e+00> : vector<256x128xf32>
    %55 = tpu.matmul %52, %54, %cst_71 {dimension_numbers = #tpu.dot_dimension_numbers<[1], [0], [0], [1], [0, 0, 1, 1], [], []>} : vector<256x128xbf16>, vector<128x128xbf16>, vector<256x128xf32> -> vector<256x128xf32>
    %56 = arith.addf %49, %55 : vector<256x128xf32>
    %c0_72 = arith.constant 0 : index
    %c0_73 = arith.constant 0 : index
    %c0_74 = arith.constant 0 : index
    %c2_75 = arith.constant 2 : index
    %c2_76 = arith.constant 2 : index
    %c0_77 = arith.constant 0 : index
    %57 = vector.load %arg3[%c0_72, %c0_73, %c0_74, %c2_75, %c2_76, %c0_77] : memref<1x1x1x18x18x128xbf16, #tpu.memory_space<vmem>>, vector<1x1x1x16x16x128xbf16>
    %58 = vector.shape_cast %57 : vector<1x1x1x16x16x128xbf16> to vector<16x16x128xbf16>
    %59 = vector.shape_cast %58 : vector<16x16x128xbf16> to vector<256x128xbf16>
    %c8 = arith.constant 8 : index
    %c0_78 = arith.constant 0 : index
    %c0_79 = arith.constant 0 : index
    %60 = vector.load %arg4[%c8, %c0_78, %c0_79] : memref<9x128x128xbf16, #tpu.memory_space<vmem>>, vector<1x128x128xbf16>
    %61 = vector.shape_cast %60 : vector<1x128x128xbf16> to vector<128x128xbf16>
    %cst_80 = arith.constant dense<0.000000e+00> : vector<256x128xf32>
    %62 = tpu.matmul %59, %61, %cst_80 {dimension_numbers = #tpu.dot_dimension_numbers<[1], [0], [0], [1], [0, 0, 1, 1], [], []>} : vector<256x128xbf16>, vector<128x128xbf16>, vector<256x128xf32> -> vector<256x128xf32>
    %63 = arith.addf %56, %62 : vector<256x128xf32>
    %c0_81 = arith.constant 0 : index
    %c0_82 = arith.constant 0 : index
    %64 = vector.load %arg5[%c0_81, %c0_82] : memref<1x128xf32, #tpu.memory_space<vmem>>, vector<1x128xf32>
    %65 = vector.broadcast %64 : vector<1x128xf32> to vector<256x128xf32>
    %66 = arith.mulf %63, %65 : vector<256x128xf32>
    %c0_83 = arith.constant 0 : index
    %c0_84 = arith.constant 0 : index
    %67 = vector.load %arg6[%c0_83, %c0_84] : memref<1x128xf32, #tpu.memory_space<vmem>>, vector<1x128xf32>
    %68 = vector.broadcast %67 : vector<1x128xf32> to vector<256x128xf32>
    %69 = arith.addf %66, %68 : vector<256x128xf32>
    %cst_85 = arith.constant 0.000000e+00 : f32
    %70 = vector.broadcast %cst_85 : f32 to vector<256x128xf32>
    %71 = arith.maximumf %69, %70 : vector<256x128xf32>
    %72 = arith.truncf %71 : vector<256x128xf32> to vector<256x128xbf16>
    %c0_86 = arith.constant 0 : index
    %c0_87 = arith.constant 0 : index
    %c0_88 = arith.constant 0 : index
    %73 = vector.load %arg7[%c0_86, %c0_87, %c0_88] : memref<1x256x128xbf16, #tpu.memory_space<vmem>>, vector<1x256x128xbf16>
    %74 = vector.shape_cast %73 : vector<1x256x128xbf16> to vector<256x128xbf16>
    %75 = vector.shape_cast %72 : vector<256x128xbf16> to vector<1x256x128xbf16>
    tpu.vector_store %arg7[%c0_86, %c0_87, %c0_88], %75 {strides = array<i32>} : memref<1x256x128xbf16, #tpu.memory_space<vmem>>, vector<1x256x128xbf16>,
    return
  }
  func.func @transform_0(%arg0: i32, %arg1: i32, %arg2: i32) -> (i32, i32, i32, i32, i32, i32) {
    %c0_i32 = arith.constant 0 : i32
    %c0_i32_0 = arith.constant 0 : i32
    %c0_i32_1 = arith.constant 0 : i32
    %c0_i32_2 = arith.constant 0 : i32
    %c0_i32_3 = arith.constant 0 : i32
    return %arg0, %arg1, %c0_i32, %c0_i32_0, %c0_i32_1, %c0_i32_2 : i32, i32, i32, i32, i32, i32
  }
  func.func @transform_1(%arg0: i32, %arg1: i32, %arg2: i32) -> (i32, i32, i32) {
    %c0_i32 = arith.constant 0 : i32
    %c0_i32_0 = arith.constant 0 : i32
    %c0_i32_1 = arith.constant 0 : i32
    return %c0_i32, %c0_i32_0, %arg2 : i32, i32, i32
  }
  func.func @transform_2(%arg0: i32, %arg1: i32, %arg2: i32) -> (i32, i32) {
    %c0_i32 = arith.constant 0 : i32
    %c0_i32_0 = arith.constant 0 : i32
    return %c0_i32, %arg2 : i32, i32
  }
  func.func @transform_3(%arg0: i32, %arg1: i32, %arg2: i32) -> (i32, i32) {
    %c0_i32 = arith.constant 0 : i32
    %c0_i32_0 = arith.constant 0 : i32
    return %c0_i32, %arg2 : i32, i32
  }
  func.func @transform_4(%arg0: i32, %arg1: i32, %arg2: i32) -> (i32, i32, i32) {
    %c0_i32 = arith.constant 0 : i32
    return %arg0, %arg1, %arg2 : i32, i32, i32
  }
}

</mosaic_0001>

<llo_original>
// kernel: tpu_custom_call.1
$region0: #{tpu_custom_call.1}
  #allocation0 [shape = 'u32[]', space=smem, size = 0x4, offset = 0x4, fixed_abs, tag = 'smem constant byte address 0x4 - core index']
  #allocation1 [shape = 'u32[144,128]{1,0:T(1,128)}', space=vmem, size = 0x12000, scoped, tag = 'internal scratch']
  %s0 = inlined_call_operand.vmem [shape: bf16[2,1,1,18,18,128], index: 0, kind: input, shape index: {}]
  %s1 = inlined_call_operand.vmem [shape: bf16[9,128,128], index: 1, kind: input, shape index: {}]
  %s2 = inlined_call_operand.vmem [shape: f32[1,128], index: 2, kind: input, shape index: {}]
  %s3 = inlined_call_operand.vmem [shape: f32[1,128], index: 3, kind: input, shape index: {}]
  %s4 = inlined_call_operand.hbm [shape: bf16[2,256,128], index: 4, kind: output, shape index: {}]
  %s5 = sld [smem:[#allocation0]]
  $region49: #{tpu_custom_call.1} parent=0
    _
  %s7 = ssub.s32 1, %s5
  %s8 = scalar_select 0, %s7, %s5
  $region1: #{tpu_custom_call.1} parent=0
    #allocation2 [shape = 'u8[131072]{0}', space=vmem, size = 0x20000, scoped, tag = 'output window, operand 0']
    #allocation3 [shape = 's32[2]{0}', space=sflag, size = 0x8, scoped, tag = 'scoped memory for tpu_custom_call.1']
    %9 = vsyncpa [#allocation3], 0
    %s10 = scalar_lea.sflag [#allocation3], 1
    %11 = vsyncpa %s10, 0
    loop: start=0, step=1, limit=4
    $region2: #{tpu_custom_call.1} parent=1 // loop_pre_header
      _
    $region3: #{tpu_custom_call.1} parent=1 // loop_header
      %s13 = sphi 0, %s17
      %p14 = scmp.ge.s32.totalorder %s13, 4
      %s20 = sphi 0, %s39
      %s21 = sphi 0, %s35
      %s22 = sphi 0, %s31
      %s23 = sphi 0, %s20
      %s24 = sphi 0, %s21
      %s25 = sphi 0, %s22
      %s26 = sphi 0, %s23
      %s27 = sphi 0, %s24
      %s28 = sphi 0, %s25
      %s44 = sphi 0, %s46
      %s47 = sphi 0, %s44
      %s48 = sphi 0, %s47
      %s64 = sphi 0, %s48
      %s70 = sphi 0, %s72
      %s73 = sphi 0, %s70
      %s74 = sphi 0, %s73
      %s90 = sphi 0, %s74
      %s96 = sphi 0, %s98
      %s99 = sphi 0, %s96
      %s100 = sphi 0, %s99
      %s116 = sphi 0, %s100
      %s122 = sphi 0, %s124
      %s125 = sphi 0, %s122
      %s126 = sphi 0, %s125
      %s142 = sphi 0, %s126
      %s152 = sphi 0, %s154
      %s155 = sphi 0, %s152
      %s156 = sphi 0, %s155
      %s172 = sphi 0, %s156
    $region4: #{tpu_custom_call.1} parent=1 // loop_header_branch
      %16 = sbr.rel (%p14) target = $region8
    $region5: #{tpu_custom_call.1} parent=1 // loop_body
      %s18 = ssub.s32 %s13, 1
      %s19 = ssub.s32 %s13, 2
      %s29 = sadd.s32 1, %s22
      %p30 = scmp.ge.s32.totalorder %s29, 1
      %s31 = scalar_select %p30, 0, %s29
      %s32 = sadd.s32 1, %s21
      %s33 = scalar_select %p30, %s32, %s21
      %p34 = scmp.ge.s32.totalorder %s33, 1
      %s35 = scalar_select %p34, 0, %s33
      %s36 = sadd.s32 1, %s20
      %s37 = scalar_select %p34, %s36, %s20
      %p38 = scmp.ge.s32.totalorder %s37, 2
      %s39 = scalar_select %p38, 0, %s37
      %s40 = ssub.s32 %s20, %s39
      %s41 = ssub.s32 %s21, %s35
      %s42 = sor.u32 %s40, %s41
      %p43 = scmp.eq.s32.totalorder %s42, 0
      %s45 = sadd.s32 %s44, 1
      %s46 = scalar_select %p43, %s44, %s45
      %p49 = pneg %p43
      %p50 = scmp.eq.s32.totalorder %s13, 1
      %p51 = por %p49, %p50
      %p52 = scmp.ne.s32.totalorder %s44, %s47
      %p53 = scmp.eq.s32.totalorder %s13, 0
      %p54 = por %p52, %p53
      %p55 = scmp.ne.s32.totalorder %s44, %s47
      %p56 = scmp.eq.s32.totalorder %s18, 1
      %p57 = por %p55, %p56
      %p58 = scmp.ne.s32.totalorder %s47, %s48
      %p59 = scmp.eq.s32.totalorder %s18, 0
      %p60 = por %p58, %p59
      %p61 = scmp.ne.s32.totalorder %s47, %s48
      %p62 = scmp.eq.s32.totalorder %s19, 1
      %p63 = por %p61, %p62
      %p65 = scmp.ne.s32.totalorder %s48, %s64
      %p66 = scmp.eq.s32.totalorder %s19, 0
      %p67 = por %p65, %p66
      %s68 = ssub.s32 %s22, %s31
      %p69 = scmp.eq.s32.totalorder %s68, 0
      %s71 = sadd.s32 %s70, 1
      %s72 = scalar_select %p69, %s70, %s71
      %p75 = pneg %p69
      %p76 = scmp.eq.s32.totalorder %s13, 1
      %p77 = por %p75, %p76
      %p78 = scmp.ne.s32.totalorder %s70, %s73
      %p79 = scmp.eq.s32.totalorder %s13, 0
      %p80 = por %p78, %p79
      %p81 = scmp.ne.s32.totalorder %s70, %s73
      %p82 = scmp.eq.s32.totalorder %s18, 1
      %p83 = por %p81, %p82
      %p84 = scmp.ne.s32.totalorder %s73, %s74
      %p85 = scmp.eq.s32.totalorder %s18, 0
      %p86 = por %p84, %p85
      %p87 = scmp.ne.s32.totalorder %s73, %s74
      %p88 = scmp.eq.s32.totalorder %s19, 1
      %p89 = por %p87, %p88
      %p91 = scmp.ne.s32.totalorder %s74, %s90
      %p92 = scmp.eq.s32.totalorder %s19, 0
      %p93 = por %p91, %p92
      %s94 = ssub.s32 %s22, %s31
      %p95 = scmp.eq.s32.totalorder %s94, 0
      %s97 = sadd.s32 %s96, 1
      %s98 = scalar_select %p95, %s96, %s97
      %p101 = pneg %p95
      %p102 = scmp.eq.s32.totalorder %s13, 1
      %p103 = por %p101, %p102
      %p104 = scmp.ne.s32.totalorder %s96, %s99
      %p105 = scmp.eq.s32.totalorder %s13, 0
      %p106 = por %p104, %p105
      %p107 = scmp.ne.s32.totalorder %s96, %s99
      %p108 = scmp.eq.s32.totalorder %s18, 1
      %p109 = por %p107, %p108
      %p110 = scmp.ne.s32.totalorder %s99, %s100
      %p111 = scmp.eq.s32.totalorder %s18, 0
      %p112 = por %p110, %p111
      %p113 = scmp.ne.s32.totalorder %s99, %s100
      %p114 = scmp.eq.s32.totalorder %s19, 1
      %p115 = por %p113, %p114
      %p117 = scmp.ne.s32.totalorder %s100, %s116
      %p118 = scmp.eq.s32.totalorder %s19, 0
      %p119 = por %p117, %p118
      %s120 = ssub.s32 %s22, %s31
      %p121 = scmp.eq.s32.totalorder %s120, 0
      %s123 = sadd.s32 %s122, 1
      %s124 = scalar_select %p121, %s122, %s123
      %p127 = pneg %p121
      %p128 = scmp.eq.s32.totalorder %s13, 1
      %p129 = por %p127, %p128
      %p130 = scmp.ne.s32.totalorder %s122, %s125
      %p131 = scmp.eq.s32.totalorder %s13, 0
      %p132 = por %p130, %p131
      %p133 = scmp.ne.s32.totalorder %s122, %s125
      %p134 = scmp.eq.s32.totalorder %s18, 1
      %p135 = por %p133, %p134
      %p136 = scmp.ne.s32.totalorder %s125, %s126
      %p137 = scmp.eq.s32.totalorder %s18, 0
      %p138 = por %p136, %p137
      %p139 = scmp.ne.s32.totalorder %s125, %s126
      %p140 = scmp.eq.s32.totalorder %s19, 1
      %p141 = por %p139, %p140
      %p143 = scmp.ne.s32.totalorder %s126, %s142
      %p144 = scmp.eq.s32.totalorder %s19, 0
      %p145 = por %p143, %p144
      %s146 = ssub.s32 %s20, %s39
      %s147 = ssub.s32 %s21, %s35
      %s148 = sor.u32 %s146, %s147
      %s149 = ssub.s32 %s22, %s31
      %s150 = sor.u32 %s148, %s149
      %p151 = scmp.eq.s32.totalorder %s150, 0
      %s153 = sadd.s32 %s152, 1
      %s154 = scalar_select %p151, %s152, %s153
      %p157 = pneg %p151
      %p158 = scmp.eq.s32.totalorder %s13, 1
      %p159 = por %p157, %p158
      %p160 = scmp.ne.s32.totalorder %s152, %s155
      %p161 = scmp.eq.s32.totalorder %s13, 0
      %p162 = por %p160, %p161
      %p163 = scmp.ne.s32.totalorder %s152, %s155
      %p164 = scmp.eq.s32.totalorder %s18, 1
      %p165 = por %p163, %p164
      %p166 = scmp.ne.s32.totalorder %s155, %s156
      %p167 = scmp.eq.s32.totalorder %s18, 0
      %p168 = por %p166, %p167
      %p169 = scmp.ne.s32.totalorder %s155, %s156
      %p170 = scmp.eq.s32.totalorder %s19, 1
      %p171 = por %p169, %p170
      %p173 = scmp.ne.s32.totalorder %s156, %s172
      %p174 = scmp.eq.s32.totalorder %s19, 0
      %p175 = por %p173, %p174
      %p176 = scmp.le.s32.totalorder 1, %s13
      %p177 = scmp.lt.s32.totalorder %s13, 3
      %p178 = pnand %p176, %p177
      %p179 = pneg %p178
      // Predicated region
      $region9: #{tpu_custom_call.1} parent=5 // pred_check
        _
      $region10: #{tpu_custom_call.1} parent=5 // pred_check_branch
        %181 = sbr.rel (%p178) target = $region12
      $region11: #{tpu_custom_call.1} parent=5 // pred_region
        %s182 = ssub.s32 %s13, 1
        // Predicated region
        $region13: #{tpu_custom_call.1} parent=11 // pred_check
          %p183 = pneg %p86
        $region14: #{tpu_custom_call.1} parent=11 // pred_check_branch
          %185 = sbr.rel (%p183) target = $region16
        $region15: #{tpu_custom_call.1} parent=11 // pred_region
          %p186 = scmp.lt.s32.totalorder %s25, 0
          %s187 = scalar_select %p186, %s25, 0
          %s188 = smul.addr %s187, 4
          %s189 = scalar_lea.vmem %s1, %s188
        $region16: #{tpu_custom_call.1} parent=11 // pred_fallthru
          _
        // Predicated region
        $region17: #{tpu_custom_call.1} parent=11 // pred_check
          %p190 = pneg %p112
        $region18: #{tpu_custom_call.1} parent=11 // pred_check_branch
          %192 = sbr.rel (%p190) target = $region20
        $region19: #{tpu_custom_call.1} parent=11 // pred_region
          %p193 = scmp.lt.s32.totalorder %s25, 0
          %s194 = scalar_select %p193, %s25, 0
          %s195 = scalar_lea.vmem %s2, %s194
        $region20: #{tpu_custom_call.1} parent=11 // pred_fallthru
          _
        // Predicated region
        $region21: #{tpu_custom_call.1} parent=11 // pred_check
          %p196 = pneg %p138
        $region22: #{tpu_custom_call.1} parent=11 // pred_check_branch
          %198 = sbr.rel (%p196) target = $region24
        $region23: #{tpu_custom_call.1} parent=11 // pred_region
          %p199 = scmp.lt.s32.totalorder %s25, 0
          %s200 = scalar_select %p199, %s25, 0
          %s201 = scalar_lea.vmem %s3, %s200
        $region24: #{tpu_custom_call.1} parent=11 // pred_fallthru
          _
      $region12: #{tpu_custom_call.1} parent=5 // pred_fallthru
        _
      %p202 = scmp.lt.s32.totalorder %s13, 2
      // Predicated region
      $region25: #{tpu_custom_call.1} parent=5 // pred_check
        %p203 = pneg %p202
      $region26: #{tpu_custom_call.1} parent=5 // pred_check_branch
        %205 = sbr.rel (%p203) target = $region28
      $region27: #{tpu_custom_call.1} parent=5 // pred_region
        // Predicated region
        $region29: #{tpu_custom_call.1} parent=27 // pred_check
          %p206 = pneg %p54
        $region30: #{tpu_custom_call.1} parent=27 // pred_check_branch
          %208 = sbr.rel (%p206) target = $region32
        $region31: #{tpu_custom_call.1} parent=27 // pred_region
          %p209 = scmp.lt.s32.totalorder %s20, 1
          %s210 = scalar_select %p209, %s20, 1
          %p211 = scmp.lt.s32.totalorder %s21, 0
          %s212 = scalar_select %p211, %s21, 0
          %s213 = smul.addr %s212, 54
          %s214 = smul.addr %s210, 54
          %s215 = sadd.s32 %s213, %s214
          %s216 = smul.addr %s215, 4
          %s217 = scalar_lea.vmem %s0, %s216
        $region32: #{tpu_custom_call.1} parent=27 // pred_fallthru
          _
      $region28: #{tpu_custom_call.1} parent=5 // pred_fallthru
        _
      %p218 = scmp.le.s32.totalorder 1, %s13
      %p219 = scmp.lt.s32.totalorder %s13, 3
      %p220 = pnand %p218, %p219
      %p221 = pneg %p220
      // Predicated region
      $region33: #{tpu_custom_call.1} parent=5 // pred_check
        _
      $region34: #{tpu_custom_call.1} parent=5 // pred_check_branch
        %223 = sbr.rel (%p220) target = $region36
      $region35: #{tpu_custom_call.1} parent=5 // pred_region
        %s224 = ssub.s32 %s13, 1
        %p225 = scmp.lt.s32.totalorder %s23, 1
        %s226 = scalar_select %p225, %s23, 1
        %p227 = scmp.lt.s32.totalorder %s24, 0
        %s228 = scalar_select %p227, %s24, 0
        %s229 = smul.addr %s228, 54
        %s230 = smul.addr %s226, 54
        %s231 = sadd.s32 %s229, %s230
        %s232 = smul.addr %s231, 4
        %s233 = scalar_lea.vmem %s0, %s232
        %p234 = pneg %p60
        %p235 = pneg %p57
        %p236 = scmp.lt.s32.totalorder %s25, 0
        %s237 = scalar_select %p236, %s25, 0
        %s238 = smul.addr %s237, 4
        %s239 = scalar_lea.vmem %s1, %s238
        %p240 = pneg %p86
        %p241 = pneg %p83
        %p242 = scmp.lt.s32.totalorder %s25, 0
        %s243 = scalar_select %p242, %s25, 0
        %s244 = scalar_lea.vmem %s2, %s243
        %p245 = pneg %p112
        %p246 = pneg %p109
        %p247 = scmp.lt.s32.totalorder %s25, 0
        %s248 = scalar_select %p247, %s25, 0
        %s249 = scalar_lea.vmem %s3, %s248
        %p250 = pneg %p138
        %p251 = pneg %p135
        %p252 = pneg %p168
        %p253 = pneg %p165
        %s254 = sand.u32 %s155, 1
        %s255 = scalar_lea.sflag [#allocation3], %s254
        %s256 = sand.u32 %s155, 1
        %s257 = smul.addr %s256, 128
        %s258 = scalar_lea.vmem [#allocation2], %s257
        %p259 = scmp.lt.s32.totalorder %s23, 1
        %s260 = scalar_select %p259, %s23, 1
        %p261 = scmp.lt.s32.totalorder %s24, 0
        %s262 = scalar_select %p261, %s24, 0
        %s263 = smul.addr %s262, 54
        %s264 = smul.addr %s260, 54
        %s265 = sadd.s32 %s263, %s264
        %s266 = smul.addr %s265, 4
        %s267 = scalar_lea.vmem %s0, %s266
        %p268 = scmp.lt.s32.totalorder %s25, 0
        %s269 = scalar_select %p268, %s25, 0
        %s270 = smul.addr %s269, 4
        %s271 = scalar_lea.vmem %s1, %s270
        %p272 = scmp.lt.s32.totalorder %s25, 0
        %s273 = scalar_select %p272, %s25, 0
        %s274 = scalar_lea.vmem %s2, %s273
        %p275 = scmp.lt.s32.totalorder %s25, 0
        %s276 = scalar_select %p275, %s25, 0
        %s277 = scalar_lea.vmem %s3, %s276
        %s278 = smul.u32 32, %s24
        %v280 = vld [vmem:[%s267] sm:$0xf]
        %v281 = vld [vmem:[%s267 + $0x4] sm:$0xf]
        %v282 = vld [vmem:[%s267 + $0xc] sm:$0xf]
        %v283 = vld [vmem:[%s267 + $0x10] sm:$0xf]
        %v284 = vld [vmem:[%s267 + $0x18] sm:$0xf]
        %v285 = vld [vmem:[%s267 + $0x1c] sm:$0xf]
        %v286 = vld [vmem:[%s267 + $0x24] sm:$0xf]
        %v287 = vld [vmem:[%s267 + $0x28] sm:$0xf]
        %v288 = vld [vmem:[%s267 + $0x30] sm:$0xf]
        %v289 = vld [vmem:[%s267 + $0x34] sm:$0xf]
        %v290 = vld [vmem:[%s267 + $0x3c] sm:$0xf]
        %v291 = vld [vmem:[%s267 + $0x40] sm:$0xf]
        %v292 = vld [vmem:[%s267 + $0x48] sm:$0xf]
        %v293 = vld [vmem:[%s267 + $0x4c] sm:$0xf]
        %v294 = vld [vmem:[%s267 + $0x54] sm:$0xf]
        %v295 = vld [vmem:[%s267 + $0x58] sm:$0xf]
        %v296 = vld [vmem:[%s267 + $0x60] sm:$0xf]
        %v297 = vld [vmem:[%s267 + $0x64] sm:$0xf]
        %v298 = vld [vmem:[%s267 + $0x6c] sm:$0xf]
        %v299 = vld [vmem:[%s267 + $0x70] sm:$0xf]
        %v300 = vld [vmem:[%s267 + $0x78] sm:$0xf]
        %v301 = vld [vmem:[%s267 + $0x7c] sm:$0xf]
        %v302 = vld [vmem:[%s267 + $0x84] sm:$0xf]
        %v303 = vld [vmem:[%s267 + $0x88] sm:$0xf]
        %v304 = vld [vmem:[%s267 + $0x90] sm:$0xf]
        %v305 = vld [vmem:[%s267 + $0x94] sm:$0xf]
        %v306 = vld [vmem:[%s267 + $0x9c] sm:$0xf]
        %v307 = vld [vmem:[%s267 + $0xa0] sm:$0xf]
        %v308 = vld [vmem:[%s267 + $0xa8] sm:$0xf]
        %v309 = vld [vmem:[%s267 + $0xac] sm:$0xf]
        %v310 = vld [vmem:[%s267 + $0xb4] sm:$0xf]
        %v311 = vld [vmem:[%s267 + $0xb8] sm:$0xf]
        %v312 = vld [vmem:[%s271] sm:$0xf]
        %v313 = vld [vmem:[%s271 + $0x4] sm:$0xf]
        %v314 = vld [vmem:[%s271 + $0x8] sm:$0xf]
        %v315 = vld [vmem:[%s271 + $0xc] sm:$0xf]
        %v316 = vld [vmem:[%s271 + $0x10] sm:$0xf]
        %v317 = vld [vmem:[%s271 + $0x14] sm:$0xf]
        %v318 = vld [vmem:[%s271 + $0x18] sm:$0xf]
        %v319 = vld [vmem:[%s271 + $0x1c] sm:$0xf]
        %v320 = vld [vmem:[%s271 + $0x20] sm:$0xf]
        %v321 = vld [vmem:[%s271 + $0x24] sm:$0xf]
        %v322 = vld [vmem:[%s271 + $0x28] sm:$0xf]
        %v323 = vld [vmem:[%s271 + $0x2c] sm:$0xf]
        %v324 = vld [vmem:[%s271 + $0x30] sm:$0xf]
        %v325 = vld [vmem:[%s271 + $0x34] sm:$0xf]
        %v326 = vld [vmem:[%s271 + $0x38] sm:$0xf]
        %v327 = vld [vmem:[%s271 + $0x3c] sm:$0xf]
        %v328 = vld [vmem:[%s267 + $0x8] sm:$0x1]
        %v329 = vld [vmem:[%s267 + $0x14] sm:$0x1]
        %v330 = vld [vmem:[%s267 + $0x20] sm:$0x1]
        %v331 = vld [vmem:[%s267 + $0x2c] sm:$0x1]
        %v332 = vld [vmem:[%s267 + $0x38] sm:$0x1]
        %v333 = vld [vmem:[%s267 + $0x44] sm:$0x1]
        %v334 = vld [vmem:[%s267 + $0x50] sm:$0x1]
        %v335 = vld [vmem:[%s267 + $0x5c] sm:$0x1]
        %v336 = vld [vmem:[%s267 + $0x68] sm:$0x1]
        %v337 = vld [vmem:[%s267 + $0x74] sm:$0x1]
        %v338 = vld [vmem:[%s267 + $0x80] sm:$0x1]
        %v339 = vld [vmem:[%s267 + $0x8c] sm:$0x1]
        %v340 = vld [vmem:[%s267 + $0x98] sm:$0x1]
        %v341 = vld [vmem:[%s267 + $0xa4] sm:$0x1]
        %v342 = vld [vmem:[%s267 + $0xb0] sm:$0x1]
        %v343 = vld [vmem:[%s267 + $0xbc] sm:$0x1]
        %vm344 = vsmask.f32 3328
        %vm345 = vsmask.f32 7440
        %vm346 = vmor %vm344, %vm345
        %v348 = vshrl.u32 %v280, 16
        %v350 = vrot.slane %v348, 4
        %v351 = vshll.u32 %v280, 16
        %v353 = vrot.slane %v351, 5
        %v354 = vor.u32 %v350, %v353
        %v355 = vrot.slane %v354, 4
        %v357 = vshll.u32 %v281, 16
        %v359 = vrot.slane %v357, 5
        %v360 = vsel %vm346, %v355, %v359
        %v361 = vshrl.u32 %v281, 16
        %v363 = vrot.slane %v361, 4
        %v364 = vor.u32 %v363, %v359
        %v365 = vrot.slane %v364, 4
        %v367 = vshll.u32 %v328, 16
        %v369 = vrot.slane %v367, 5
        %v370 = vsel %vm346, %v365, %v369
        %v372 = vshrl.u32 %v282, 16
        %v374 = vrot.slane %v372, 4
        %v375 = vshll.u32 %v282, 16
        %v377 = vrot.slane %v375, 5
        %v378 = vor.u32 %v374, %v377
        %v379 = vrot.slane %v378, 4
        %v381 = vshll.u32 %v283, 16
        %v383 = vrot.slane %v381, 5
        %v384 = vsel %vm346, %v379, %v383
        %v385 = vshrl.u32 %v283, 16
        %v387 = vrot.slane %v385, 4
        %v388 = vor.u32 %v387, %v383
        %v389 = vrot.slane %v388, 4
        %v391 = vshll.u32 %v329, 16
        %v393 = vrot.slane %v391, 5
        %v394 = vsel %vm346, %v389, %v393
        %v396 = vshrl.u32 %v284, 16
        %v398 = vrot.slane %v396, 4
        %v399 = vshll.u32 %v284, 16
        %v401 = vrot.slane %v399, 5
        %v402 = vor.u32 %v398, %v401
        %v403 = vrot.slane %v402, 4
        %v405 = vshll.u32 %v285, 16
        %v407 = vrot.slane %v405, 5
        %v408 = vsel %vm346, %v403, %v407
        %v409 = vshrl.u32 %v285, 16
        %v411 = vrot.slane %v409, 4
        %v412 = vor.u32 %v411, %v407
        %v413 = vrot.slane %v412, 4
        %v415 = vshll.u32 %v330, 16
        %v417 = vrot.slane %v415, 5
        %v418 = vsel %vm346, %v413, %v417
        %v420 = vshrl.u32 %v286, 16
        %v422 = vrot.slane %v420, 4
        %v423 = vshll.u32 %v286, 16
        %v425 = vrot.slane %v423, 5
        %v426 = vor.u32 %v422, %v425
        %v427 = vrot.slane %v426, 4
        %v429 = vshll.u32 %v287, 16
        %v431 = vrot.slane %v429, 5
        %v432 = vsel %vm346, %v427, %v431
        %v433 = vshrl.u32 %v287, 16
        %v435 = vrot.slane %v433, 4
        %v436 = vor.u32 %v435, %v431
        %v437 = vrot.slane %v436, 4
        %v439 = vshll.u32 %v331, 16
        %v441 = vrot.slane %v439, 5
        %v442 = vsel %vm346, %v437, %v441
        %v444 = vshrl.u32 %v288, 16
        %v446 = vrot.slane %v444, 4
        %v447 = vshll.u32 %v288, 16
        %v449 = vrot.slane %v447, 5
        %v450 = vor.u32 %v446, %v449
        %v451 = vrot.slane %v450, 4
        %v453 = vshll.u32 %v289, 16
        %v455 = vrot.slane %v453, 5
        %v456 = vsel %vm346, %v451, %v455
        %v457 = vshrl.u32 %v289, 16
        %v459 = vrot.slane %v457, 4
        %v460 = vor.u32 %v459, %v455
        %v461 = vrot.slane %v460, 4
        %v463 = vshll.u32 %v332, 16
        %v465 = vrot.slane %v463, 5
        %v466 = vsel %vm346, %v461, %v465
        %v468 = vshrl.u32 %v290, 16
        %v470 = vrot.slane %v468, 4
        %v471 = vshll.u32 %v290, 16
        %v473 = vrot.slane %v471, 5
        %v474 = vor.u32 %v470, %v473
        %v475 = vrot.slane %v474, 4
        %v477 = vshll.u32 %v291, 16
        %v479 = vrot.slane %v477, 5
        %v480 = vsel %vm346, %v475, %v479
        %v481 = vshrl.u32 %v291, 16
        %v483 = vrot.slane %v481, 4
        %v484 = vor.u32 %v483, %v479
        %v485 = vrot.slane %v484, 4
        %v487 = vshll.u32 %v333, 16
        %v489 = vrot.slane %v487, 5
        %v490 = vsel %vm346, %v485, %v489
        %v492 = vshrl.u32 %v292, 16
        %v494 = vrot.slane %v492, 4
        %v495 = vshll.u32 %v292, 16
        %v497 = vrot.slane %v495, 5
        %v498 = vor.u32 %v494, %v497
        %v499 = vrot.slane %v498, 4
        %v501 = vshll.u32 %v293, 16
        %v503 = vrot.slane %v501, 5
        %v504 = vsel %vm346, %v499, %v503
        %v505 = vshrl.u32 %v293, 16
        %v507 = vrot.slane %v505, 4
        %v508 = vor.u32 %v507, %v503
        %v509 = vrot.slane %v508, 4
        %v511 = vshll.u32 %v334, 16
        %v513 = vrot.slane %v511, 5
        %v514 = vsel %vm346, %v509, %v513
        %v516 = vshrl.u32 %v294, 16
        %v518 = vrot.slane %v516, 4
        %v519 = vshll.u32 %v294, 16
        %v521 = vrot.slane %v519, 5
        %v522 = vor.u32 %v518, %v521
        %v523 = vrot.slane %v522, 4
        %v525 = vshll.u32 %v295, 16
        %v527 = vrot.slane %v525, 5
        %v528 = vsel %vm346, %v523, %v527
        %v529 = vshrl.u32 %v295, 16
        %v531 = vrot.slane %v529, 4
        %v532 = vor.u32 %v531, %v527
        %v533 = vrot.slane %v532, 4
        %v535 = vshll.u32 %v335, 16
        %v537 = vrot.slane %v535, 5
        %v538 = vsel %vm346, %v533, %v537
        %v540 = vshrl.u32 %v296, 16
        %v542 = vrot.slane %v540, 4
        %v543 = vshll.u32 %v296, 16
        %v545 = vrot.slane %v543, 5
        %v546 = vor.u32 %v542, %v545
        %v547 = vrot.slane %v546, 4
        %v549 = vshll.u32 %v297, 16
        %v551 = vrot.slane %v549, 5
        %v552 = vsel %vm346, %v547, %v551
        %v553 = vshrl.u32 %v297, 16
        %v555 = vrot.slane %v553, 4
        %v556 = vor.u32 %v555, %v551
        %v557 = vrot.slane %v556, 4
        %v559 = vshll.u32 %v336, 16
        %v561 = vrot.slane %v559, 5
        %v562 = vsel %vm346, %v557, %v561
        %v564 = vshrl.u32 %v298, 16
        %v566 = vrot.slane %v564, 4
        %v567 = vshll.u32 %v298, 16
        %v569 = vrot.slane %v567, 5
        %v570 = vor.u32 %v566, %v569
        %v571 = vrot.slane %v570, 4
        %v573 = vshll.u32 %v299, 16
        %v575 = vrot.slane %v573, 5
        %v576 = vsel %vm346, %v571, %v575
        %v577 = vshrl.u32 %v299, 16
        %v579 = vrot.slane %v577, 4
        %v580 = vor.u32 %v579, %v575
        %v581 = vrot.slane %v580, 4
        %v583 = vshll.u32 %v337, 16
        %v585 = vrot.slane %v583, 5
        %v586 = vsel %vm346, %v581, %v585
        %v588 = vshrl.u32 %v300, 16
        %v590 = vrot.slane %v588, 4
        %v591 = vshll.u32 %v300, 16
        %v593 = vrot.slane %v591, 5
        %v594 = vor.u32 %v590, %v593
        %v595 = vrot.slane %v594, 4
        %v597 = vshll.u32 %v301, 16
        %v599 = vrot.slane %v597, 5
        %v600 = vsel %vm346, %v595, %v599
        %v601 = vshrl.u32 %v301, 16
        %v603 = vrot.slane %v601, 4
        %v604 = vor.u32 %v603, %v599
        %v605 = vrot.slane %v604, 4
        %v607 = vshll.u32 %v338, 16
        %v609 = vrot.slane %v607, 5
        %v610 = vsel %vm346, %v605, %v609
        %v612 = vshrl.u32 %v302, 16
        %v614 = vrot.slane %v612, 4
        %v615 = vshll.u32 %v302, 16
        %v617 = vrot.slane %v615, 5
        %v618 = vor.u32 %v614, %v617
        %v619 = vrot.slane %v618, 4
        %v621 = vshll.u32 %v303, 16
        %v623 = vrot.slane %v621, 5
        %v624 = vsel %vm346, %v619, %v623
        %v625 = vshrl.u32 %v303, 16
        %v627 = vrot.slane %v625, 4
        %v628 = vor.u32 %v627, %v623
        %v629 = vrot.slane %v628, 4
        %v631 = vshll.u32 %v339, 16
        %v633 = vrot.slane %v631, 5
        %v634 = vsel %vm346, %v629, %v633
        %v636 = vshrl.u32 %v304, 16
        %v638 = vrot.slane %v636, 4
        %v639 = vshll.u32 %v304, 16
        %v641 = vrot.slane %v639, 5
        %v642 = vor.u32 %v638, %v641
        %v643 = vrot.slane %v642, 4
        %v645 = vshll.u32 %v305, 16
        %v647 = vrot.slane %v645, 5
        %v648 = vsel %vm346, %v643, %v647
        %v649 = vshrl.u32 %v305, 16
        %v651 = vrot.slane %v649, 4
        %v652 = vor.u32 %v651, %v647
        %v653 = vrot.slane %v652, 4
        %v655 = vshll.u32 %v340, 16
        %v657 = vrot.slane %v655, 5
        %v658 = vsel %vm346, %v653, %v657
        %v660 = vshrl.u32 %v306, 16
        %v662 = vrot.slane %v660, 4
        %v663 = vshll.u32 %v306, 16
        %v665 = vrot.slane %v663, 5
        %v666 = vor.u32 %v662, %v665
        %v667 = vrot.slane %v666, 4
        %v669 = vshll.u32 %v307, 16
        %v671 = vrot.slane %v669, 5
        %v672 = vsel %vm346, %v667, %v671
        %v673 = vshrl.u32 %v307, 16
        %v675 = vrot.slane %v673, 4
        %v676 = vor.u32 %v675, %v671
        %v677 = vrot.slane %v676, 4
        %v679 = vshll.u32 %v341, 16
        %v681 = vrot.slane %v679, 5
        %v682 = vsel %vm346, %v677, %v681
        %v684 = vshrl.u32 %v308, 16
        %v686 = vrot.slane %v684, 4
        %v687 = vshll.u32 %v308, 16
        %v689 = vrot.slane %v687, 5
        %v690 = vor.u32 %v686, %v689
        %v691 = vrot.slane %v690, 4
        %v693 = vshll.u32 %v309, 16
        %v695 = vrot.slane %v693, 5
        %v696 = vsel %vm346, %v691, %v695
        %v697 = vshrl.u32 %v309, 16
        %v699 = vrot.slane %v697, 4
        %v700 = vor.u32 %v699, %v695
        %v701 = vrot.slane %v700, 4
        %v703 = vshll.u32 %v342, 16
        %v705 = vrot.slane %v703, 5
        %v706 = vsel %vm346, %v701, %v705
        %v708 = vshrl.u32 %v310, 16
        %v710 = vrot.slane %v708, 4
        %v711 = vshll.u32 %v310, 16
        %v713 = vrot.slane %v711, 5
        %v714 = vor.u32 %v710, %v713
        %v715 = vrot.slane %v714, 4
        %v717 = vshll.u32 %v311, 16
        %v719 = vrot.slane %v717, 5
        %v720 = vsel %vm346, %v715, %v719
        %v721 = vshrl.u32 %v311, 16
        %v723 = vrot.slane %v721, 4
        %v724 = vor.u32 %v723, %v719
        %v725 = vrot.slane %v724, 4
        %v727 = vshll.u32 %v343, 16
        %v729 = vrot.slane %v727, 5
        %v730 = vsel %vm346, %v725, %v729
        %s731 = scalar_lea.vmem %s271, 64
        %v732 = vld [vmem:[%s731] sm:$0xf]
        %v733 = vld [vmem:[%s731 + $0x4] sm:$0xf]
        %v734 = vld [vmem:[%s731 + $0x8] sm:$0xf]
        %v735 = vld [vmem:[%s731 + $0xc] sm:$0xf]
        %v736 = vld [vmem:[%s731 + $0x10] sm:$0xf]
        %v737 = vld [vmem:[%s731 + $0x14] sm:$0xf]
        %v738 = vld [vmem:[%s731 + $0x18] sm:$0xf]
        %v739 = vld [vmem:[%s731 + $0x1c] sm:$0xf]
        %v740 = vld [vmem:[%s731 + $0x20] sm:$0xf]
        %v741 = vld [vmem:[%s731 + $0x24] sm:$0xf]
        %v742 = vld [vmem:[%s731 + $0x28] sm:$0xf]
        %v743 = vld [vmem:[%s731 + $0x2c] sm:$0xf]
        %v744 = vld [vmem:[%s731 + $0x30] sm:$0xf]
        %v745 = vld [vmem:[%s731 + $0x34] sm:$0xf]
        %v746 = vld [vmem:[%s731 + $0x38] sm:$0xf]
        %v747 = vld [vmem:[%s731 + $0x3c] sm:$0xf]
        %v748 = vunpack.c.l.b16 %v360
        %v749 = vunpack.c.l.b16 %v370
        %v750 = vunpack.c.l.b16 %v384
        %v751 = vunpack.c.l.b16 %v394
        %v752 = vunpack.c.l.b16 %v408
        %v753 = vunpack.c.l.b16 %v418
        %v754 = vunpack.c.l.b16 %v432
        %v755 = vunpack.c.l.b16 %v442
        %v756 = vunpack.c.l.b16 %v456
        %v757 = vunpack.c.l.b16 %v466
        %v758 = vunpack.c.l.b16 %v480
        %v759 = vunpack.c.l.b16 %v490
        %v760 = vunpack.c.l.b16 %v504
        %v761 = vunpack.c.l.b16 %v514
        %v762 = vunpack.c.l.b16 %v528
        %v763 = vunpack.c.l.b16 %v538
        %v764 = vunpack.c.l.b16 %v552
        %v765 = vunpack.c.l.b16 %v562
        %v766 = vunpack.c.l.b16 %v576
        %v767 = vunpack.c.l.b16 %v586
        %v768 = vunpack.c.l.b16 %v600
        %v769 = vunpack.c.l.b16 %v610
        %v770 = vunpack.c.l.b16 %v624
        %v771 = vunpack.c.l.b16 %v634
        %v772 = vunpack.c.l.b16 %v648
        %v773 = vunpack.c.l.b16 %v658
        %v774 = vunpack.c.l.b16 %v672
        %v775 = vunpack.c.l.b16 %v682
        %v776 = vunpack.c.l.b16 %v696
        %v777 = vunpack.c.l.b16 %v706
        %v778 = vunpack.c.l.b16 %v720
        %v779 = vunpack.c.l.b16 %v730
        %v780 = vpack.c.b16 %v749, %v748
        %v781 = vpack.c.b16 %v751, %v750
        %v782 = vpack.c.b16 %v753, %v752
        %v783 = vpack.c.b16 %v755, %v754
        %v784 = vpack.c.b16 %v757, %v756
        %v785 = vpack.c.b16 %v759, %v758
        %v786 = vpack.c.b16 %v761, %v760
        %v787 = vpack.c.b16 %v763, %v762
        %v788 = vpack.c.b16 %v765, %v764
        %v789 = vpack.c.b16 %v767, %v766
        %v790 = vpack.c.b16 %v769, %v768
        %v791 = vpack.c.b16 %v771, %v770
        %v792 = vpack.c.b16 %v773, %v772
        %v793 = vpack.c.b16 %v775, %v774
        %v794 = vpack.c.b16 %v777, %v776
        %v795 = vpack.c.b16 %v779, %v778
        %v828 = vunpack.c.l.b16 %v732
        %v829 = vunpack.c.l.b16 %v733
        %v830 = vunpack.c.l.b16 %v734
        %v831 = vunpack.c.l.b16 %v735
        %v832 = vunpack.c.l.b16 %v736
        %v833 = vunpack.c.l.b16 %v737
        %v834 = vunpack.c.l.b16 %v738
        %v835 = vunpack.c.l.b16 %v739
        %v836 = vunpack.c.l.b16 %v740
        %v837 = vunpack.c.l.b16 %v741
        %v838 = vunpack.c.l.b16 %v742
        %v839 = vunpack.c.l.b16 %v743
        %v840 = vunpack.c.l.b16 %v744
        %v841 = vunpack.c.l.b16 %v745
        %v842 = vunpack.c.l.b16 %v746
        %v843 = vunpack.c.l.b16 %v747
        %v844 = vpack.c.b16 %v829, %v828
        %v845 = vpack.c.b16 %v831, %v830
        %v846 = vpack.c.b16 %v833, %v832
        %v847 = vpack.c.b16 %v835, %v834
        %v848 = vpack.c.b16 %v837, %v836
        %v849 = vpack.c.b16 %v839, %v838
        %v850 = vpack.c.b16 %v841, %v840
        %v851 = vpack.c.b16 %v843, %v842
        %860 = vmatprep.subr.bf16.mxu0 0
        %861 = vmatpush1.bf16.msra.mxu0 %v851
        %862 = vmatprep.subr.bf16.mxu0 0
        %863 = vmatpush1.bf16.msra.mxu0 %v850
        %864 = vmatprep.subr.bf16.mxu0 0
        %865 = vmatpush1.bf16.msra.mxu0 %v849
        %866 = vmatprep.subr.bf16.mxu0 0
        %867 = vmatpush1.bf16.msra.mxu0 %v848
        %868 = vmatprep.subr.bf16.mxu0 0
        %869 = vmatpush1.bf16.msra.mxu0 %v847
        %870 = vmatprep.subr.bf16.mxu0 0
        %871 = vmatpush1.bf16.msra.mxu0 %v846
        %872 = vmatprep.subr.bf16.mxu0 0
        %873 = vmatpush1.bf16.msra.mxu0 %v845
        %874 = vmatprep.subr.bf16.mxu0 0
        %875 = vmatpush1.bf16.msra.mxu0 %v844
        %876 = vmatprep.subr.bf16.mxu0 0
        %877 = vmatpush2.bf16.msra.mxu0 0
        %878 = vmatprep.subr.bf16.mxu0 0
        %879 = vmatpush2.bf16.msra.mxu0 0
        %880 = vmatprep.subr.bf16.mxu0 0
        %881 = vmatpush2.bf16.msra.mxu0 0
        %882 = vmatprep.subr.bf16.mxu0 0
        %883 = vmatpush2.bf16.msra.mxu0 0
        %884 = vmatprep.subr.bf16.mxu0 0
        %885 = vmatpush2.bf16.msra.mxu0 0
        %886 = vmatprep.subr.bf16.mxu0 0
        %887 = vmatpush2.bf16.msra.mxu0 0
        %888 = vmatprep.subr.bf16.mxu0 0
        %889 = vmatpush2.bf16.msra.mxu0 0
        %890 = vmatprep.subr.bf16.mxu0 0
        %891 = vmatpush2.bf16.msra.mxu0 0
        %892 = vmatprep.mubr.bf16.mxu0 0
        %893 = vmatmul.mubr.bf16.gmra.mxu0 %v780
        %v894 = vpop.f32.mrf.mxu0
        %v895 = vadd.f32 0.0, %v894
        %v896 = vpop.f32.mrf.mxu0
        %v897 = vpop.f32.mrf.mxu0
        %v898 = vadd.f32 0.0, %v897
        %v899 = vpop.f32.mrf.mxu0
        %900 = vmatprep.mubr.bf16.mxu0 0
        %901 = vmatmul.mubr.bf16.gmra.mxu0 %v781
        %v902 = vpop.f32.mrf.mxu0
        %v903 = vadd.f32 0.0, %v902
        %v904 = vpop.f32.mrf.mxu0
        %v905 = vpop.f32.mrf.mxu0
        %v906 = vadd.f32 0.0, %v905
        %v907 = vpop.f32.mrf.mxu0
        %908 = vmatprep.mubr.bf16.mxu0 0
        %909 = vmatmul.mubr.bf16.gmra.mxu0 %v782
        %v910 = vpop.f32.mrf.mxu0
        %v911 = vadd.f32 0.0, %v910
        %v912 = vpop.f32.mrf.mxu0
        %v913 = vpop.f32.mrf.mxu0
        %v914 = vadd.f32 0.0, %v913
        %v915 = vpop.f32.mrf.mxu0
        %916 = vmatprep.mubr.bf16.mxu0 0
        %917 = vmatmul.mubr.bf16.gmra.mxu0 %v783
        %v918 = vpop.f32.mrf.mxu0
        %v919 = vadd.f32 0.0, %v918
        %v920 = vpop.f32.mrf.mxu0
        %v921 = vpop.f32.mrf.mxu0
        %v922 = vadd.f32 0.0, %v921
        %v923 = vpop.f32.mrf.mxu0
        %924 = vmatprep.mubr.bf16.mxu0 0
        %925 = vmatmul.mubr.bf16.gmra.mxu0 %v784
        %v926 = vpop.f32.mrf.mxu0
        %v927 = vadd.f32 0.0, %v926
        %v928 = vpop.f32.mrf.mxu0
        %v929 = vpop.f32.mrf.mxu0
        %v930 = vadd.f32 0.0, %v929
        %v931 = vpop.f32.mrf.mxu0
        %932 = vmatprep.mubr.bf16.mxu0 0
        %933 = vmatmul.mubr.bf16.gmra.mxu0 %v785
        %v934 = vpop.f32.mrf.mxu0
        %v935 = vadd.f32 0.0, %v934
        %v936 = vpop.f32.mrf.mxu0
        %v937 = vpop.f32.mrf.mxu0
        %v938 = vadd.f32 0.0, %v937
        %v939 = vpop.f32.mrf.mxu0
        %940 = vmatprep.mubr.bf16.mxu0 0
        %941 = vmatmul.mubr.bf16.gmra.mxu0 %v786
        %v942 = vpop.f32.mrf.mxu0
        %v943 = vadd.f32 0.0, %v942
        %v944 = vpop.f32.mrf.mxu0
        %v945 = vpop.f32.mrf.mxu0
        %v946 = vadd.f32 0.0, %v945
        %v947 = vpop.f32.mrf.mxu0
        %948 = vmatprep.mubr.bf16.mxu0 0
        %949 = vmatmul.mubr.bf16.gmra.mxu0 %v787
        %v950 = vpop.f32.mrf.mxu0
        %v951 = vadd.f32 0.0, %v950
        %v952 = vpop.f32.mrf.mxu0
        %v953 = vpop.f32.mrf.mxu0
        %v954 = vadd.f32 0.0, %v953
        %v955 = vpop.f32.mrf.mxu0
        %956 = vmatprep.mubr.bf16.mxu0 0
        %957 = vmatmul.mubr.bf16.gmra.mxu0 %v788
        %v958 = vpop.f32.mrf.mxu0
        %v959 = vadd.f32 0.0, %v958
        %v960 = vpop.f32.mrf.mxu0
        %v961 = vpop.f32.mrf.mxu0
        %v962 = vadd.f32 0.0, %v961
        %v963 = vpop.f32.mrf.mxu0
        %964 = vmatprep.mubr.bf16.mxu0 0
        %965 = vmatmul.mubr.bf16.gmra.mxu0 %v789
        %v966 = vpop.f32.mrf.mxu0
        %v967 = vadd.f32 0.0, %v966
        %v968 = vpop.f32.mrf.mxu0
        %v969 = vpop.f32.mrf.mxu0
        %v970 = vadd.f32 0.0, %v969
        %v971 = vpop.f32.mrf.mxu0
        %972 = vmatprep.mubr.bf16.mxu0 0
        %973 = vmatmul.mubr.bf16.gmra.mxu0 %v790
        %v974 = vpop.f32.mrf.mxu0
        %v975 = vadd.f32 0.0, %v974
        %v976 = vpop.f32.mrf.mxu0
        %v977 = vpop.f32.mrf.mxu0
        %v978 = vadd.f32 0.0, %v977
        %v979 = vpop.f32.mrf.mxu0
        %980 = vmatprep.mubr.bf16.mxu0 0
        %981 = vmatmul.mubr.bf16.gmra.mxu0 %v791
        %v982 = vpop.f32.mrf.mxu0
        %v983 = vadd.f32 0.0, %v982
        %v984 = vpop.f32.mrf.mxu0
        %v985 = vpop.f32.mrf.mxu0
        %v986 = vadd.f32 0.0, %v985
        %v987 = vpop.f32.mrf.mxu0
        %988 = vmatprep.mubr.bf16.mxu0 0
        %989 = vmatmul.mubr.bf16.gmra.mxu0 %v792
        %v990 = vpop.f32.mrf.mxu0
        %v991 = vadd.f32 0.0, %v990
        %v992 = vpop.f32.mrf.mxu0
        %v993 = vpop.f32.mrf.mxu0
        %v994 = vadd.f32 0.0, %v993
        %v995 = vpop.f32.mrf.mxu0
        %996 = vmatprep.mubr.bf16.mxu0 0
        %997 = vmatmul.mubr.bf16.gmra.mxu0 %v793
        %v998 = vpop.f32.mrf.mxu0
        %v999 = vadd.f32 0.0, %v998
        %v1000 = vpop.f32.mrf.mxu0
        %v1001 = vpop.f32.mrf.mxu0
        %v1002 = vadd.f32 0.0, %v1001
        %v1003 = vpop.f32.mrf.mxu0
        %1004 = vmatprep.mubr.bf16.mxu0 0
        %1005 = vmatmul.mubr.bf16.gmra.mxu0 %v794
        %v1006 = vpop.f32.mrf.mxu0
        %v1007 = vadd.f32 0.0, %v1006
        %v1008 = vpop.f32.mrf.mxu0
        %v1009 = vpop.f32.mrf.mxu0
        %v1010 = vadd.f32 0.0, %v1009
        %v1011 = vpop.f32.mrf.mxu0
        %1012 = vmatprep.mubr.bf16.mxu0 0
        %1013 = vmatmul.mubr.bf16.gmra.mxu0 %v795
        %v1014 = vpop.f32.mrf.mxu0
        %v1015 = vadd.f32 0.0, %v1014
        %v1016 = vpop.f32.mrf.mxu0
        %v1017 = vpop.f32.mrf.mxu0
        %v1018 = vadd.f32 0.0, %v1017
        %v1019 = vpop.f32.mrf.mxu0
        %1020 = vdwg.mxu0
        %v1053 = vunpack.c.l.b16 %v280
        %v1054 = vunpack.c.l.b16 %v281
        %v1055 = vunpack.c.l.b16 %v282
        %v1056 = vunpack.c.l.b16 %v283
        %v1057 = vunpack.c.l.b16 %v284
        %v1058 = vunpack.c.l.b16 %v285
        %v1059 = vunpack.c.l.b16 %v286
        %v1060 = vunpack.c.l.b16 %v287
        %v1061 = vunpack.c.l.b16 %v288
        %v1062 = vunpack.c.l.b16 %v289
        %v1063 = vunpack.c.l.b16 %v290
        %v1064 = vunpack.c.l.b16 %v291
        %v1065 = vunpack.c.l.b16 %v292
        %v1066 = vunpack.c.l.b16 %v293
        %v1067 = vunpack.c.l.b16 %v294
        %v1068 = vunpack.c.l.b16 %v295
        %v1069 = vunpack.c.l.b16 %v296
        %v1070 = vunpack.c.l.b16 %v297
        %v1071 = vunpack.c.l.b16 %v298
        %v1072 = vunpack.c.l.b16 %v299
        %v1073 = vunpack.c.l.b16 %v300
        %v1074 = vunpack.c.l.b16 %v301
        %v1075 = vunpack.c.l.b16 %v302
        %v1076 = vunpack.c.l.b16 %v303
        %v1077 = vunpack.c.l.b16 %v304
        %v1078 = vunpack.c.l.b16 %v305
        %v1079 = vunpack.c.l.b16 %v306
        %v1080 = vunpack.c.l.b16 %v307
        %v1081 = vunpack.c.l.b16 %v308
        %v1082 = vunpack.c.l.b16 %v309
        %v1083 = vunpack.c.l.b16 %v310
        %v1084 = vunpack.c.l.b16 %v311
        %v1085 = vpack.c.b16 %v1054, %v1053
        %v1086 = vpack.c.b16 %v1056, %v1055
        %v1087 = vpack.c.b16 %v1058, %v1057
        %v1088 = vpack.c.b16 %v1060, %v1059
        %v1089 = vpack.c.b16 %v1062, %v1061
        %v1090 = vpack.c.b16 %v1064, %v1063
        %v1091 = vpack.c.b16 %v1066, %v1065
        %v1092 = vpack.c.b16 %v1068, %v1067
        %v1093 = vpack.c.b16 %v1070, %v1069
        %v1094 = vpack.c.b16 %v1072, %v1071
        %v1095 = vpack.c.b16 %v1074, %v1073
        %v1096 = vpack.c.b16 %v1076, %v1075
        %v1097 = vpack.c.b16 %v1078, %v1077
        %v1098 = vpack.c.b16 %v1080, %v1079
        %v1099 = vpack.c.b16 %v1082, %v1081
        %v1100 = vpack.c.b16 %v1084, %v1083
        %v1133 = vunpack.c.l.b16 %v312
        %v1134 = vunpack.c.l.b16 %v313
        %v1135 = vunpack.c.l.b16 %v314
        %v1136 = vunpack.c.l.b16 %v315
        %v1137 = vunpack.c.l.b16 %v316
        %v1138 = vunpack.c.l.b16 %v317
        %v1139 = vunpack.c.l.b16 %v318
        %v1140 = vunpack.c.l.b16 %v319
        %v1141 = vunpack.c.l.b16 %v320
        %v1142 = vunpack.c.l.b16 %v321
        %v1143 = vunpack.c.l.b16 %v322
        %v1144 = vunpack.c.l.b16 %v323
        %v1145 = vunpack.c.l.b16 %v324
        %v1146 = vunpack.c.l.b16 %v325
        %v1147 = vunpack.c.l.b16 %v326
        %v1148 = vunpack.c.l.b16 %v327
        %v1149 = vpack.c.b16 %v1134, %v1133
        %v1150 = vpack.c.b16 %v1136, %v1135
        %v1151 = vpack.c.b16 %v1138, %v1137
        %v1152 = vpack.c.b16 %v1140, %v1139
        %v1153 = vpack.c.b16 %v1142, %v1141
        %v1154 = vpack.c.b16 %v1144, %v1143
        %v1155 = vpack.c.b16 %v1146, %v1145
        %v1156 = vpack.c.b16 %v1148, %v1147
        %1165 = vmatprep.subr.bf16.mxu0 0
        %1166 = vmatpush1.bf16.msra.mxu0 %v1156
        %1167 = vmatprep.subr.bf16.mxu0 0
        %1168 = vmatpush1.bf16.msra.mxu0 %v1155
        %1169 = vmatprep.subr.bf16.mxu0 0
        %1170 = vmatpush1.bf16.msra.mxu0 %v1154
        %1171 = vmatprep.subr.bf16.mxu0 0
        %1172 = vmatpush1.bf16.msra.mxu0 %v1153
        %1173 = vmatprep.subr.bf16.mxu0 0
        %1174 = vmatpush1.bf16.msra.mxu0 %v1152
        %1175 = vmatprep.subr.bf16.mxu0 0
        %1176 = vmatpush1.bf16.msra.mxu0 %v1151
        %1177 = vmatprep.subr.bf16.mxu0 0
        %1178 = vmatpush1.bf16.msra.mxu0 %v1150
        %1179 = vmatprep.subr.bf16.mxu0 0
        %1180 = vmatpush1.bf16.msra.mxu0 %v1149
        %1181 = vmatprep.subr.bf16.mxu0 0
        %1182 = vmatpush2.bf16.msra.mxu0 0
        %1183 = vmatprep.subr.bf16.mxu0 0
        %1184 = vmatpush2.bf16.msra.mxu0 0
        %1185 = vmatprep.subr.bf16.mxu0 0
        %1186 = vmatpush2.bf16.msra.mxu0 0
        %1187 = vmatprep.subr.bf16.mxu0 0
        %1188 = vmatpush2.bf16.msra.mxu0 0
        %1189 = vmatprep.subr.bf16.mxu0 0
        %1190 = vmatpush2.bf16.msra.mxu0 0
        %1191 = vmatprep.subr.bf16.mxu0 0
        %1192 = vmatpush2.bf16.msra.mxu0 0
        %1193 = vmatprep.subr.bf16.mxu0 0
        %1194 = vmatpush2.bf16.msra.mxu0 0
        %1195 = vmatprep.subr.bf16.mxu0 0
        %1196 = vmatpush2.bf16.msra.mxu0 0
        %1197 = vmatprep.mubr.bf16.mxu0 0
        %1198 = vmatmul.mubr.bf16.gmra.mxu0 %v1085
        %v1199 = vpop.f32.mrf.mxu0
        %v1200 = vadd.f32 %v895, %v1199
        %v1201 = vpop.f32.mrf.mxu0
        %v1202 = vpop.f32.mrf.mxu0
        %v1203 = vadd.f32 %v898, %v1202
        %v1204 = vpop.f32.mrf.mxu0
        %1205 = vmatprep.mubr.bf16.mxu0 0
        %1206 = vmatmul.mubr.bf16.gmra.mxu0 %v1086
        %v1207 = vpop.f32.mrf.mxu0
        %v1208 = vadd.f32 %v903, %v1207
        %v1209 = vpop.f32.mrf.mxu0
        %v1210 = vpop.f32.mrf.mxu0
        %v1211 = vadd.f32 %v906, %v1210
        %v1212 = vpop.f32.mrf.mxu0
        %1213 = vmatprep.mubr.bf16.mxu0 0
        %1214 = vmatmul.mubr.bf16.gmra.mxu0 %v1087
        %v1215 = vpop.f32.mrf.mxu0
        %v1216 = vadd.f32 %v911, %v1215
        %v1217 = vpop.f32.mrf.mxu0
        %v1218 = vpop.f32.mrf.mxu0
        %v1219 = vadd.f32 %v914, %v1218
        %v1220 = vpop.f32.mrf.mxu0
        %1221 = vmatprep.mubr.bf16.mxu0 0
        %1222 = vmatmul.mubr.bf16.gmra.mxu0 %v1088
        %v1223 = vpop.f32.mrf.mxu0
        %v1224 = vadd.f32 %v919, %v1223
        %v1225 = vpop.f32.mrf.mxu0
        %v1226 = vpop.f32.mrf.mxu0
        %v1227 = vadd.f32 %v922, %v1226
        %v1228 = vpop.f32.mrf.mxu0
        %1229 = vmatprep.mubr.bf16.mxu0 0
        %1230 = vmatmul.mubr.bf16.gmra.mxu0 %v1089
        %v1231 = vpop.f32.mrf.mxu0
        %v1232 = vadd.f32 %v927, %v1231
        %v1233 = vpop.f32.mrf.mxu0
        %v1234 = vpop.f32.mrf.mxu0
        %v1235 = vadd.f32 %v930, %v1234
        %v1236 = vpop.f32.mrf.mxu0
        %1237 = vmatprep.mubr.bf16.mxu0 0
        %1238 = vmatmul.mubr.bf16.gmra.mxu0 %v1090
        %v1239 = vpop.f32.mrf.mxu0
        %v1240 = vadd.f32 %v935, %v1239
        %v1241 = vpop.f32.mrf.mxu0
        %v1242 = vpop.f32.mrf.mxu0
        %v1243 = vadd.f32 %v938, %v1242
        %v1244 = vpop.f32.mrf.mxu0
        %1245 = vmatprep.mubr.bf16.mxu0 0
        %1246 = vmatmul.mubr.bf16.gmra.mxu0 %v1091
        %v1247 = vpop.f32.mrf.mxu0
        %v1248 = vadd.f32 %v943, %v1247
        %v1249 = vpop.f32.mrf.mxu0
        %v1250 = vpop.f32.mrf.mxu0
        %v1251 = vadd.f32 %v946, %v1250
        %v1252 = vpop.f32.mrf.mxu0
        %1253 = vmatprep.mubr.bf16.mxu0 0
        %1254 = vmatmul.mubr.bf16.gmra.mxu0 %v1092
        %v1255 = vpop.f32.mrf.mxu0
        %v1256 = vadd.f32 %v951, %v1255
        %v1257 = vpop.f32.mrf.mxu0
        %v1258 = vpop.f32.mrf.mxu0
        %v1259 = vadd.f32 %v954, %v1258
        %v1260 = vpop.f32.mrf.mxu0
        %1261 = vmatprep.mubr.bf16.mxu0 0
        %1262 = vmatmul.mubr.bf16.gmra.mxu0 %v1093
        %v1263 = vpop.f32.mrf.mxu0
        %v1264 = vadd.f32 %v959, %v1263
        %v1265 = vpop.f32.mrf.mxu0
        %v1266 = vpop.f32.mrf.mxu0
        %v1267 = vadd.f32 %v962, %v1266
        %v1268 = vpop.f32.mrf.mxu0
        %1269 = vmatprep.mubr.bf16.mxu0 0
        %1270 = vmatmul.mubr.bf16.gmra.mxu0 %v1094
        %v1271 = vpop.f32.mrf.mxu0
        %v1272 = vadd.f32 %v967, %v1271
        %v1273 = vpop.f32.mrf.mxu0
        %v1274 = vpop.f32.mrf.mxu0
        %v1275 = vadd.f32 %v970, %v1274
        %v1276 = vpop.f32.mrf.mxu0
        %1277 = vmatprep.mubr.bf16.mxu0 0
        %1278 = vmatmul.mubr.bf16.gmra.mxu0 %v1095
        %v1279 = vpop.f32.mrf.mxu0
        %v1280 = vadd.f32 %v975, %v1279
        %v1281 = vpop.f32.mrf.mxu0
        %v1282 = vpop.f32.mrf.mxu0
        %v1283 = vadd.f32 %v978, %v1282
        %v1284 = vpop.f32.mrf.mxu0
        %1285 = vmatprep.mubr.bf16.mxu0 0
        %1286 = vmatmul.mubr.bf16.gmra.mxu0 %v1096
        %v1287 = vpop.f32.mrf.mxu0
        %v1288 = vadd.f32 %v983, %v1287
        %v1289 = vpop.f32.mrf.mxu0
        %v1290 = vpop.f32.mrf.mxu0
        %v1291 = vadd.f32 %v986, %v1290
        %v1292 = vpop.f32.mrf.mxu0
        %1293 = vmatprep.mubr.bf16.mxu0 0
        %1294 = vmatmul.mubr.bf16.gmra.mxu0 %v1097
        %v1295 = vpop.f32.mrf.mxu0
        %v1296 = vadd.f32 %v991, %v1295
        %v1297 = vpop.f32.mrf.mxu0
        %v1298 = vpop.f32.mrf.mxu0
        %v1299 = vadd.f32 %v994, %v1298
        %v1300 = vpop.f32.mrf.mxu0
        %1301 = vmatprep.mubr.bf16.mxu0 0
        %1302 = vmatmul.mubr.bf16.gmra.mxu0 %v1098
        %v1303 = vpop.f32.mrf.mxu0
        %v1304 = vadd.f32 %v999, %v1303
        %v1305 = vpop.f32.mrf.mxu0
        %v1306 = vpop.f32.mrf.mxu0
        %v1307 = vadd.f32 %v1002, %v1306
        %v1308 = vpop.f32.mrf.mxu0
        %1309 = vmatprep.mubr.bf16.mxu0 0
        %1310 = vmatmul.mubr.bf16.gmra.mxu0 %v1099
        %v1311 = vpop.f32.mrf.mxu0
        %v1312 = vadd.f32 %v1007, %v1311
        %v1313 = vpop.f32.mrf.mxu0
        %v1314 = vpop.f32.mrf.mxu0
        %v1315 = vadd.f32 %v1010, %v1314
        %v1316 = vpop.f32.mrf.mxu0
        %1317 = vmatprep.mubr.bf16.mxu0 0
        %1318 = vmatmul.mubr.bf16.gmra.mxu0 %v1100
        %v1319 = vpop.f32.mrf.mxu0
        %v1320 = vadd.f32 %v1015, %v1319
        %v1321 = vpop.f32.mrf.mxu0
        %v1322 = vpop.f32.mrf.mxu0
        %v1323 = vadd.f32 %v1018, %v1322
        %v1324 = vpop.f32.mrf.mxu0
        %1325 = vdwg.mxu0
        %v1326 = vld [vmem:[%s267] sm:$0xe]
        %v1327 = vld [vmem:[%s267 + $0xc] sm:$0xe]
        %v1328 = vld [vmem:[%s267 + $0x18] sm:$0xe]
        %v1329 = vld [vmem:[%s267 + $0x24] sm:$0xe]
        %v1330 = vld [vmem:[%s267 + $0x30] sm:$0xe]
        %v1331 = vld [vmem:[%s267 + $0x3c] sm:$0xe]
        %v1332 = vld [vmem:[%s267 + $0x48] sm:$0xe]
        %v1333 = vld [vmem:[%s267 + $0x54] sm:$0xe]
        %v1334 = vld [vmem:[%s267 + $0x60] sm:$0xe]
        %v1335 = vld [vmem:[%s267 + $0x6c] sm:$0xe]
        %v1336 = vld [vmem:[%s267 + $0x78] sm:$0xe]
        %v1337 = vld [vmem:[%s267 + $0x84] sm:$0xe]
        %v1338 = vld [vmem:[%s267 + $0x90] sm:$0xe]
        %v1339 = vld [vmem:[%s267 + $0x9c] sm:$0xe]
        %v1340 = vld [vmem:[%s267 + $0xa8] sm:$0xe]
        %v1341 = vld [vmem:[%s267 + $0xb4] sm:$0xe]
        %vm1374 = vcmask 1042432
        %vm1375 = vcmask 1046532
        %vm1376 = vmor %vm1374, %vm1375
        %v1377 = vrot.slane %v1326, 5
        %v1378 = vrot.slane %v1377, 4
        %v1379 = vrot.slane %v281, 5
        %v1380 = vsel %vm1376, %v1378, %v1379
        %v1381 = vrot.slane %v1379, 4
        %v1382 = vrot.slane %v328, 5
        %v1383 = vsel %vm1376, %v1381, %v1382
        %v1384 = vrot.slane %v1327, 5
        %v1385 = vrot.slane %v1384, 4
        %v1386 = vrot.slane %v283, 5
        %v1387 = vsel %vm1376, %v1385, %v1386
        %v1388 = vrot.slane %v1386, 4
        %v1389 = vrot.slane %v329, 5
        %v1390 = vsel %vm1376, %v1388, %v1389
        %v1391 = vrot.slane %v1328, 5
        %v1392 = vrot.slane %v1391, 4
        %v1393 = vrot.slane %v285, 5
        %v1394 = vsel %vm1376, %v1392, %v1393
        %v1395 = vrot.slane %v1393, 4
        %v1396 = vrot.slane %v330, 5
        %v1397 = vsel %vm1376, %v1395, %v1396
        %v1398 = vrot.slane %v1329, 5
        %v1399 = vrot.slane %v1398, 4
        %v1400 = vrot.slane %v287, 5
        %v1401 = vsel %vm1376, %v1399, %v1400
        %v1402 = vrot.slane %v1400, 4
        %v1403 = vrot.slane %v331, 5
        %v1404 = vsel %vm1376, %v1402, %v1403
        %v1405 = vrot.slane %v1330, 5
        %v1406 = vrot.slane %v1405, 4
        %v1407 = vrot.slane %v289, 5
        %v1408 = vsel %vm1376, %v1406, %v1407
        %v1409 = vrot.slane %v1407, 4
        %v1410 = vrot.slane %v332, 5
        %v1411 = vsel %vm1376, %v1409, %v1410
        %v1412 = vrot.slane %v1331, 5
        %v1413 = vrot.slane %v1412, 4
        %v1414 = vrot.slane %v291, 5
        %v1415 = vsel %vm1376, %v1413, %v1414
        %v1416 = vrot.slane %v1414, 4
        %v1417 = vrot.slane %v333, 5
        %v1418 = vsel %vm1376, %v1416, %v1417
        %v1419 = vrot.slane %v1332, 5
        %v1420 = vrot.slane %v1419, 4
        %v1421 = vrot.slane %v293, 5
        %v1422 = vsel %vm1376, %v1420, %v1421
        %v1423 = vrot.slane %v1421, 4
        %v1424 = vrot.slane %v334, 5
        %v1425 = vsel %vm1376, %v1423, %v1424
        %v1426 = vrot.slane %v1333, 5
        %v1427 = vrot.slane %v1426, 4
        %v1428 = vrot.slane %v295, 5
        %v1429 = vsel %vm1376, %v1427, %v1428
        %v1430 = vrot.slane %v1428, 4
        %v1431 = vrot.slane %v335, 5
        %v1432 = vsel %vm1376, %v1430, %v1431
        %v1433 = vrot.slane %v1334, 5
        %v1434 = vrot.slane %v1433, 4
        %v1435 = vrot.slane %v297, 5
        %v1436 = vsel %vm1376, %v1434, %v1435
        %v1437 = vrot.slane %v1435, 4
        %v1438 = vrot.slane %v336, 5
        %v1439 = vsel %vm1376, %v1437, %v1438
        %v1440 = vrot.slane %v1335, 5
        %v1441 = vrot.slane %v1440, 4
        %v1442 = vrot.slane %v299, 5
        %v1443 = vsel %vm1376, %v1441, %v1442
        %v1444 = vrot.slane %v1442, 4
        %v1445 = vrot.slane %v337, 5
        %v1446 = vsel %vm1376, %v1444, %v1445
        %v1447 = vrot.slane %v1336, 5
        %v1448 = vrot.slane %v1447, 4
        %v1449 = vrot.slane %v301, 5
        %v1450 = vsel %vm1376, %v1448, %v1449
        %v1451 = vrot.slane %v1449, 4
        %v1452 = vrot.slane %v338, 5
        %v1453 = vsel %vm1376, %v1451, %v1452
        %v1454 = vrot.slane %v1337, 5
        %v1455 = vrot.slane %v1454, 4
        %v1456 = vrot.slane %v303, 5
        %v1457 = vsel %vm1376, %v1455, %v1456
        %v1458 = vrot.slane %v1456, 4
        %v1459 = vrot.slane %v339, 5
        %v1460 = vsel %vm1376, %v1458, %v1459
        %v1461 = vrot.slane %v1338, 5
        %v1462 = vrot.slane %v1461, 4
        %v1463 = vrot.slane %v305, 5
        %v1464 = vsel %vm1376, %v1462, %v1463
        %v1465 = vrot.slane %v1463, 4
        %v1466 = vrot.slane %v340, 5
        %v1467 = vsel %vm1376, %v1465, %v1466
        %v1468 = vrot.slane %v1339, 5
        %v1469 = vrot.slane %v1468, 4
        %v1470 = vrot.slane %v307, 5
        %v1471 = vsel %vm1376, %v1469, %v1470
        %v1472 = vrot.slane %v1470, 4
        %v1473 = vrot.slane %v341, 5
        %v1474 = vsel %vm1376, %v1472, %v1473
        %v1475 = vrot.slane %v1340, 5
        %v1476 = vrot.slane %v1475, 4
        %v1477 = vrot.slane %v309, 5
        %v1478 = vsel %vm1376, %v1476, %v1477
        %v1479 = vrot.slane %v1477, 4
        %v1480 = vrot.slane %v342, 5
        %v1481 = vsel %vm1376, %v1479, %v1480
        %v1482 = vrot.slane %v1341, 5
        %v1483 = vrot.slane %v1482, 4
        %v1484 = vrot.slane %v311, 5
        %v1485 = vsel %vm1376, %v1483, %v1484
        %v1486 = vrot.slane %v1484, 4
        %v1487 = vrot.slane %v343, 5
        %v1488 = vsel %vm1376, %v1486, %v1487
        %s1489 = scalar_lea.vmem %s271, 128
        %v1490 = vld [vmem:[%s1489] sm:$0xf]
        %v1491 = vld [vmem:[%s1489 + $0x4] sm:$0xf]
        %v1492 = vld [vmem:[%s1489 + $0x8] sm:$0xf]
        %v1493 = vld [vmem:[%s1489 + $0xc] sm:$0xf]
        %v1494 = vld [vmem:[%s1489 + $0x10] sm:$0xf]
        %v1495 = vld [vmem:[%s1489 + $0x14] sm:$0xf]
        %v1496 = vld [vmem:[%s1489 + $0x18] sm:$0xf]
        %v1497 = vld [vmem:[%s1489 + $0x1c] sm:$0xf]
        %v1498 = vld [vmem:[%s1489 + $0x20] sm:$0xf]
        %v1499 = vld [vmem:[%s1489 + $0x24] sm:$0xf]
        %v1500 = vld [vmem:[%s1489 + $0x28] sm:$0xf]
        %v1501 = vld [vmem:[%s1489 + $0x2c] sm:$0xf]
        %v1502 = vld [vmem:[%s1489 + $0x30] sm:$0xf]
        %v1503 = vld [vmem:[%s1489 + $0x34] sm:$0xf]
        %v1504 = vld [vmem:[%s1489 + $0x38] sm:$0xf]
        %v1505 = vld [vmem:[%s1489 + $0x3c] sm:$0xf]
        %v1506 = vunpack.c.l.b16 %v1380
        %v1507 = vunpack.c.l.b16 %v1383
        %v1508 = vunpack.c.l.b16 %v1387
        %v1509 = vunpack.c.l.b16 %v1390
        %v1510 = vunpack.c.l.b16 %v1394
        %v1511 = vunpack.c.l.b16 %v1397
        %v1512 = vunpack.c.l.b16 %v1401
        %v1513 = vunpack.c.l.b16 %v1404
        %v1514 = vunpack.c.l.b16 %v1408
        %v1515 = vunpack.c.l.b16 %v1411
        %v1516 = vunpack.c.l.b16 %v1415
        %v1517 = vunpack.c.l.b16 %v1418
        %v1518 = vunpack.c.l.b16 %v1422
        %v1519 = vunpack.c.l.b16 %v1425
        %v1520 = vunpack.c.l.b16 %v1429
        %v1521 = vunpack.c.l.b16 %v1432
        %v1522 = vunpack.c.l.b16 %v1436
        %v1523 = vunpack.c.l.b16 %v1439
        %v1524 = vunpack.c.l.b16 %v1443
        %v1525 = vunpack.c.l.b16 %v1446
        %v1526 = vunpack.c.l.b16 %v1450
        %v1527 = vunpack.c.l.b16 %v1453
        %v1528 = vunpack.c.l.b16 %v1457
        %v1529 = vunpack.c.l.b16 %v1460
        %v1530 = vunpack.c.l.b16 %v1464
        %v1531 = vunpack.c.l.b16 %v1467
        %v1532 = vunpack.c.l.b16 %v1471
        %v1533 = vunpack.c.l.b16 %v1474
        %v1534 = vunpack.c.l.b16 %v1478
        %v1535 = vunpack.c.l.b16 %v1481
        %v1536 = vunpack.c.l.b16 %v1485
        %v1537 = vunpack.c.l.b16 %v1488
        %v1538 = vpack.c.b16 %v1507, %v1506
        %v1539 = vpack.c.b16 %v1509, %v1508
        %v1540 = vpack.c.b16 %v1511, %v1510
        %v1541 = vpack.c.b16 %v1513, %v1512
        %v1542 = vpack.c.b16 %v1515, %v1514
        %v1543 = vpack.c.b16 %v1517, %v1516
        %v1544 = vpack.c.b16 %v1519, %v1518
        %v1545 = vpack.c.b16 %v1521, %v1520
        %v1546 = vpack.c.b16 %v1523, %v1522
        %v1547 = vpack.c.b16 %v1525, %v1524
        %v1548 = vpack.c.b16 %v1527, %v1526
        %v1549 = vpack.c.b16 %v1529, %v1528
        %v1550 = vpack.c.b16 %v1531, %v1530
        %v1551 = vpack.c.b16 %v1533, %v1532
        %v1552 = vpack.c.b16 %v1535, %v1534
        %v1553 = vpack.c.b16 %v1537, %v1536
        %v1586 = vunpack.c.l.b16 %v1490
        %v1587 = vunpack.c.l.b16 %v1491
        %v1588 = vunpack.c.l.b16 %v1492
        %v1589 = vunpack.c.l.b16 %v1493
        %v1590 = vunpack.c.l.b16 %v1494
        %v1591 = vunpack.c.l.b16 %v1495
        %v1592 = vunpack.c.l.b16 %v1496
        %v1593 = vunpack.c.l.b16 %v1497
        %v1594 = vunpack.c.l.b16 %v1498
        %v1595 = vunpack.c.l.b16 %v1499
        %v1596 = vunpack.c.l.b16 %v1500
        %v1597 = vunpack.c.l.b16 %v1501
        %v1598 = vunpack.c.l.b16 %v1502
        %v1599 = vunpack.c.l.b16 %v1503
        %v1600 = vunpack.c.l.b16 %v1504
        %v1601 = vunpack.c.l.b16 %v1505
        %v1602 = vpack.c.b16 %v1587, %v1586
        %v1603 = vpack.c.b16 %v1589, %v1588
        %v1604 = vpack.c.b16 %v1591, %v1590
        %v1605 = vpack.c.b16 %v1593, %v1592
        %v1606 = vpack.c.b16 %v1595, %v1594
        %v1607 = vpack.c.b16 %v1597, %v1596
        %v1608 = vpack.c.b16 %v1599, %v1598
        %v1609 = vpack.c.b16 %v1601, %v1600
        %1618 = vmatprep.subr.bf16.mxu0 0
        %1619 = vmatpush1.bf16.msra.mxu0 %v1609
        %1620 = vmatprep.subr.bf16.mxu0 0
        %1621 = vmatpush1.bf16.msra.mxu0 %v1608
        %1622 = vmatprep.subr.bf16.mxu0 0
        %1623 = vmatpush1.bf16.msra.mxu0 %v1607
        %1624 = vmatprep.subr.bf16.mxu0 0
        %1625 = vmatpush1.bf16.msra.mxu0 %v1606
        %1626 = vmatprep.subr.bf16.mxu0 0
        %1627 = vmatpush1.bf16.msra.mxu0 %v1605
        %1628 = vmatprep.subr.bf16.mxu0 0
        %1629 = vmatpush1.bf16.msra.mxu0 %v1604
        %1630 = vmatprep.subr.bf16.mxu0 0
        %1631 = vmatpush1.bf16.msra.mxu0 %v1603
        %1632 = vmatprep.subr.bf16.mxu0 0
        %1633 = vmatpush1.bf16.msra.mxu0 %v1602
        %1634 = vmatprep.subr.bf16.mxu0 0
        %1635 = vmatpush2.bf16.msra.mxu0 0
        %1636 = vmatprep.subr.bf16.mxu0 0
        %1637 = vmatpush2.bf16.msra.mxu0 0
        %1638 = vmatprep.subr.bf16.mxu0 0
        %1639 = vmatpush2.bf16.msra.mxu0 0
        %1640 = vmatprep.subr.bf16.mxu0 0
        %1641 = vmatpush2.bf16.msra.mxu0 0
        %1642 = vmatprep.subr.bf16.mxu0 0
        %1643 = vmatpush2.bf16.msra.mxu0 0
        %1644 = vmatprep.subr.bf16.mxu0 0
        %1645 = vmatpush2.bf16.msra.mxu0 0
        %1646 = vmatprep.subr.bf16.mxu0 0
        %1647 = vmatpush2.bf16.msra.mxu0 0
        %1648 = vmatprep.subr.bf16.mxu0 0
        %1649 = vmatpush2.bf16.msra.mxu0 0
        %1650 = vmatprep.mubr.bf16.mxu0 0
        %1651 = vmatmul.mubr.bf16.gmra.mxu0 %v1538
        %v1652 = vpop.f32.mrf.mxu0
        %v1653 = vadd.f32 0.0, %v1652
        %v1654 = vpop.f32.mrf.mxu0
        %v1655 = vpop.f32.mrf.mxu0
        %v1656 = vadd.f32 0.0, %v1655
        %v1657 = vpop.f32.mrf.mxu0
        %1658 = vmatprep.mubr.bf16.mxu0 0
        %1659 = vmatmul.mubr.bf16.gmra.mxu0 %v1539
        %v1660 = vpop.f32.mrf.mxu0
        %v1661 = vadd.f32 0.0, %v1660
        %v1662 = vpop.f32.mrf.mxu0
        %v1663 = vpop.f32.mrf.mxu0
        %v1664 = vadd.f32 0.0, %v1663
        %v1665 = vpop.f32.mrf.mxu0
        %1666 = vmatprep.mubr.bf16.mxu0 0
        %1667 = vmatmul.mubr.bf16.gmra.mxu0 %v1540
        %v1668 = vpop.f32.mrf.mxu0
        %v1669 = vadd.f32 0.0, %v1668
        %v1670 = vpop.f32.mrf.mxu0
        %v1671 = vpop.f32.mrf.mxu0
        %v1672 = vadd.f32 0.0, %v1671
        %v1673 = vpop.f32.mrf.mxu0
        %1674 = vmatprep.mubr.bf16.mxu0 0
        %1675 = vmatmul.mubr.bf16.gmra.mxu0 %v1541
        %v1676 = vpop.f32.mrf.mxu0
        %v1677 = vadd.f32 0.0, %v1676
        %v1678 = vpop.f32.mrf.mxu0
        %v1679 = vpop.f32.mrf.mxu0
        %v1680 = vadd.f32 0.0, %v1679
        %v1681 = vpop.f32.mrf.mxu0
        %1682 = vmatprep.mubr.bf16.mxu0 0
        %1683 = vmatmul.mubr.bf16.gmra.mxu0 %v1542
        %v1684 = vpop.f32.mrf.mxu0
        %v1685 = vadd.f32 0.0, %v1684
        %v1686 = vpop.f32.mrf.mxu0
        %v1687 = vpop.f32.mrf.mxu0
        %v1688 = vadd.f32 0.0, %v1687
        %v1689 = vpop.f32.mrf.mxu0
        %1690 = vmatprep.mubr.bf16.mxu0 0
        %1691 = vmatmul.mubr.bf16.gmra.mxu0 %v1543
        %v1692 = vpop.f32.mrf.mxu0
        %v1693 = vadd.f32 0.0, %v1692
        %v1694 = vpop.f32.mrf.mxu0
        %v1695 = vpop.f32.mrf.mxu0
        %v1696 = vadd.f32 0.0, %v1695
        %v1697 = vpop.f32.mrf.mxu0
        %1698 = vmatprep.mubr.bf16.mxu0 0
        %1699 = vmatmul.mubr.bf16.gmra.mxu0 %v1544
        %v1700 = vpop.f32.mrf.mxu0
        %v1701 = vadd.f32 0.0, %v1700
        %v1702 = vpop.f32.mrf.mxu0
        %v1703 = vpop.f32.mrf.mxu0
        %v1704 = vadd.f32 0.0, %v1703
        %v1705 = vpop.f32.mrf.mxu0
        %1706 = vmatprep.mubr.bf16.mxu0 0
        %1707 = vmatmul.mubr.bf16.gmra.mxu0 %v1545
        %v1708 = vpop.f32.mrf.mxu0
        %v1709 = vadd.f32 0.0, %v1708
        %v1710 = vpop.f32.mrf.mxu0
        %v1711 = vpop.f32.mrf.mxu0
        %v1712 = vadd.f32 0.0, %v1711
        %v1713 = vpop.f32.mrf.mxu0
        %1714 = vmatprep.mubr.bf16.mxu0 0
        %1715 = vmatmul.mubr.bf16.gmra.mxu0 %v1546
        %v1716 = vpop.f32.mrf.mxu0
        %v1717 = vadd.f32 0.0, %v1716
        %v1718 = vpop.f32.mrf.mxu0
        %v1719 = vpop.f32.mrf.mxu0
        %v1720 = vadd.f32 0.0, %v1719
        %v1721 = vpop.f32.mrf.mxu0
        %1722 = vmatprep.mubr.bf16.mxu0 0
        %1723 = vmatmul.mubr.bf16.gmra.mxu0 %v1547
        %v1724 = vpop.f32.mrf.mxu0
        %v1725 = vadd.f32 0.0, %v1724
        %v1726 = vpop.f32.mrf.mxu0
        %v1727 = vpop.f32.mrf.mxu0
        %v1728 = vadd.f32 0.0, %v1727
        %v1729 = vpop.f32.mrf.mxu0
        %1730 = vmatprep.mubr.bf16.mxu0 0
        %1731 = vmatmul.mubr.bf16.gmra.mxu0 %v1548
        %v1732 = vpop.f32.mrf.mxu0
        %v1733 = vadd.f32 0.0, %v1732
        %v1734 = vpop.f32.mrf.mxu0
        %v1735 = vpop.f32.mrf.mxu0
        %v1736 = vadd.f32 0.0, %v1735
        %v1737 = vpop.f32.mrf.mxu0
        %1738 = vmatprep.mubr.bf16.mxu0 0
        %1739 = vmatmul.mubr.bf16.gmra.mxu0 %v1549
        %v1740 = vpop.f32.mrf.mxu0
        %v1741 = vadd.f32 0.0, %v1740
        %v1742 = vpop.f32.mrf.mxu0
        %v1743 = vpop.f32.mrf.mxu0
        %v1744 = vadd.f32 0.0, %v1743
        %v1745 = vpop.f32.mrf.mxu0
        %1746 = vmatprep.mubr.bf16.mxu0 0
        %1747 = vmatmul.mubr.bf16.gmra.mxu0 %v1550
        %v1748 = vpop.f32.mrf.mxu0
        %v1749 = vadd.f32 0.0, %v1748
        %v1750 = vpop.f32.mrf.mxu0
        %v1751 = vpop.f32.mrf.mxu0
        %v1752 = vadd.f32 0.0, %v1751
        %v1753 = vpop.f32.mrf.mxu0
        %1754 = vmatprep.mubr.bf16.mxu0 0
        %1755 = vmatmul.mubr.bf16.gmra.mxu0 %v1551
        %v1756 = vpop.f32.mrf.mxu0
        %v1757 = vadd.f32 0.0, %v1756
        %v1758 = vpop.f32.mrf.mxu0
        %v1759 = vpop.f32.mrf.mxu0
        %v1760 = vadd.f32 0.0, %v1759
        %v1761 = vpop.f32.mrf.mxu0
        %1762 = vmatprep.mubr.bf16.mxu0 0
        %1763 = vmatmul.mubr.bf16.gmra.mxu0 %v1552
        %v1764 = vpop.f32.mrf.mxu0
        %v1765 = vadd.f32 0.0, %v1764
        %v1766 = vpop.f32.mrf.mxu0
        %v1767 = vpop.f32.mrf.mxu0
        %v1768 = vadd.f32 0.0, %v1767
        %v1769 = vpop.f32.mrf.mxu0
        %1770 = vmatprep.mubr.bf16.mxu0 0
        %1771 = vmatmul.mubr.bf16.gmra.mxu0 %v1553
        %v1772 = vpop.f32.mrf.mxu0
        %v1773 = vadd.f32 0.0, %v1772
        %v1774 = vpop.f32.mrf.mxu0
        %v1775 = vpop.f32.mrf.mxu0
        %v1776 = vadd.f32 0.0, %v1775
        %v1777 = vpop.f32.mrf.mxu0
        %1778 = vdwg.mxu0
        %v1779 = vadd.f32 %v1200, %v1653
        %v1780 = vadd.f32 %v1203, %v1656
        %v1781 = vadd.f32 %v1208, %v1661
        %v1782 = vadd.f32 %v1211, %v1664
        %v1783 = vadd.f32 %v1216, %v1669
        %v1784 = vadd.f32 %v1219, %v1672
        %v1785 = vadd.f32 %v1224, %v1677
        %v1786 = vadd.f32 %v1227, %v1680
        %v1787 = vadd.f32 %v1232, %v1685
        %v1788 = vadd.f32 %v1235, %v1688
        %v1789 = vadd.f32 %v1240, %v1693
        %v1790 = vadd.f32 %v1243, %v1696
        %v1791 = vadd.f32 %v1248, %v1701
        %v1792 = vadd.f32 %v1251, %v1704
        %v1793 = vadd.f32 %v1256, %v1709
        %v1794 = vadd.f32 %v1259, %v1712
        %v1795 = vadd.f32 %v1264, %v1717
        %v1796 = vadd.f32 %v1267, %v1720
        %v1797 = vadd.f32 %v1272, %v1725
        %v1798 = vadd.f32 %v1275, %v1728
        %v1799 = vadd.f32 %v1280, %v1733
        %v1800 = vadd.f32 %v1283, %v1736
        %v1801 = vadd.f32 %v1288, %v1741
        %v1802 = vadd.f32 %v1291, %v1744
        %v1803 = vadd.f32 %v1296, %v1749
        %v1804 = vadd.f32 %v1299, %v1752
        %v1805 = vadd.f32 %v1304, %v1757
        %v1806 = vadd.f32 %v1307, %v1760
        %v1807 = vadd.f32 %v1312, %v1765
        %v1808 = vadd.f32 %v1315, %v1768
        %v1809 = vadd.f32 %v1320, %v1773
        %v1810 = vadd.f32 %v1323, %v1776
        %s1811 = scalar_lea.vmem %s267, 12
        %v1812 = vld [vmem:[%s1811] sm:$0xf]
        %v1813 = vld [vmem:[%s1811 + $0x4] sm:$0xf]
        %v1814 = vld [vmem:[%s1811 + $0xc] sm:$0xf]
        %v1815 = vld [vmem:[%s1811 + $0x10] sm:$0xf]
        %v1816 = vld [vmem:[%s1811 + $0x18] sm:$0xf]
        %v1817 = vld [vmem:[%s1811 + $0x1c] sm:$0xf]
        %v1818 = vld [vmem:[%s1811 + $0x24] sm:$0xf]
        %v1819 = vld [vmem:[%s1811 + $0x28] sm:$0xf]
        %v1820 = vld [vmem:[%s1811 + $0x30] sm:$0xf]
        %v1821 = vld [vmem:[%s1811 + $0x34] sm:$0xf]
        %v1822 = vld [vmem:[%s1811 + $0x3c] sm:$0xf]
        %v1823 = vld [vmem:[%s1811 + $0x40] sm:$0xf]
        %v1824 = vld [vmem:[%s1811 + $0x48] sm:$0xf]
        %v1825 = vld [vmem:[%s1811 + $0x4c] sm:$0xf]
        %v1826 = vld [vmem:[%s1811 + $0x54] sm:$0xf]
        %v1827 = vld [vmem:[%s1811 + $0x58] sm:$0xf]
        %v1828 = vld [vmem:[%s1811 + $0x60] sm:$0xf]
        %v1829 = vld [vmem:[%s1811 + $0x64] sm:$0xf]
        %v1830 = vld [vmem:[%s1811 + $0x6c] sm:$0xf]
        %v1831 = vld [vmem:[%s1811 + $0x70] sm:$0xf]
        %v1832 = vld [vmem:[%s1811 + $0x78] sm:$0xf]
        %v1833 = vld [vmem:[%s1811 + $0x7c] sm:$0xf]
        %v1834 = vld [vmem:[%s1811 + $0x84] sm:$0xf]
        %v1835 = vld [vmem:[%s1811 + $0x88] sm:$0xf]
        %v1836 = vld [vmem:[%s1811 + $0x90] sm:$0xf]
        %v1837 = vld [vmem:[%s1811 + $0x94] sm:$0xf]
        %v1838 = vld [vmem:[%s1811 + $0x9c] sm:$0xf]
        %v1839 = vld [vmem:[%s1811 + $0xa0] sm:$0xf]
        %v1840 = vld [vmem:[%s1811 + $0xa8] sm:$0xf]
        %v1841 = vld [vmem:[%s1811 + $0xac] sm:$0xf]
        %v1842 = vld [vmem:[%s1811 + $0xb4] sm:$0xf]
        %v1843 = vld [vmem:[%s1811 + $0xb8] sm:$0xf]
        %s1844 = scalar_lea.vmem %s271, 192
        %v1845 = vld [vmem:[%s1844] sm:$0xf]
        %v1846 = vld [vmem:[%s1844 + $0x4] sm:$0xf]
        %v1847 = vld [vmem:[%s1844 + $0x8] sm:$0xf]
        %v1848 = vld [vmem:[%s1844 + $0xc] sm:$0xf]
        %v1849 = vld [vmem:[%s1844 + $0x10] sm:$0xf]
        %v1850 = vld [vmem:[%s1844 + $0x14] sm:$0xf]
        %v1851 = vld [vmem:[%s1844 + $0x18] sm:$0xf]
        %v1852 = vld [vmem:[%s1844 + $0x1c] sm:$0xf]
        %v1853 = vld [vmem:[%s1844 + $0x20] sm:$0xf]
        %v1854 = vld [vmem:[%s1844 + $0x24] sm:$0xf]
        %v1855 = vld [vmem:[%s1844 + $0x28] sm:$0xf]
        %v1856 = vld [vmem:[%s1844 + $0x2c] sm:$0xf]
        %v1857 = vld [vmem:[%s1844 + $0x30] sm:$0xf]
        %v1858 = vld [vmem:[%s1844 + $0x34] sm:$0xf]
        %v1859 = vld [vmem:[%s1844 + $0x38] sm:$0xf]
        %v1860 = vld [vmem:[%s1844 + $0x3c] sm:$0xf]
        %v1893 = vunpack.c.l.b16 %v1812
        %v1894 = vunpack.c.l.b16 %v1813
        %v1895 = vunpack.c.l.b16 %v1814
        %v1896 = vunpack.c.l.b16 %v1815
        %v1897 = vunpack.c.l.b16 %v1816
        %v1898 = vunpack.c.l.b16 %v1817
        %v1899 = vunpack.c.l.b16 %v1818
        %v1900 = vunpack.c.l.b16 %v1819
        %v1901 = vunpack.c.l.b16 %v1820
        %v1902 = vunpack.c.l.b16 %v1821
        %v1903 = vunpack.c.l.b16 %v1822
        %v1904 = vunpack.c.l.b16 %v1823
        %v1905 = vunpack.c.l.b16 %v1824
        %v1906 = vunpack.c.l.b16 %v1825
        %v1907 = vunpack.c.l.b16 %v1826
        %v1908 = vunpack.c.l.b16 %v1827
        %v1909 = vunpack.c.l.b16 %v1828
        %v1910 = vunpack.c.l.b16 %v1829
        %v1911 = vunpack.c.l.b16 %v1830
        %v1912 = vunpack.c.l.b16 %v1831
        %v1913 = vunpack.c.l.b16 %v1832
        %v1914 = vunpack.c.l.b16 %v1833
        %v1915 = vunpack.c.l.b16 %v1834
        %v1916 = vunpack.c.l.b16 %v1835
        %v1917 = vunpack.c.l.b16 %v1836
        %v1918 = vunpack.c.l.b16 %v1837
        %v1919 = vunpack.c.l.b16 %v1838
        %v1920 = vunpack.c.l.b16 %v1839
        %v1921 = vunpack.c.l.b16 %v1840
        %v1922 = vunpack.c.l.b16 %v1841
        %v1923 = vunpack.c.l.b16 %v1842
        %v1924 = vunpack.c.l.b16 %v1843
        %v1925 = vpack.c.b16 %v1894, %v1893
        %v1926 = vpack.c.b16 %v1896, %v1895
        %v1927 = vpack.c.b16 %v1898, %v1897
        %v1928 = vpack.c.b16 %v1900, %v1899
        %v1929 = vpack.c.b16 %v1902, %v1901
        %v1930 = vpack.c.b16 %v1904, %v1903
        %v1931 = vpack.c.b16 %v1906, %v1905
        %v1932 = vpack.c.b16 %v1908, %v1907
        %v1933 = vpack.c.b16 %v1910, %v1909
        %v1934 = vpack.c.b16 %v1912, %v1911
        %v1935 = vpack.c.b16 %v1914, %v1913
        %v1936 = vpack.c.b16 %v1916, %v1915
        %v1937 = vpack.c.b16 %v1918, %v1917
        %v1938 = vpack.c.b16 %v1920, %v1919
        %v1939 = vpack.c.b16 %v1922, %v1921
        %v1940 = vpack.c.b16 %v1924, %v1923
        %v1973 = vunpack.c.l.b16 %v1845
        %v1974 = vunpack.c.l.b16 %v1846
        %v1975 = vunpack.c.l.b16 %v1847
        %v1976 = vunpack.c.l.b16 %v1848
        %v1977 = vunpack.c.l.b16 %v1849
        %v1978 = vunpack.c.l.b16 %v1850
        %v1979 = vunpack.c.l.b16 %v1851
        %v1980 = vunpack.c.l.b16 %v1852
        %v1981 = vunpack.c.l.b16 %v1853
        %v1982 = vunpack.c.l.b16 %v1854
        %v1983 = vunpack.c.l.b16 %v1855
        %v1984 = vunpack.c.l.b16 %v1856
        %v1985 = vunpack.c.l.b16 %v1857
        %v1986 = vunpack.c.l.b16 %v1858
        %v1987 = vunpack.c.l.b16 %v1859
        %v1988 = vunpack.c.l.b16 %v1860
        %v1989 = vpack.c.b16 %v1974, %v1973
        %v1990 = vpack.c.b16 %v1976, %v1975
        %v1991 = vpack.c.b16 %v1978, %v1977
        %v1992 = vpack.c.b16 %v1980, %v1979
        %v1993 = vpack.c.b16 %v1982, %v1981
        %v1994 = vpack.c.b16 %v1984, %v1983
        %v1995 = vpack.c.b16 %v1986, %v1985
        %v1996 = vpack.c.b16 %v1988, %v1987
        %2005 = vmatprep.subr.bf16.mxu0 0
        %2006 = vmatpush1.bf16.msra.mxu0 %v1996
        %2007 = vmatprep.subr.bf16.mxu0 0
        %2008 = vmatpush1.bf16.msra.mxu0 %v1995
        %2009 = vmatprep.subr.bf16.mxu0 0
        %2010 = vmatpush1.bf16.msra.mxu0 %v1994
        %2011 = vmatprep.subr.bf16.mxu0 0
        %2012 = vmatpush1.bf16.msra.mxu0 %v1993
        %2013 = vmatprep.subr.bf16.mxu0 0
        %2014 = vmatpush1.bf16.msra.mxu0 %v1992
        %2015 = vmatprep.subr.bf16.mxu0 0
        %2016 = vmatpush1.bf16.msra.mxu0 %v1991
        %2017 = vmatprep.subr.bf16.mxu0 0
        %2018 = vmatpush1.bf16.msra.mxu0 %v1990
        %2019 = vmatprep.subr.bf16.mxu0 0
        %2020 = vmatpush1.bf16.msra.mxu0 %v1989
        %2021 = vmatprep.subr.bf16.mxu0 0
        %2022 = vmatpush2.bf16.msra.mxu0 0
        %2023 = vmatprep.subr.bf16.mxu0 0
        %2024 = vmatpush2.bf16.msra.mxu0 0
        %2025 = vmatprep.subr.bf16.mxu0 0
        %2026 = vmatpush2.bf16.msra.mxu0 0
        %2027 = vmatprep.subr.bf16.mxu0 0
        %2028 = vmatpush2.bf16.msra.mxu0 0
        %2029 = vmatprep.subr.bf16.mxu0 0
        %2030 = vmatpush2.bf16.msra.mxu0 0
        %2031 = vmatprep.subr.bf16.mxu0 0
        %2032 = vmatpush2.bf16.msra.mxu0 0
        %2033 = vmatprep.subr.bf16.mxu0 0
        %2034 = vmatpush2.bf16.msra.mxu0 0
        %2035 = vmatprep.subr.bf16.mxu0 0
        %2036 = vmatpush2.bf16.msra.mxu0 0
        %2037 = vmatprep.mubr.bf16.mxu0 0
        %2038 = vmatmul.mubr.bf16.gmra.mxu0 %v1925
        %v2039 = vpop.f32.mrf.mxu0
        %v2040 = vadd.f32 0.0, %v2039
        %v2041 = vpop.f32.mrf.mxu0
        %v2042 = vpop.f32.mrf.mxu0
        %v2043 = vadd.f32 0.0, %v2042
        %v2044 = vpop.f32.mrf.mxu0
        %2045 = vmatprep.mubr.bf16.mxu0 0
        %2046 = vmatmul.mubr.bf16.gmra.mxu0 %v1926
        %v2047 = vpop.f32.mrf.mxu0
        %v2048 = vadd.f32 0.0, %v2047
        %v2049 = vpop.f32.mrf.mxu0
        %v2050 = vpop.f32.mrf.mxu0
        %v2051 = vadd.f32 0.0, %v2050
        %v2052 = vpop.f32.mrf.mxu0
        %2053 = vmatprep.mubr.bf16.mxu0 0
        %2054 = vmatmul.mubr.bf16.gmra.mxu0 %v1927
        %v2055 = vpop.f32.mrf.mxu0
        %v2056 = vadd.f32 0.0, %v2055
        %v2057 = vpop.f32.mrf.mxu0
        %v2058 = vpop.f32.mrf.mxu0
        %v2059 = vadd.f32 0.0, %v2058
        %v2060 = vpop.f32.mrf.mxu0
        %2061 = vmatprep.mubr.bf16.mxu0 0
        %2062 = vmatmul.mubr.bf16.gmra.mxu0 %v1928
        %v2063 = vpop.f32.mrf.mxu0
        %v2064 = vadd.f32 0.0, %v2063
        %v2065 = vpop.f32.mrf.mxu0
        %v2066 = vpop.f32.mrf.mxu0
        %v2067 = vadd.f32 0.0, %v2066
        %v2068 = vpop.f32.mrf.mxu0
        %2069 = vmatprep.mubr.bf16.mxu0 0
        %2070 = vmatmul.mubr.bf16.gmra.mxu0 %v1929
        %v2071 = vpop.f32.mrf.mxu0
        %v2072 = vadd.f32 0.0, %v2071
        %v2073 = vpop.f32.mrf.mxu0
        %v2074 = vpop.f32.mrf.mxu0
        %v2075 = vadd.f32 0.0, %v2074
        %v2076 = vpop.f32.mrf.mxu0
        %2077 = vmatprep.mubr.bf16.mxu0 0
        %2078 = vmatmul.mubr.bf16.gmra.mxu0 %v1930
        %v2079 = vpop.f32.mrf.mxu0
        %v2080 = vadd.f32 0.0, %v2079
        %v2081 = vpop.f32.mrf.mxu0
        %v2082 = vpop.f32.mrf.mxu0
        %v2083 = vadd.f32 0.0, %v2082
        %v2084 = vpop.f32.mrf.mxu0
        %2085 = vmatprep.mubr.bf16.mxu0 0
        %2086 = vmatmul.mubr.bf16.gmra.mxu0 %v1931
        %v2087 = vpop.f32.mrf.mxu0
        %v2088 = vadd.f32 0.0, %v2087
        %v2089 = vpop.f32.mrf.mxu0
        %v2090 = vpop.f32.mrf.mxu0
        %v2091 = vadd.f32 0.0, %v2090
        %v2092 = vpop.f32.mrf.mxu0
        %2093 = vmatprep.mubr.bf16.mxu0 0
        %2094 = vmatmul.mubr.bf16.gmra.mxu0 %v1932
        %v2095 = vpop.f32.mrf.mxu0
        %v2096 = vadd.f32 0.0, %v2095
        %v2097 = vpop.f32.mrf.mxu0
        %v2098 = vpop.f32.mrf.mxu0
        %v2099 = vadd.f32 0.0, %v2098
        %v2100 = vpop.f32.mrf.mxu0
        %2101 = vmatprep.mubr.bf16.mxu0 0
        %2102 = vmatmul.mubr.bf16.gmra.mxu0 %v1933
        %v2103 = vpop.f32.mrf.mxu0
        %v2104 = vadd.f32 0.0, %v2103
        %v2105 = vpop.f32.mrf.mxu0
        %v2106 = vpop.f32.mrf.mxu0
        %v2107 = vadd.f32 0.0, %v2106
        %v2108 = vpop.f32.mrf.mxu0
        %2109 = vmatprep.mubr.bf16.mxu0 0
        %2110 = vmatmul.mubr.bf16.gmra.mxu0 %v1934
        %v2111 = vpop.f32.mrf.mxu0
        %v2112 = vadd.f32 0.0, %v2111
        %v2113 = vpop.f32.mrf.mxu0
        %v2114 = vpop.f32.mrf.mxu0
        %v2115 = vadd.f32 0.0, %v2114
        %v2116 = vpop.f32.mrf.mxu0
        %2117 = vmatprep.mubr.bf16.mxu0 0
        %2118 = vmatmul.mubr.bf16.gmra.mxu0 %v1935
        %v2119 = vpop.f32.mrf.mxu0
        %v2120 = vadd.f32 0.0, %v2119
        %v2121 = vpop.f32.mrf.mxu0
        %v2122 = vpop.f32.mrf.mxu0
        %v2123 = vadd.f32 0.0, %v2122
        %v2124 = vpop.f32.mrf.mxu0
        %2125 = vmatprep.mubr.bf16.mxu0 0
        %2126 = vmatmul.mubr.bf16.gmra.mxu0 %v1936
        %v2127 = vpop.f32.mrf.mxu0
        %v2128 = vadd.f32 0.0, %v2127
        %v2129 = vpop.f32.mrf.mxu0
        %v2130 = vpop.f32.mrf.mxu0
        %v2131 = vadd.f32 0.0, %v2130
        %v2132 = vpop.f32.mrf.mxu0
        %2133 = vmatprep.mubr.bf16.mxu0 0
        %2134 = vmatmul.mubr.bf16.gmra.mxu0 %v1937
        %v2135 = vpop.f32.mrf.mxu0
        %v2136 = vadd.f32 0.0, %v2135
        %v2137 = vpop.f32.mrf.mxu0
        %v2138 = vpop.f32.mrf.mxu0
        %v2139 = vadd.f32 0.0, %v2138
        %v2140 = vpop.f32.mrf.mxu0
        %2141 = vmatprep.mubr.bf16.mxu0 0
        %2142 = vmatmul.mubr.bf16.gmra.mxu0 %v1938
        %v2143 = vpop.f32.mrf.mxu0
        %v2144 = vadd.f32 0.0, %v2143
        %v2145 = vpop.f32.mrf.mxu0
        %v2146 = vpop.f32.mrf.mxu0
        %v2147 = vadd.f32 0.0, %v2146
        %v2148 = vpop.f32.mrf.mxu0
        %2149 = vmatprep.mubr.bf16.mxu0 0
        %2150 = vmatmul.mubr.bf16.gmra.mxu0 %v1939
        %v2151 = vpop.f32.mrf.mxu0
        %v2152 = vadd.f32 0.0, %v2151
        %v2153 = vpop.f32.mrf.mxu0
        %v2154 = vpop.f32.mrf.mxu0
        %v2155 = vadd.f32 0.0, %v2154
        %v2156 = vpop.f32.mrf.mxu0
        %2157 = vmatprep.mubr.bf16.mxu0 0
        %2158 = vmatmul.mubr.bf16.gmra.mxu0 %v1940
        %v2159 = vpop.f32.mrf.mxu0
        %v2160 = vadd.f32 0.0, %v2159
        %v2161 = vpop.f32.mrf.mxu0
        %v2162 = vpop.f32.mrf.mxu0
        %v2163 = vadd.f32 0.0, %v2162
        %v2164 = vpop.f32.mrf.mxu0
        %2165 = vdwg.mxu0
        %v2166 = vadd.f32 %v1779, %v2040
        %v2167 = vadd.f32 %v1780, %v2043
        %v2168 = vadd.f32 %v1781, %v2048
        %v2169 = vadd.f32 %v1782, %v2051
        %v2170 = vadd.f32 %v1783, %v2056
        %v2171 = vadd.f32 %v1784, %v2059
        %v2172 = vadd.f32 %v1785, %v2064
        %v2173 = vadd.f32 %v1786, %v2067
        %v2174 = vadd.f32 %v1787, %v2072
        %v2175 = vadd.f32 %v1788, %v2075
        %v2176 = vadd.f32 %v1789, %v2080
        %v2177 = vadd.f32 %v1790, %v2083
        %v2178 = vadd.f32 %v1791, %v2088
        %v2179 = vadd.f32 %v1792, %v2091
        %v2180 = vadd.f32 %v1793, %v2096
        %v2181 = vadd.f32 %v1794, %v2099
        %v2182 = vadd.f32 %v1795, %v2104
        %v2183 = vadd.f32 %v1796, %v2107
        %v2184 = vadd.f32 %v1797, %v2112
        %v2185 = vadd.f32 %v1798, %v2115
        %v2186 = vadd.f32 %v1799, %v2120
        %v2187 = vadd.f32 %v1800, %v2123
        %v2188 = vadd.f32 %v1801, %v2128
        %v2189 = vadd.f32 %v1802, %v2131
        %v2190 = vadd.f32 %v1803, %v2136
        %v2191 = vadd.f32 %v1804, %v2139
        %v2192 = vadd.f32 %v1805, %v2144
        %v2193 = vadd.f32 %v1806, %v2147
        %v2194 = vadd.f32 %v1807, %v2152
        %v2195 = vadd.f32 %v1808, %v2155
        %v2196 = vadd.f32 %v1809, %v2160
        %v2197 = vadd.f32 %v1810, %v2163
        %v2198 = vld [vmem:[%s1811] sm:$0xf]
        %v2199 = vld [vmem:[%s1811 + $0x4] sm:$0xf]
        %v2200 = vld [vmem:[%s1811 + $0x8] sm:$0x1]
        %v2201 = vld [vmem:[%s1811 + $0xc] sm:$0xf]
        %v2202 = vld [vmem:[%s1811 + $0x10] sm:$0xf]
        %v2203 = vld [vmem:[%s1811 + $0x14] sm:$0x1]
        %v2204 = vld [vmem:[%s1811 + $0x18] sm:$0xf]
        %v2205 = vld [vmem:[%s1811 + $0x1c] sm:$0xf]
        %v2206 = vld [vmem:[%s1811 + $0x20] sm:$0x1]
        %v2207 = vld [vmem:[%s1811 + $0x24] sm:$0xf]
        %v2208 = vld [vmem:[%s1811 + $0x28] sm:$0xf]
        %v2209 = vld [vmem:[%s1811 + $0x2c] sm:$0x1]
        %v2210 = vld [vmem:[%s1811 + $0x30] sm:$0xf]
        %v2211 = vld [vmem:[%s1811 + $0x34] sm:$0xf]
        %v2212 = vld [vmem:[%s1811 + $0x38] sm:$0x1]
        %v2213 = vld [vmem:[%s1811 + $0x3c] sm:$0xf]
        %v2214 = vld [vmem:[%s1811 + $0x40] sm:$0xf]
        %v2215 = vld [vmem:[%s1811 + $0x44] sm:$0x1]
        %v2216 = vld [vmem:[%s1811 + $0x48] sm:$0xf]
        %v2217 = vld [vmem:[%s1811 + $0x4c] sm:$0xf]
        %v2218 = vld [vmem:[%s1811 + $0x50] sm:$0x1]
        %v2219 = vld [vmem:[%s1811 + $0x54] sm:$0xf]
        %v2220 = vld [vmem:[%s1811 + $0x58] sm:$0xf]
        %v2221 = vld [vmem:[%s1811 + $0x5c] sm:$0x1]
        %v2222 = vld [vmem:[%s1811 + $0x60] sm:$0xf]
        %v2223 = vld [vmem:[%s1811 + $0x64] sm:$0xf]
        %v2224 = vld [vmem:[%s1811 + $0x68] sm:$0x1]
        %v2225 = vld [vmem:[%s1811 + $0x6c] sm:$0xf]
        %v2226 = vld [vmem:[%s1811 + $0x70] sm:$0xf]
        %v2227 = vld [vmem:[%s1811 + $0x74] sm:$0x1]
        %v2228 = vld [vmem:[%s1811 + $0x78] sm:$0xf]
        %v2229 = vld [vmem:[%s1811 + $0x7c] sm:$0xf]
        %v2230 = vld [vmem:[%s1811 + $0x80] sm:$0x1]
        %v2231 = vld [vmem:[%s1811 + $0x84] sm:$0xf]
        %v2232 = vld [vmem:[%s1811 + $0x88] sm:$0xf]
        %v2233 = vld [vmem:[%s1811 + $0x8c] sm:$0x1]
        %v2234 = vld [vmem:[%s1811 + $0x90] sm:$0xf]
        %v2235 = vld [vmem:[%s1811 + $0x94] sm:$0xf]
        %v2236 = vld [vmem:[%s1811 + $0x98] sm:$0x1]
        %v2237 = vld [vmem:[%s1811 + $0x9c] sm:$0xf]
        %v2238 = vld [vmem:[%s1811 + $0xa0] sm:$0xf]
        %v2239 = vld [vmem:[%s1811 + $0xa4] sm:$0x1]
        %v2240 = vld [vmem:[%s1811 + $0xa8] sm:$0xf]
        %v2241 = vld [vmem:[%s1811 + $0xac] sm:$0xf]
        %v2242 = vld [vmem:[%s1811 + $0xb0] sm:$0x1]
        %v2243 = vld [vmem:[%s1811 + $0xb4] sm:$0xf]
        %v2244 = vld [vmem:[%s1811 + $0xb8] sm:$0xf]
        %v2245 = vld [vmem:[%s1811 + $0xbc] sm:$0x1]
        %v2247 = vshrl.u32 %v2198, 16
        %v2249 = vrot.slane %v2247, 4
        %v2250 = vshll.u32 %v2198, 16
        %v2252 = vrot.slane %v2250, 5
        %v2253 = vor.u32 %v2249, %v2252
        %v2254 = vrot.slane %v2253, 4
        %v2256 = vshll.u32 %v2199, 16
        %v2258 = vrot.slane %v2256, 5
        %v2259 = vsel %vm346, %v2254, %v2258
        %v2260 = vshrl.u32 %v2199, 16
        %v2262 = vrot.slane %v2260, 4
        %v2263 = vor.u32 %v2262, %v2258
        %v2264 = vrot.slane %v2263, 4
        %v2266 = vshll.u32 %v2200, 16
        %v2268 = vrot.slane %v2266, 5
        %v2269 = vsel %vm346, %v2264, %v2268
        %v2271 = vshrl.u32 %v2201, 16
        %v2273 = vrot.slane %v2271, 4
        %v2274 = vshll.u32 %v2201, 16
        %v2276 = vrot.slane %v2274, 5
        %v2277 = vor.u32 %v2273, %v2276
        %v2278 = vrot.slane %v2277, 4
        %v2280 = vshll.u32 %v2202, 16
        %v2282 = vrot.slane %v2280, 5
        %v2283 = vsel %vm346, %v2278, %v2282
        %v2284 = vshrl.u32 %v2202, 16
        %v2286 = vrot.slane %v2284, 4
        %v2287 = vor.u32 %v2286, %v2282
        %v2288 = vrot.slane %v2287, 4
        %v2290 = vshll.u32 %v2203, 16
        %v2292 = vrot.slane %v2290, 5
        %v2293 = vsel %vm346, %v2288, %v2292
        %v2295 = vshrl.u32 %v2204, 16
        %v2297 = vrot.slane %v2295, 4
        %v2298 = vshll.u32 %v2204, 16
        %v2300 = vrot.slane %v2298, 5
        %v2301 = vor.u32 %v2297, %v2300
        %v2302 = vrot.slane %v2301, 4
        %v2304 = vshll.u32 %v2205, 16
        %v2306 = vrot.slane %v2304, 5
        %v2307 = vsel %vm346, %v2302, %v2306
        %v2308 = vshrl.u32 %v2205, 16
        %v2310 = vrot.slane %v2308, 4
        %v2311 = vor.u32 %v2310, %v2306
        %v2312 = vrot.slane %v2311, 4
        %v2314 = vshll.u32 %v2206, 16
        %v2316 = vrot.slane %v2314, 5
        %v2317 = vsel %vm346, %v2312, %v2316
        %v2319 = vshrl.u32 %v2207, 16
        %v2321 = vrot.slane %v2319, 4
        %v2322 = vshll.u32 %v2207, 16
        %v2324 = vrot.slane %v2322, 5
        %v2325 = vor.u32 %v2321, %v2324
        %v2326 = vrot.slane %v2325, 4
        %v2328 = vshll.u32 %v2208, 16
        %v2330 = vrot.slane %v2328, 5
        %v2331 = vsel %vm346, %v2326, %v2330
        %v2332 = vshrl.u32 %v2208, 16
        %v2334 = vrot.slane %v2332, 4
        %v2335 = vor.u32 %v2334, %v2330
        %v2336 = vrot.slane %v2335, 4
        %v2338 = vshll.u32 %v2209, 16
        %v2340 = vrot.slane %v2338, 5
        %v2341 = vsel %vm346, %v2336, %v2340
        %v2343 = vshrl.u32 %v2210, 16
        %v2345 = vrot.slane %v2343, 4
        %v2346 = vshll.u32 %v2210, 16
        %v2348 = vrot.slane %v2346, 5
        %v2349 = vor.u32 %v2345, %v2348
        %v2350 = vrot.slane %v2349, 4
        %v2352 = vshll.u32 %v2211, 16
        %v2354 = vrot.slane %v2352, 5
        %v2355 = vsel %vm346, %v2350, %v2354
        %v2356 = vshrl.u32 %v2211, 16
        %v2358 = vrot.slane %v2356, 4
        %v2359 = vor.u32 %v2358, %v2354
        %v2360 = vrot.slane %v2359, 4
        %v2362 = vshll.u32 %v2212, 16
        %v2364 = vrot.slane %v2362, 5
        %v2365 = vsel %vm346, %v2360, %v2364
        %v2367 = vshrl.u32 %v2213, 16
        %v2369 = vrot.slane %v2367, 4
        %v2370 = vshll.u32 %v2213, 16
        %v2372 = vrot.slane %v2370, 5
        %v2373 = vor.u32 %v2369, %v2372
        %v2374 = vrot.slane %v2373, 4
        %v2376 = vshll.u32 %v2214, 16
        %v2378 = vrot.slane %v2376, 5
        %v2379 = vsel %vm346, %v2374, %v2378
        %v2380 = vshrl.u32 %v2214, 16
        %v2382 = vrot.slane %v2380, 4
        %v2383 = vor.u32 %v2382, %v2378
        %v2384 = vrot.slane %v2383, 4
        %v2386 = vshll.u32 %v2215, 16
        %v2388 = vrot.slane %v2386, 5
        %v2389 = vsel %vm346, %v2384, %v2388
        %v2391 = vshrl.u32 %v2216, 16
        %v2393 = vrot.slane %v2391, 4
        %v2394 = vshll.u32 %v2216, 16
        %v2396 = vrot.slane %v2394, 5
        %v2397 = vor.u32 %v2393, %v2396
        %v2398 = vrot.slane %v2397, 4
        %v2400 = vshll.u32 %v2217, 16
        %v2402 = vrot.slane %v2400, 5
        %v2403 = vsel %vm346, %v2398, %v2402
        %v2404 = vshrl.u32 %v2217, 16
        %v2406 = vrot.slane %v2404, 4
        %v2407 = vor.u32 %v2406, %v2402
        %v2408 = vrot.slane %v2407, 4
        %v2410 = vshll.u32 %v2218, 16
        %v2412 = vrot.slane %v2410, 5
        %v2413 = vsel %vm346, %v2408, %v2412
        %v2415 = vshrl.u32 %v2219, 16
        %v2417 = vrot.slane %v2415, 4
        %v2418 = vshll.u32 %v2219, 16
        %v2420 = vrot.slane %v2418, 5
        %v2421 = vor.u32 %v2417, %v2420
        %v2422 = vrot.slane %v2421, 4
        %v2424 = vshll.u32 %v2220, 16
        %v2426 = vrot.slane %v2424, 5
        %v2427 = vsel %vm346, %v2422, %v2426
        %v2428 = vshrl.u32 %v2220, 16
        %v2430 = vrot.slane %v2428, 4
        %v2431 = vor.u32 %v2430, %v2426
        %v2432 = vrot.slane %v2431, 4
        %v2434 = vshll.u32 %v2221, 16
        %v2436 = vrot.slane %v2434, 5
        %v2437 = vsel %vm346, %v2432, %v2436
        %v2439 = vshrl.u32 %v2222, 16
        %v2441 = vrot.slane %v2439, 4
        %v2442 = vshll.u32 %v2222, 16
        %v2444 = vrot.slane %v2442, 5
        %v2445 = vor.u32 %v2441, %v2444
        %v2446 = vrot.slane %v2445, 4
        %v2448 = vshll.u32 %v2223, 16
        %v2450 = vrot.slane %v2448, 5
        %v2451 = vsel %vm346, %v2446, %v2450
        %v2452 = vshrl.u32 %v2223, 16
        %v2454 = vrot.slane %v2452, 4
        %v2455 = vor.u32 %v2454, %v2450
        %v2456 = vrot.slane %v2455, 4
        %v2458 = vshll.u32 %v2224, 16
        %v2460 = vrot.slane %v2458, 5
        %v2461 = vsel %vm346, %v2456, %v2460
        %v2463 = vshrl.u32 %v2225, 16
        %v2465 = vrot.slane %v2463, 4
        %v2466 = vshll.u32 %v2225, 16
        %v2468 = vrot.slane %v2466, 5
        %v2469 = vor.u32 %v2465, %v2468
        %v2470 = vrot.slane %v2469, 4
        %v2472 = vshll.u32 %v2226, 16
        %v2474 = vrot.slane %v2472, 5
        %v2475 = vsel %vm346, %v2470, %v2474
        %v2476 = vshrl.u32 %v2226, 16
        %v2478 = vrot.slane %v2476, 4
        %v2479 = vor.u32 %v2478, %v2474
        %v2480 = vrot.slane %v2479, 4
        %v2482 = vshll.u32 %v2227, 16
        %v2484 = vrot.slane %v2482, 5
        %v2485 = vsel %vm346, %v2480, %v2484
        %v2487 = vshrl.u32 %v2228, 16
        %v2489 = vrot.slane %v2487, 4
        %v2490 = vshll.u32 %v2228, 16
        %v2492 = vrot.slane %v2490, 5
        %v2493 = vor.u32 %v2489, %v2492
        %v2494 = vrot.slane %v2493, 4
        %v2496 = vshll.u32 %v2229, 16
        %v2498 = vrot.slane %v2496, 5
        %v2499 = vsel %vm346, %v2494, %v2498
        %v2500 = vshrl.u32 %v2229, 16
        %v2502 = vrot.slane %v2500, 4
        %v2503 = vor.u32 %v2502, %v2498
        %v2504 = vrot.slane %v2503, 4
        %v2506 = vshll.u32 %v2230, 16
        %v2508 = vrot.slane %v2506, 5
        %v2509 = vsel %vm346, %v2504, %v2508
        %v2511 = vshrl.u32 %v2231, 16
        %v2513 = vrot.slane %v2511, 4
        %v2514 = vshll.u32 %v2231, 16
        %v2516 = vrot.slane %v2514, 5
        %v2517 = vor.u32 %v2513, %v2516
        %v2518 = vrot.slane %v2517, 4
        %v2520 = vshll.u32 %v2232, 16
        %v2522 = vrot.slane %v2520, 5
        %v2523 = vsel %vm346, %v2518, %v2522
        %v2524 = vshrl.u32 %v2232, 16
        %v2526 = vrot.slane %v2524, 4
        %v2527 = vor.u32 %v2526, %v2522
        %v2528 = vrot.slane %v2527, 4
        %v2530 = vshll.u32 %v2233, 16
        %v2532 = vrot.slane %v2530, 5
        %v2533 = vsel %vm346, %v2528, %v2532
        %v2535 = vshrl.u32 %v2234, 16
        %v2537 = vrot.slane %v2535, 4
        %v2538 = vshll.u32 %v2234, 16
        %v2540 = vrot.slane %v2538, 5
        %v2541 = vor.u32 %v2537, %v2540
        %v2542 = vrot.slane %v2541, 4
        %v2544 = vshll.u32 %v2235, 16
        %v2546 = vrot.slane %v2544, 5
        %v2547 = vsel %vm346, %v2542, %v2546
        %v2548 = vshrl.u32 %v2235, 16
        %v2550 = vrot.slane %v2548, 4
        %v2551 = vor.u32 %v2550, %v2546
        %v2552 = vrot.slane %v2551, 4
        %v2554 = vshll.u32 %v2236, 16
        %v2556 = vrot.slane %v2554, 5
        %v2557 = vsel %vm346, %v2552, %v2556
        %v2559 = vshrl.u32 %v2237, 16
        %v2561 = vrot.slane %v2559, 4
        %v2562 = vshll.u32 %v2237, 16
        %v2564 = vrot.slane %v2562, 5
        %v2565 = vor.u32 %v2561, %v2564
        %v2566 = vrot.slane %v2565, 4
        %v2568 = vshll.u32 %v2238, 16
        %v2570 = vrot.slane %v2568, 5
        %v2571 = vsel %vm346, %v2566, %v2570
        %v2572 = vshrl.u32 %v2238, 16
        %v2574 = vrot.slane %v2572, 4
        %v2575 = vor.u32 %v2574, %v2570
        %v2576 = vrot.slane %v2575, 4
        %v2578 = vshll.u32 %v2239, 16
        %v2580 = vrot.slane %v2578, 5
        %v2581 = vsel %vm346, %v2576, %v2580
        %v2583 = vshrl.u32 %v2240, 16
        %v2585 = vrot.slane %v2583, 4
        %v2586 = vshll.u32 %v2240, 16
        %v2588 = vrot.slane %v2586, 5
        %v2589 = vor.u32 %v2585, %v2588
        %v2590 = vrot.slane %v2589, 4
        %v2592 = vshll.u32 %v2241, 16
        %v2594 = vrot.slane %v2592, 5
        %v2595 = vsel %vm346, %v2590, %v2594
        %v2596 = vshrl.u32 %v2241, 16
        %v2598 = vrot.slane %v2596, 4
        %v2599 = vor.u32 %v2598, %v2594
        %v2600 = vrot.slane %v2599, 4
        %v2602 = vshll.u32 %v2242, 16
        %v2604 = vrot.slane %v2602, 5
        %v2605 = vsel %vm346, %v2600, %v2604
        %v2607 = vshrl.u32 %v2243, 16
        %v2609 = vrot.slane %v2607, 4
        %v2610 = vshll.u32 %v2243, 16
        %v2612 = vrot.slane %v2610, 5
        %v2613 = vor.u32 %v2609, %v2612
        %v2614 = vrot.slane %v2613, 4
        %v2616 = vshll.u32 %v2244, 16
        %v2618 = vrot.slane %v2616, 5
        %v2619 = vsel %vm346, %v2614, %v2618
        %v2620 = vshrl.u32 %v2244, 16
        %v2622 = vrot.slane %v2620, 4
        %v2623 = vor.u32 %v2622, %v2618
        %v2624 = vrot.slane %v2623, 4
        %v2626 = vshll.u32 %v2245, 16
        %v2628 = vrot.slane %v2626, 5
        %v2629 = vsel %vm346, %v2624, %v2628
        %s2630 = scalar_lea.vmem %s271, 256
        %v2631 = vld [vmem:[%s2630] sm:$0xf]
        %v2632 = vld [vmem:[%s2630 + $0x4] sm:$0xf]
        %v2633 = vld [vmem:[%s2630 + $0x8] sm:$0xf]
        %v2634 = vld [vmem:[%s2630 + $0xc] sm:$0xf]
        %v2635 = vld [vmem:[%s2630 + $0x10] sm:$0xf]
        %v2636 = vld [vmem:[%s2630 + $0x14] sm:$0xf]
        %v2637 = vld [vmem:[%s2630 + $0x18] sm:$0xf]
        %v2638 = vld [vmem:[%s2630 + $0x1c] sm:$0xf]
        %v2639 = vld [vmem:[%s2630 + $0x20] sm:$0xf]
        %v2640 = vld [vmem:[%s2630 + $0x24] sm:$0xf]
        %v2641 = vld [vmem:[%s2630 + $0x28] sm:$0xf]
        %v2642 = vld [vmem:[%s2630 + $0x2c] sm:$0xf]
        %v2643 = vld [vmem:[%s2630 + $0x30] sm:$0xf]
        %v2644 = vld [vmem:[%s2630 + $0x34] sm:$0xf]
        %v2645 = vld [vmem:[%s2630 + $0x38] sm:$0xf]
        %v2646 = vld [vmem:[%s2630 + $0x3c] sm:$0xf]
        %v2647 = vunpack.c.l.b16 %v2259
        %v2648 = vunpack.c.l.b16 %v2269
        %v2649 = vunpack.c.l.b16 %v2283
        %v2650 = vunpack.c.l.b16 %v2293
        %v2651 = vunpack.c.l.b16 %v2307
        %v2652 = vunpack.c.l.b16 %v2317
        %v2653 = vunpack.c.l.b16 %v2331
        %v2654 = vunpack.c.l.b16 %v2341
        %v2655 = vunpack.c.l.b16 %v2355
        %v2656 = vunpack.c.l.b16 %v2365
        %v2657 = vunpack.c.l.b16 %v2379
        %v2658 = vunpack.c.l.b16 %v2389
        %v2659 = vunpack.c.l.b16 %v2403
        %v2660 = vunpack.c.l.b16 %v2413
        %v2661 = vunpack.c.l.b16 %v2427
        %v2662 = vunpack.c.l.b16 %v2437
        %v2663 = vunpack.c.l.b16 %v2451
        %v2664 = vunpack.c.l.b16 %v2461
        %v2665 = vunpack.c.l.b16 %v2475
        %v2666 = vunpack.c.l.b16 %v2485
        %v2667 = vunpack.c.l.b16 %v2499
        %v2668 = vunpack.c.l.b16 %v2509
        %v2669 = vunpack.c.l.b16 %v2523
        %v2670 = vunpack.c.l.b16 %v2533
        %v2671 = vunpack.c.l.b16 %v2547
        %v2672 = vunpack.c.l.b16 %v2557
        %v2673 = vunpack.c.l.b16 %v2571
        %v2674 = vunpack.c.l.b16 %v2581
        %v2675 = vunpack.c.l.b16 %v2595
        %v2676 = vunpack.c.l.b16 %v2605
        %v2677 = vunpack.c.l.b16 %v2619
        %v2678 = vunpack.c.l.b16 %v2629
        %v2679 = vpack.c.b16 %v2648, %v2647
        %v2680 = vpack.c.b16 %v2650, %v2649
        %v2681 = vpack.c.b16 %v2652, %v2651
        %v2682 = vpack.c.b16 %v2654, %v2653
        %v2683 = vpack.c.b16 %v2656, %v2655
        %v2684 = vpack.c.b16 %v2658, %v2657
        %v2685 = vpack.c.b16 %v2660, %v2659
        %v2686 = vpack.c.b16 %v2662, %v2661
        %v2687 = vpack.c.b16 %v2664, %v2663
        %v2688 = vpack.c.b16 %v2666, %v2665
        %v2689 = vpack.c.b16 %v2668, %v2667
        %v2690 = vpack.c.b16 %v2670, %v2669
        %v2691 = vpack.c.b16 %v2672, %v2671
        %v2692 = vpack.c.b16 %v2674, %v2673
        %v2693 = vpack.c.b16 %v2676, %v2675
        %v2694 = vpack.c.b16 %v2678, %v2677
        %v2727 = vunpack.c.l.b16 %v2631
        %v2728 = vunpack.c.l.b16 %v2632
        %v2729 = vunpack.c.l.b16 %v2633
        %v2730 = vunpack.c.l.b16 %v2634
        %v2731 = vunpack.c.l.b16 %v2635
        %v2732 = vunpack.c.l.b16 %v2636
        %v2733 = vunpack.c.l.b16 %v2637
        %v2734 = vunpack.c.l.b16 %v2638
        %v2735 = vunpack.c.l.b16 %v2639
        %v2736 = vunpack.c.l.b16 %v2640
        %v2737 = vunpack.c.l.b16 %v2641
        %v2738 = vunpack.c.l.b16 %v2642
        %v2739 = vunpack.c.l.b16 %v2643
        %v2740 = vunpack.c.l.b16 %v2644
        %v2741 = vunpack.c.l.b16 %v2645
        %v2742 = vunpack.c.l.b16 %v2646
        %v2743 = vpack.c.b16 %v2728, %v2727
        %v2744 = vpack.c.b16 %v2730, %v2729
        %v2745 = vpack.c.b16 %v2732, %v2731
        %v2746 = vpack.c.b16 %v2734, %v2733
        %v2747 = vpack.c.b16 %v2736, %v2735
        %v2748 = vpack.c.b16 %v2738, %v2737
        %v2749 = vpack.c.b16 %v2740, %v2739
        %v2750 = vpack.c.b16 %v2742, %v2741
        %2759 = vmatprep.subr.bf16.mxu0 0
        %2760 = vmatpush1.bf16.msra.mxu0 %v2750
        %2761 = vmatprep.subr.bf16.mxu0 0
        %2762 = vmatpush1.bf16.msra.mxu0 %v2749
        %2763 = vmatprep.subr.bf16.mxu0 0
        %2764 = vmatpush1.bf16.msra.mxu0 %v2748
        %2765 = vmatprep.subr.bf16.mxu0 0
        %2766 = vmatpush1.bf16.msra.mxu0 %v2747
        %2767 = vmatprep.subr.bf16.mxu0 0
        %2768 = vmatpush1.bf16.msra.mxu0 %v2746
        %2769 = vmatprep.subr.bf16.mxu0 0
        %2770 = vmatpush1.bf16.msra.mxu0 %v2745
        %2771 = vmatprep.subr.bf16.mxu0 0
        %2772 = vmatpush1.bf16.msra.mxu0 %v2744
        %2773 = vmatprep.subr.bf16.mxu0 0
        %2774 = vmatpush1.bf16.msra.mxu0 %v2743
        %2775 = vmatprep.subr.bf16.mxu0 0
        %2776 = vmatpush2.bf16.msra.mxu0 0
        %2777 = vmatprep.subr.bf16.mxu0 0
        %2778 = vmatpush2.bf16.msra.mxu0 0
        %2779 = vmatprep.subr.bf16.mxu0 0
        %2780 = vmatpush2.bf16.msra.mxu0 0
        %2781 = vmatprep.subr.bf16.mxu0 0
        %2782 = vmatpush2.bf16.msra.mxu0 0
        %2783 = vmatprep.subr.bf16.mxu0 0
        %2784 = vmatpush2.bf16.msra.mxu0 0
        %2785 = vmatprep.subr.bf16.mxu0 0
        %2786 = vmatpush2.bf16.msra.mxu0 0
        %2787 = vmatprep.subr.bf16.mxu0 0
        %2788 = vmatpush2.bf16.msra.mxu0 0
        %2789 = vmatprep.subr.bf16.mxu0 0
        %2790 = vmatpush2.bf16.msra.mxu0 0
        %2791 = vmatprep.mubr.bf16.mxu0 0
        %2792 = vmatmul.mubr.bf16.gmra.mxu0 %v2679
        %v2793 = vpop.f32.mrf.mxu0
        %v2794 = vadd.f32 0.0, %v2793
        %v2795 = vpop.f32.mrf.mxu0
        %v2796 = vpop.f32.mrf.mxu0
        %v2797 = vadd.f32 0.0, %v2796
        %v2798 = vpop.f32.mrf.mxu0
        %2799 = vmatprep.mubr.bf16.mxu0 0
        %2800 = vmatmul.mubr.bf16.gmra.mxu0 %v2680
        %v2801 = vpop.f32.mrf.mxu0
        %v2802 = vadd.f32 0.0, %v2801
        %v2803 = vpop.f32.mrf.mxu0
        %v2804 = vpop.f32.mrf.mxu0
        %v2805 = vadd.f32 0.0, %v2804
        %v2806 = vpop.f32.mrf.mxu0
        %2807 = vmatprep.mubr.bf16.mxu0 0
        %2808 = vmatmul.mubr.bf16.gmra.mxu0 %v2681
        %v2809 = vpop.f32.mrf.mxu0
        %v2810 = vadd.f32 0.0, %v2809
        %v2811 = vpop.f32.mrf.mxu0
        %v2812 = vpop.f32.mrf.mxu0
        %v2813 = vadd.f32 0.0, %v2812
        %v2814 = vpop.f32.mrf.mxu0
        %2815 = vmatprep.mubr.bf16.mxu0 0
        %2816 = vmatmul.mubr.bf16.gmra.mxu0 %v2682
        %v2817 = vpop.f32.mrf.mxu0
        %v2818 = vadd.f32 0.0, %v2817
        %v2819 = vpop.f32.mrf.mxu0
        %v2820 = vpop.f32.mrf.mxu0
        %v2821 = vadd.f32 0.0, %v2820
        %v2822 = vpop.f32.mrf.mxu0
        %2823 = vmatprep.mubr.bf16.mxu0 0
        %2824 = vmatmul.mubr.bf16.gmra.mxu0 %v2683
        %v2825 = vpop.f32.mrf.mxu0
        %v2826 = vadd.f32 0.0, %v2825
        %v2827 = vpop.f32.mrf.mxu0
        %v2828 = vpop.f32.mrf.mxu0
        %v2829 = vadd.f32 0.0, %v2828
        %v2830 = vpop.f32.mrf.mxu0
        %2831 = vmatprep.mubr.bf16.mxu0 0
        %2832 = vmatmul.mubr.bf16.gmra.mxu0 %v2684
        %v2833 = vpop.f32.mrf.mxu0
        %v2834 = vadd.f32 0.0, %v2833
        %v2835 = vpop.f32.mrf.mxu0
        %v2836 = vpop.f32.mrf.mxu0
        %v2837 = vadd.f32 0.0, %v2836
        %v2838 = vpop.f32.mrf.mxu0
        %2839 = vmatprep.mubr.bf16.mxu0 0
        %2840 = vmatmul.mubr.bf16.gmra.mxu0 %v2685
        %v2841 = vpop.f32.mrf.mxu0
        %v2842 = vadd.f32 0.0, %v2841
        %v2843 = vpop.f32.mrf.mxu0
        %v2844 = vpop.f32.mrf.mxu0
        %v2845 = vadd.f32 0.0, %v2844
        %v2846 = vpop.f32.mrf.mxu0
        %2847 = vmatprep.mubr.bf16.mxu0 0
        %2848 = vmatmul.mubr.bf16.gmra.mxu0 %v2686
        %v2849 = vpop.f32.mrf.mxu0
        %v2850 = vadd.f32 0.0, %v2849
        %v2851 = vpop.f32.mrf.mxu0
        %v2852 = vpop.f32.mrf.mxu0
        %v2853 = vadd.f32 0.0, %v2852
        %v2854 = vpop.f32.mrf.mxu0
        %2855 = vmatprep.mubr.bf16.mxu0 0
        %2856 = vmatmul.mubr.bf16.gmra.mxu0 %v2687
        %v2857 = vpop.f32.mrf.mxu0
        %v2858 = vadd.f32 0.0, %v2857
        %v2859 = vpop.f32.mrf.mxu0
        %v2860 = vpop.f32.mrf.mxu0
        %v2861 = vadd.f32 0.0, %v2860
        %v2862 = vpop.f32.mrf.mxu0
        %2863 = vmatprep.mubr.bf16.mxu0 0
        %2864 = vmatmul.mubr.bf16.gmra.mxu0 %v2688
        %v2865 = vpop.f32.mrf.mxu0
        %v2866 = vadd.f32 0.0, %v2865
        %v2867 = vpop.f32.mrf.mxu0
        %v2868 = vpop.f32.mrf.mxu0
        %v2869 = vadd.f32 0.0, %v2868
        %v2870 = vpop.f32.mrf.mxu0
        %2871 = vmatprep.mubr.bf16.mxu0 0
        %2872 = vmatmul.mubr.bf16.gmra.mxu0 %v2689
        %v2873 = vpop.f32.mrf.mxu0
        %v2874 = vadd.f32 0.0, %v2873
        %v2875 = vpop.f32.mrf.mxu0
        %v2876 = vpop.f32.mrf.mxu0
        %v2877 = vadd.f32 0.0, %v2876
        %v2878 = vpop.f32.mrf.mxu0
        %2879 = vmatprep.mubr.bf16.mxu0 0
        %2880 = vmatmul.mubr.bf16.gmra.mxu0 %v2690
        %v2881 = vpop.f32.mrf.mxu0
        %v2882 = vadd.f32 0.0, %v2881
        %v2883 = vpop.f32.mrf.mxu0
        %v2884 = vpop.f32.mrf.mxu0
        %v2885 = vadd.f32 0.0, %v2884
        %v2886 = vpop.f32.mrf.mxu0
        %2887 = vmatprep.mubr.bf16.mxu0 0
        %2888 = vmatmul.mubr.bf16.gmra.mxu0 %v2691
        %v2889 = vpop.f32.mrf.mxu0
        %v2890 = vadd.f32 0.0, %v2889
        %v2891 = vpop.f32.mrf.mxu0
        %v2892 = vpop.f32.mrf.mxu0
        %v2893 = vadd.f32 0.0, %v2892
        %v2894 = vpop.f32.mrf.mxu0
        %2895 = vmatprep.mubr.bf16.mxu0 0
        %2896 = vmatmul.mubr.bf16.gmra.mxu0 %v2692
        %v2897 = vpop.f32.mrf.mxu0
        %v2898 = vadd.f32 0.0, %v2897
        %v2899 = vpop.f32.mrf.mxu0
        %v2900 = vpop.f32.mrf.mxu0
        %v2901 = vadd.f32 0.0, %v2900
        %v2902 = vpop.f32.mrf.mxu0
        %2903 = vmatprep.mubr.bf16.mxu0 0
        %2904 = vmatmul.mubr.bf16.gmra.mxu0 %v2693
        %v2905 = vpop.f32.mrf.mxu0
        %v2906 = vadd.f32 0.0, %v2905
        %v2907 = vpop.f32.mrf.mxu0
        %v2908 = vpop.f32.mrf.mxu0
        %v2909 = vadd.f32 0.0, %v2908
        %v2910 = vpop.f32.mrf.mxu0
        %2911 = vmatprep.mubr.bf16.mxu0 0
        %2912 = vmatmul.mubr.bf16.gmra.mxu0 %v2694
        %v2913 = vpop.f32.mrf.mxu0
        %v2914 = vadd.f32 0.0, %v2913
        %v2915 = vpop.f32.mrf.mxu0
        %v2916 = vpop.f32.mrf.mxu0
        %v2917 = vadd.f32 0.0, %v2916
        %v2918 = vpop.f32.mrf.mxu0
        %2919 = vdwg.mxu0
        %v2920 = vadd.f32 %v2166, %v2794
        %v2921 = vadd.f32 %v2167, %v2797
        %v2922 = vadd.f32 %v2168, %v2802
        %v2923 = vadd.f32 %v2169, %v2805
        %v2924 = vadd.f32 %v2170, %v2810
        %v2925 = vadd.f32 %v2171, %v2813
        %v2926 = vadd.f32 %v2172, %v2818
        %v2927 = vadd.f32 %v2173, %v2821
        %v2928 = vadd.f32 %v2174, %v2826
        %v2929 = vadd.f32 %v2175, %v2829
        %v2930 = vadd.f32 %v2176, %v2834
        %v2931 = vadd.f32 %v2177, %v2837
        %v2932 = vadd.f32 %v2178, %v2842
        %v2933 = vadd.f32 %v2179, %v2845
        %v2934 = vadd.f32 %v2180, %v2850
        %v2935 = vadd.f32 %v2181, %v2853
        %v2936 = vadd.f32 %v2182, %v2858
        %v2937 = vadd.f32 %v2183, %v2861
        %v2938 = vadd.f32 %v2184, %v2866
        %v2939 = vadd.f32 %v2185, %v2869
        %v2940 = vadd.f32 %v2186, %v2874
        %v2941 = vadd.f32 %v2187, %v2877
        %v2942 = vadd.f32 %v2188, %v2882
        %v2943 = vadd.f32 %v2189, %v2885
        %v2944 = vadd.f32 %v2190, %v2890
        %v2945 = vadd.f32 %v2191, %v2893
        %v2946 = vadd.f32 %v2192, %v2898
        %v2947 = vadd.f32 %v2193, %v2901
        %v2948 = vadd.f32 %v2194, %v2906
        %v2949 = vadd.f32 %v2195, %v2909
        %v2950 = vadd.f32 %v2196, %v2914
        %v2951 = vadd.f32 %v2197, %v2917
        %v2952 = vld [vmem:[%s1811] sm:$0xe]
        %v2953 = vld [vmem:[%s1811 + $0xc] sm:$0xe]
        %v2954 = vld [vmem:[%s1811 + $0x18] sm:$0xe]
        %v2955 = vld [vmem:[%s1811 + $0x24] sm:$0xe]
        %v2956 = vld [vmem:[%s1811 + $0x30] sm:$0xe]
        %v2957 = vld [vmem:[%s1811 + $0x3c] sm:$0xe]
        %v2958 = vld [vmem:[%s1811 + $0x48] sm:$0xe]
        %v2959 = vld [vmem:[%s1811 + $0x54] sm:$0xe]
        %v2960 = vld [vmem:[%s1811 + $0x60] sm:$0xe]
        %v2961 = vld [vmem:[%s1811 + $0x6c] sm:$0xe]
        %v2962 = vld [vmem:[%s1811 + $0x78] sm:$0xe]
        %v2963 = vld [vmem:[%s1811 + $0x84] sm:$0xe]
        %v2964 = vld [vmem:[%s1811 + $0x90] sm:$0xe]
        %v2965 = vld [vmem:[%s1811 + $0x9c] sm:$0xe]
        %v2966 = vld [vmem:[%s1811 + $0xa8] sm:$0xe]
        %v2967 = vld [vmem:[%s1811 + $0xb4] sm:$0xe]
        %v3016 = vrot.slane %v2952, 5
        %v3017 = vrot.slane %v3016, 4
        %v3018 = vrot.slane %v2199, 5
        %v3019 = vsel %vm1376, %v3017, %v3018
        %v3020 = vrot.slane %v3018, 4
        %v3021 = vrot.slane %v2200, 5
        %v3022 = vsel %vm1376, %v3020, %v3021
        %v3023 = vrot.slane %v2953, 5
        %v3024 = vrot.slane %v3023, 4
        %v3025 = vrot.slane %v2202, 5
        %v3026 = vsel %vm1376, %v3024, %v3025
        %v3027 = vrot.slane %v3025, 4
        %v3028 = vrot.slane %v2203, 5
        %v3029 = vsel %vm1376, %v3027, %v3028
        %v3030 = vrot.slane %v2954, 5
        %v3031 = vrot.slane %v3030, 4
        %v3032 = vrot.slane %v2205, 5
        %v3033 = vsel %vm1376, %v3031, %v3032
        %v3034 = vrot.slane %v3032, 4
        %v3035 = vrot.slane %v2206, 5
        %v3036 = vsel %vm1376, %v3034, %v3035
        %v3037 = vrot.slane %v2955, 5
        %v3038 = vrot.slane %v3037, 4
        %v3039 = vrot.slane %v2208, 5
        %v3040 = vsel %vm1376, %v3038, %v3039
        %v3041 = vrot.slane %v3039, 4
        %v3042 = vrot.slane %v2209, 5
        %v3043 = vsel %vm1376, %v3041, %v3042
        %v3044 = vrot.slane %v2956, 5
        %v3045 = vrot.slane %v3044, 4
        %v3046 = vrot.slane %v2211, 5
        %v3047 = vsel %vm1376, %v3045, %v3046
        %v3048 = vrot.slane %v3046, 4
        %v3049 = vrot.slane %v2212, 5
        %v3050 = vsel %vm1376, %v3048, %v3049
        %v3051 = vrot.slane %v2957, 5
        %v3052 = vrot.slane %v3051, 4
        %v3053 = vrot.slane %v2214, 5
        %v3054 = vsel %vm1376, %v3052, %v3053
        %v3055 = vrot.slane %v3053, 4
        %v3056 = vrot.slane %v2215, 5
        %v3057 = vsel %vm1376, %v3055, %v3056
        %v3058 = vrot.slane %v2958, 5
        %v3059 = vrot.slane %v3058, 4
        %v3060 = vrot.slane %v2217, 5
        %v3061 = vsel %vm1376, %v3059, %v3060
        %v3062 = vrot.slane %v3060, 4
        %v3063 = vrot.slane %v2218, 5
        %v3064 = vsel %vm1376, %v3062, %v3063
        %v3065 = vrot.slane %v2959, 5
        %v3066 = vrot.slane %v3065, 4
        %v3067 = vrot.slane %v2220, 5
        %v3068 = vsel %vm1376, %v3066, %v3067
        %v3069 = vrot.slane %v3067, 4
        %v3070 = vrot.slane %v2221, 5
        %v3071 = vsel %vm1376, %v3069, %v3070
        %v3072 = vrot.slane %v2960, 5
        %v3073 = vrot.slane %v3072, 4
        %v3074 = vrot.slane %v2223, 5
        %v3075 = vsel %vm1376, %v3073, %v3074
        %v3076 = vrot.slane %v3074, 4
        %v3077 = vrot.slane %v2224, 5
        %v3078 = vsel %vm1376, %v3076, %v3077
        %v3079 = vrot.slane %v2961, 5
        %v3080 = vrot.slane %v3079, 4
        %v3081 = vrot.slane %v2226, 5
        %v3082 = vsel %vm1376, %v3080, %v3081
        %v3083 = vrot.slane %v3081, 4
        %v3084 = vrot.slane %v2227, 5
        %v3085 = vsel %vm1376, %v3083, %v3084
        %v3086 = vrot.slane %v2962, 5
        %v3087 = vrot.slane %v3086, 4
        %v3088 = vrot.slane %v2229, 5
        %v3089 = vsel %vm1376, %v3087, %v3088
        %v3090 = vrot.slane %v3088, 4
        %v3091 = vrot.slane %v2230, 5
        %v3092 = vsel %vm1376, %v3090, %v3091
        %v3093 = vrot.slane %v2963, 5
        %v3094 = vrot.slane %v3093, 4
        %v3095 = vrot.slane %v2232, 5
        %v3096 = vsel %vm1376, %v3094, %v3095
        %v3097 = vrot.slane %v3095, 4
        %v3098 = vrot.slane %v2233, 5
        %v3099 = vsel %vm1376, %v3097, %v3098
        %v3100 = vrot.slane %v2964, 5
        %v3101 = vrot.slane %v3100, 4
        %v3102 = vrot.slane %v2235, 5
        %v3103 = vsel %vm1376, %v3101, %v3102
        %v3104 = vrot.slane %v3102, 4
        %v3105 = vrot.slane %v2236, 5
        %v3106 = vsel %vm1376, %v3104, %v3105
        %v3107 = vrot.slane %v2965, 5
        %v3108 = vrot.slane %v3107, 4
        %v3109 = vrot.slane %v2238, 5
        %v3110 = vsel %vm1376, %v3108, %v3109
        %v3111 = vrot.slane %v3109, 4
        %v3112 = vrot.slane %v2239, 5
        %v3113 = vsel %vm1376, %v3111, %v3112
        %v3114 = vrot.slane %v2966, 5
        %v3115 = vrot.slane %v3114, 4
        %v3116 = vrot.slane %v2241, 5
        %v3117 = vsel %vm1376, %v3115, %v3116
        %v3118 = vrot.slane %v3116, 4
        %v3119 = vrot.slane %v2242, 5
        %v3120 = vsel %vm1376, %v3118, %v3119
        %v3121 = vrot.slane %v2967, 5
        %v3122 = vrot.slane %v3121, 4
        %v3123 = vrot.slane %v2244, 5
        %v3124 = vsel %vm1376, %v3122, %v3123
        %v3125 = vrot.slane %v3123, 4
        %v3126 = vrot.slane %v2245, 5
        %v3127 = vsel %vm1376, %v3125, %v3126
        %s3128 = scalar_lea.vmem %s271, 320
        %v3129 = vld [vmem:[%s3128] sm:$0xf]
        %v3130 = vld [vmem:[%s3128 + $0x4] sm:$0xf]
        %v3131 = vld [vmem:[%s3128 + $0x8] sm:$0xf]
        %v3132 = vld [vmem:[%s3128 + $0xc] sm:$0xf]
        %v3133 = vld [vmem:[%s3128 + $0x10] sm:$0xf]
        %v3134 = vld [vmem:[%s3128 + $0x14] sm:$0xf]
        %v3135 = vld [vmem:[%s3128 + $0x18] sm:$0xf]
        %v3136 = vld [vmem:[%s3128 + $0x1c] sm:$0xf]
        %v3137 = vld [vmem:[%s3128 + $0x20] sm:$0xf]
        %v3138 = vld [vmem:[%s3128 + $0x24] sm:$0xf]
        %v3139 = vld [vmem:[%s3128 + $0x28] sm:$0xf]
        %v3140 = vld [vmem:[%s3128 + $0x2c] sm:$0xf]
        %v3141 = vld [vmem:[%s3128 + $0x30] sm:$0xf]
        %v3142 = vld [vmem:[%s3128 + $0x34] sm:$0xf]
        %v3143 = vld [vmem:[%s3128 + $0x38] sm:$0xf]
        %v3144 = vld [vmem:[%s3128 + $0x3c] sm:$0xf]
        %v3145 = vunpack.c.l.b16 %v3019
        %v3146 = vunpack.c.l.b16 %v3022
        %v3147 = vunpack.c.l.b16 %v3026
        %v3148 = vunpack.c.l.b16 %v3029
        %v3149 = vunpack.c.l.b16 %v3033
        %v3150 = vunpack.c.l.b16 %v3036
        %v3151 = vunpack.c.l.b16 %v3040
        %v3152 = vunpack.c.l.b16 %v3043
        %v3153 = vunpack.c.l.b16 %v3047
        %v3154 = vunpack.c.l.b16 %v3050
        %v3155 = vunpack.c.l.b16 %v3054
        %v3156 = vunpack.c.l.b16 %v3057
        %v3157 = vunpack.c.l.b16 %v3061
        %v3158 = vunpack.c.l.b16 %v3064
        %v3159 = vunpack.c.l.b16 %v3068
        %v3160 = vunpack.c.l.b16 %v3071
        %v3161 = vunpack.c.l.b16 %v3075
        %v3162 = vunpack.c.l.b16 %v3078
        %v3163 = vunpack.c.l.b16 %v3082
        %v3164 = vunpack.c.l.b16 %v3085
        %v3165 = vunpack.c.l.b16 %v3089
        %v3166 = vunpack.c.l.b16 %v3092
        %v3167 = vunpack.c.l.b16 %v3096
        %v3168 = vunpack.c.l.b16 %v3099
        %v3169 = vunpack.c.l.b16 %v3103
        %v3170 = vunpack.c.l.b16 %v3106
        %v3171 = vunpack.c.l.b16 %v3110
        %v3172 = vunpack.c.l.b16 %v3113
        %v3173 = vunpack.c.l.b16 %v3117
        %v3174 = vunpack.c.l.b16 %v3120
        %v3175 = vunpack.c.l.b16 %v3124
        %v3176 = vunpack.c.l.b16 %v3127
        %v3177 = vpack.c.b16 %v3146, %v3145
        %v3178 = vpack.c.b16 %v3148, %v3147
        %v3179 = vpack.c.b16 %v3150, %v3149
        %v3180 = vpack.c.b16 %v3152, %v3151
        %v3181 = vpack.c.b16 %v3154, %v3153
        %v3182 = vpack.c.b16 %v3156, %v3155
        %v3183 = vpack.c.b16 %v3158, %v3157
        %v3184 = vpack.c.b16 %v3160, %v3159
        %v3185 = vpack.c.b16 %v3162, %v3161
        %v3186 = vpack.c.b16 %v3164, %v3163
        %v3187 = vpack.c.b16 %v3166, %v3165
        %v3188 = vpack.c.b16 %v3168, %v3167
        %v3189 = vpack.c.b16 %v3170, %v3169
        %v3190 = vpack.c.b16 %v3172, %v3171
        %v3191 = vpack.c.b16 %v3174, %v3173
        %v3192 = vpack.c.b16 %v3176, %v3175
        %v3225 = vunpack.c.l.b16 %v3129
        %v3226 = vunpack.c.l.b16 %v3130
        %v3227 = vunpack.c.l.b16 %v3131
        %v3228 = vunpack.c.l.b16 %v3132
        %v3229 = vunpack.c.l.b16 %v3133
        %v3230 = vunpack.c.l.b16 %v3134
        %v3231 = vunpack.c.l.b16 %v3135
        %v3232 = vunpack.c.l.b16 %v3136
        %v3233 = vunpack.c.l.b16 %v3137
        %v3234 = vunpack.c.l.b16 %v3138
        %v3235 = vunpack.c.l.b16 %v3139
        %v3236 = vunpack.c.l.b16 %v3140
        %v3237 = vunpack.c.l.b16 %v3141
        %v3238 = vunpack.c.l.b16 %v3142
        %v3239 = vunpack.c.l.b16 %v3143
        %v3240 = vunpack.c.l.b16 %v3144
        %v3241 = vpack.c.b16 %v3226, %v3225
        %v3242 = vpack.c.b16 %v3228, %v3227
        %v3243 = vpack.c.b16 %v3230, %v3229
        %v3244 = vpack.c.b16 %v3232, %v3231
        %v3245 = vpack.c.b16 %v3234, %v3233
        %v3246 = vpack.c.b16 %v3236, %v3235
        %v3247 = vpack.c.b16 %v3238, %v3237
        %v3248 = vpack.c.b16 %v3240, %v3239
        %3257 = vmatprep.subr.bf16.mxu0 0
        %3258 = vmatpush1.bf16.msra.mxu0 %v3248
        %3259 = vmatprep.subr.bf16.mxu0 0
        %3260 = vmatpush1.bf16.msra.mxu0 %v3247
        %3261 = vmatprep.subr.bf16.mxu0 0
        %3262 = vmatpush1.bf16.msra.mxu0 %v3246
        %3263 = vmatprep.subr.bf16.mxu0 0
        %3264 = vmatpush1.bf16.msra.mxu0 %v3245
        %3265 = vmatprep.subr.bf16.mxu0 0
        %3266 = vmatpush1.bf16.msra.mxu0 %v3244
        %3267 = vmatprep.subr.bf16.mxu0 0
        %3268 = vmatpush1.bf16.msra.mxu0 %v3243
        %3269 = vmatprep.subr.bf16.mxu0 0
        %3270 = vmatpush1.bf16.msra.mxu0 %v3242
        %3271 = vmatprep.subr.bf16.mxu0 0
        %3272 = vmatpush1.bf16.msra.mxu0 %v3241
        %3273 = vmatprep.subr.bf16.mxu0 0
        %3274 = vmatpush2.bf16.msra.mxu0 0
        %3275 = vmatprep.subr.bf16.mxu0 0
        %3276 = vmatpush2.bf16.msra.mxu0 0
        %3277 = vmatprep.subr.bf16.mxu0 0
        %3278 = vmatpush2.bf16.msra.mxu0 0
        %3279 = vmatprep.subr.bf16.mxu0 0
        %3280 = vmatpush2.bf16.msra.mxu0 0
        %3281 = vmatprep.subr.bf16.mxu0 0
        %3282 = vmatpush2.bf16.msra.mxu0 0
        %3283 = vmatprep.subr.bf16.mxu0 0
        %3284 = vmatpush2.bf16.msra.mxu0 0
        %3285 = vmatprep.subr.bf16.mxu0 0
        %3286 = vmatpush2.bf16.msra.mxu0 0
        %3287 = vmatprep.subr.bf16.mxu0 0
        %3288 = vmatpush2.bf16.msra.mxu0 0
        %3289 = vmatprep.mubr.bf16.mxu0 0
        %3290 = vmatmul.mubr.bf16.gmra.mxu0 %v3177
        %v3291 = vpop.f32.mrf.mxu0
        %v3292 = vadd.f32 0.0, %v3291
        %v3293 = vpop.f32.mrf.mxu0
        %v3294 = vpop.f32.mrf.mxu0
        %v3295 = vadd.f32 0.0, %v3294
        %v3296 = vpop.f32.mrf.mxu0
        %3297 = vmatprep.mubr.bf16.mxu0 0
        %3298 = vmatmul.mubr.bf16.gmra.mxu0 %v3178
        %v3299 = vpop.f32.mrf.mxu0
        %v3300 = vadd.f32 0.0, %v3299
        %v3301 = vpop.f32.mrf.mxu0
        %v3302 = vpop.f32.mrf.mxu0
        %v3303 = vadd.f32 0.0, %v3302
        %v3304 = vpop.f32.mrf.mxu0
        %3305 = vmatprep.mubr.bf16.mxu0 0
        %3306 = vmatmul.mubr.bf16.gmra.mxu0 %v3179
        %v3307 = vpop.f32.mrf.mxu0
        %v3308 = vadd.f32 0.0, %v3307
        %v3309 = vpop.f32.mrf.mxu0
        %v3310 = vpop.f32.mrf.mxu0
        %v3311 = vadd.f32 0.0, %v3310
        %v3312 = vpop.f32.mrf.mxu0
        %3313 = vmatprep.mubr.bf16.mxu0 0
        %3314 = vmatmul.mubr.bf16.gmra.mxu0 %v3180
        %v3315 = vpop.f32.mrf.mxu0
        %v3316 = vadd.f32 0.0, %v3315
        %v3317 = vpop.f32.mrf.mxu0
        %v3318 = vpop.f32.mrf.mxu0
        %v3319 = vadd.f32 0.0, %v3318
        %v3320 = vpop.f32.mrf.mxu0
        %3321 = vmatprep.mubr.bf16.mxu0 0
        %3322 = vmatmul.mubr.bf16.gmra.mxu0 %v3181
        %v3323 = vpop.f32.mrf.mxu0
        %v3324 = vadd.f32 0.0, %v3323
        %v3325 = vpop.f32.mrf.mxu0
        %v3326 = vpop.f32.mrf.mxu0
        %v3327 = vadd.f32 0.0, %v3326
        %v3328 = vpop.f32.mrf.mxu0
        %3329 = vmatprep.mubr.bf16.mxu0 0
        %3330 = vmatmul.mubr.bf16.gmra.mxu0 %v3182
        %v3331 = vpop.f32.mrf.mxu0
        %v3332 = vadd.f32 0.0, %v3331
        %v3333 = vpop.f32.mrf.mxu0
        %v3334 = vpop.f32.mrf.mxu0
        %v3335 = vadd.f32 0.0, %v3334
        %v3336 = vpop.f32.mrf.mxu0
        %3337 = vmatprep.mubr.bf16.mxu0 0
        %3338 = vmatmul.mubr.bf16.gmra.mxu0 %v3183
        %v3339 = vpop.f32.mrf.mxu0
        %v3340 = vadd.f32 0.0, %v3339
        %v3341 = vpop.f32.mrf.mxu0
        %v3342 = vpop.f32.mrf.mxu0
        %v3343 = vadd.f32 0.0, %v3342
        %v3344 = vpop.f32.mrf.mxu0
        %3345 = vmatprep.mubr.bf16.mxu0 0
        %3346 = vmatmul.mubr.bf16.gmra.mxu0 %v3184
        %v3347 = vpop.f32.mrf.mxu0
        %v3348 = vadd.f32 0.0, %v3347
        %v3349 = vpop.f32.mrf.mxu0
        %v3350 = vpop.f32.mrf.mxu0
        %v3351 = vadd.f32 0.0, %v3350
        %v3352 = vpop.f32.mrf.mxu0
        %3353 = vmatprep.mubr.bf16.mxu0 0
        %3354 = vmatmul.mubr.bf16.gmra.mxu0 %v3185
        %v3355 = vpop.f32.mrf.mxu0
        %v3356 = vadd.f32 0.0, %v3355
        %v3357 = vpop.f32.mrf.mxu0
        %v3358 = vpop.f32.mrf.mxu0
        %v3359 = vadd.f32 0.0, %v3358
        %v3360 = vpop.f32.mrf.mxu0
        %3361 = vmatprep.mubr.bf16.mxu0 0
        %3362 = vmatmul.mubr.bf16.gmra.mxu0 %v3186
        %v3363 = vpop.f32.mrf.mxu0
        %v3364 = vadd.f32 0.0, %v3363
        %v3365 = vpop.f32.mrf.mxu0
        %v3366 = vpop.f32.mrf.mxu0
        %v3367 = vadd.f32 0.0, %v3366
        %v3368 = vpop.f32.mrf.mxu0
        %3369 = vmatprep.mubr.bf16.mxu0 0
        %3370 = vmatmul.mubr.bf16.gmra.mxu0 %v3187
        %v3371 = vpop.f32.mrf.mxu0
        %v3372 = vadd.f32 0.0, %v3371
        %v3373 = vpop.f32.mrf.mxu0
        %v3374 = vpop.f32.mrf.mxu0
        %v3375 = vadd.f32 0.0, %v3374
        %v3376 = vpop.f32.mrf.mxu0
        %3377 = vmatprep.mubr.bf16.mxu0 0
        %3378 = vmatmul.mubr.bf16.gmra.mxu0 %v3188
        %v3379 = vpop.f32.mrf.mxu0
        %v3380 = vadd.f32 0.0, %v3379
        %v3381 = vpop.f32.mrf.mxu0
        %v3382 = vpop.f32.mrf.mxu0
        %v3383 = vadd.f32 0.0, %v3382
        %v3384 = vpop.f32.mrf.mxu0
        %3385 = vmatprep.mubr.bf16.mxu0 0
        %3386 = vmatmul.mubr.bf16.gmra.mxu0 %v3189
        %v3387 = vpop.f32.mrf.mxu0
        %v3388 = vadd.f32 0.0, %v3387
        %v3389 = vpop.f32.mrf.mxu0
        %v3390 = vpop.f32.mrf.mxu0
        %v3391 = vadd.f32 0.0, %v3390
        %v3392 = vpop.f32.mrf.mxu0
        %3393 = vmatprep.mubr.bf16.mxu0 0
        %3394 = vmatmul.mubr.bf16.gmra.mxu0 %v3190
        %v3395 = vpop.f32.mrf.mxu0
        %v3396 = vadd.f32 0.0, %v3395
        %v3397 = vpop.f32.mrf.mxu0
        %v3398 = vpop.f32.mrf.mxu0
        %v3399 = vadd.f32 0.0, %v3398
        %v3400 = vpop.f32.mrf.mxu0
        %3401 = vmatprep.mubr.bf16.mxu0 0
        %3402 = vmatmul.mubr.bf16.gmra.mxu0 %v3191
        %v3403 = vpop.f32.mrf.mxu0
        %v3404 = vadd.f32 0.0, %v3403
        %v3405 = vpop.f32.mrf.mxu0
        %v3406 = vpop.f32.mrf.mxu0
        %v3407 = vadd.f32 0.0, %v3406
        %v3408 = vpop.f32.mrf.mxu0
        %3409 = vmatprep.mubr.bf16.mxu0 0
        %3410 = vmatmul.mubr.bf16.gmra.mxu0 %v3192
        %v3411 = vpop.f32.mrf.mxu0
        %v3412 = vadd.f32 0.0, %v3411
        %v3413 = vpop.f32.mrf.mxu0
        %v3414 = vpop.f32.mrf.mxu0
        %v3415 = vadd.f32 0.0, %v3414
        %v3416 = vpop.f32.mrf.mxu0
        %3417 = vdwg.mxu0
        %v3418 = vadd.f32 %v2920, %v3292
        %v3419 = vadd.f32 %v2921, %v3295
        %v3420 = vadd.f32 %v2922, %v3300
        %v3421 = vadd.f32 %v2923, %v3303
        %v3422 = vadd.f32 %v2924, %v3308
        %v3423 = vadd.f32 %v2925, %v3311
        %v3424 = vadd.f32 %v2926, %v3316
        %v3425 = vadd.f32 %v2927, %v3319
        %v3426 = vadd.f32 %v2928, %v3324
        %v3427 = vadd.f32 %v2929, %v3327
        %v3428 = vadd.f32 %v2930, %v3332
        %v3429 = vadd.f32 %v2931, %v3335
        %v3430 = vadd.f32 %v2932, %v3340
        %v3431 = vadd.f32 %v2933, %v3343
        %v3432 = vadd.f32 %v2934, %v3348
        %v3433 = vadd.f32 %v2935, %v3351
        %v3434 = vadd.f32 %v2936, %v3356
        %v3435 = vadd.f32 %v2937, %v3359
        %v3436 = vadd.f32 %v2938, %v3364
        %v3437 = vadd.f32 %v2939, %v3367
        %v3438 = vadd.f32 %v2940, %v3372
        %v3439 = vadd.f32 %v2941, %v3375
        %v3440 = vadd.f32 %v2942, %v3380
        %v3441 = vadd.f32 %v2943, %v3383
        %v3442 = vadd.f32 %v2944, %v3388
        %v3443 = vadd.f32 %v2945, %v3391
        %v3444 = vadd.f32 %v2946, %v3396
        %v3445 = vadd.f32 %v2947, %v3399
        %v3446 = vadd.f32 %v2948, %v3404
        %v3447 = vadd.f32 %v2949, %v3407
        %v3448 = vadd.f32 %v2950, %v3412
        %v3449 = vadd.f32 %v2951, %v3415
        %s3450 = scalar_lea.vmem %s267, 24
        %v3451 = vld [vmem:[%s3450] sm:$0xf]
        %v3452 = vld [vmem:[%s3450 + $0x4] sm:$0xf]
        %v3453 = vld [vmem:[%s3450 + $0xc] sm:$0xf]
        %v3454 = vld [vmem:[%s3450 + $0x10] sm:$0xf]
        %v3455 = vld [vmem:[%s3450 + $0x18] sm:$0xf]
        %v3456 = vld [vmem:[%s3450 + $0x1c] sm:$0xf]
        %v3457 = vld [vmem:[%s3450 + $0x24] sm:$0xf]
        %v3458 = vld [vmem:[%s3450 + $0x28] sm:$0xf]
        %v3459 = vld [vmem:[%s3450 + $0x30] sm:$0xf]
        %v3460 = vld [vmem:[%s3450 + $0x34] sm:$0xf]
        %v3461 = vld [vmem:[%s3450 + $0x3c] sm:$0xf]
        %v3462 = vld [vmem:[%s3450 + $0x40] sm:$0xf]
        %v3463 = vld [vmem:[%s3450 + $0x48] sm:$0xf]
        %v3464 = vld [vmem:[%s3450 + $0x4c] sm:$0xf]
        %v3465 = vld [vmem:[%s3450 + $0x54] sm:$0xf]
        %v3466 = vld [vmem:[%s3450 + $0x58] sm:$0xf]
        %v3467 = vld [vmem:[%s3450 + $0x60] sm:$0xf]
        %v3468 = vld [vmem:[%s3450 + $0x64] sm:$0xf]
        %v3469 = vld [vmem:[%s3450 + $0x6c] sm:$0xf]
        %v3470 = vld [vmem:[%s3450 + $0x70] sm:$0xf]
        %v3471 = vld [vmem:[%s3450 + $0x78] sm:$0xf]
        %v3472 = vld [vmem:[%s3450 + $0x7c] sm:$0xf]
        %v3473 = vld [vmem:[%s3450 + $0x84] sm:$0xf]
        %v3474 = vld [vmem:[%s3450 + $0x88] sm:$0xf]
        %v3475 = vld [vmem:[%s3450 + $0x90] sm:$0xf]
        %v3476 = vld [vmem:[%s3450 + $0x94] sm:$0xf]
        %v3477 = vld [vmem:[%s3450 + $0x9c] sm:$0xf]
        %v3478 = vld [vmem:[%s3450 + $0xa0] sm:$0xf]
        %v3479 = vld [vmem:[%s3450 + $0xa8] sm:$0xf]
        %v3480 = vld [vmem:[%s3450 + $0xac] sm:$0xf]
        %v3481 = vld [vmem:[%s3450 + $0xb4] sm:$0xf]
        %v3482 = vld [vmem:[%s3450 + $0xb8] sm:$0xf]
        %s3483 = scalar_lea.vmem %s271, 384
        %v3484 = vld [vmem:[%s3483] sm:$0xf]
        %v3485 = vld [vmem:[%s3483 + $0x4] sm:$0xf]
        %v3486 = vld [vmem:[%s3483 + $0x8] sm:$0xf]
        %v3487 = vld [vmem:[%s3483 + $0xc] sm:$0xf]
        %v3488 = vld [vmem:[%s3483 + $0x10] sm:$0xf]
        %v3489 = vld [vmem:[%s3483 + $0x14] sm:$0xf]
        %v3490 = vld [vmem:[%s3483 + $0x18] sm:$0xf]
        %v3491 = vld [vmem:[%s3483 + $0x1c] sm:$0xf]
        %v3492 = vld [vmem:[%s3483 + $0x20] sm:$0xf]
        %v3493 = vld [vmem:[%s3483 + $0x24] sm:$0xf]
        %v3494 = vld [vmem:[%s3483 + $0x28] sm:$0xf]
        %v3495 = vld [vmem:[%s3483 + $0x2c] sm:$0xf]
        %v3496 = vld [vmem:[%s3483 + $0x30] sm:$0xf]
        %v3497 = vld [vmem:[%s3483 + $0x34] sm:$0xf]
        %v3498 = vld [vmem:[%s3483 + $0x38] sm:$0xf]
        %v3499 = vld [vmem:[%s3483 + $0x3c] sm:$0xf]
        %v3532 = vunpack.c.l.b16 %v3451
        %v3533 = vunpack.c.l.b16 %v3452
        %v3534 = vunpack.c.l.b16 %v3453
        %v3535 = vunpack.c.l.b16 %v3454
        %v3536 = vunpack.c.l.b16 %v3455
        %v3537 = vunpack.c.l.b16 %v3456
        %v3538 = vunpack.c.l.b16 %v3457
        %v3539 = vunpack.c.l.b16 %v3458
        %v3540 = vunpack.c.l.b16 %v3459
        %v3541 = vunpack.c.l.b16 %v3460
        %v3542 = vunpack.c.l.b16 %v3461
        %v3543 = vunpack.c.l.b16 %v3462
        %v3544 = vunpack.c.l.b16 %v3463
        %v3545 = vunpack.c.l.b16 %v3464
        %v3546 = vunpack.c.l.b16 %v3465
        %v3547 = vunpack.c.l.b16 %v3466
        %v3548 = vunpack.c.l.b16 %v3467
        %v3549 = vunpack.c.l.b16 %v3468
        %v3550 = vunpack.c.l.b16 %v3469
        %v3551 = vunpack.c.l.b16 %v3470
        %v3552 = vunpack.c.l.b16 %v3471
        %v3553 = vunpack.c.l.b16 %v3472
        %v3554 = vunpack.c.l.b16 %v3473
        %v3555 = vunpack.c.l.b16 %v3474
        %v3556 = vunpack.c.l.b16 %v3475
        %v3557 = vunpack.c.l.b16 %v3476
        %v3558 = vunpack.c.l.b16 %v3477
        %v3559 = vunpack.c.l.b16 %v3478
        %v3560 = vunpack.c.l.b16 %v3479
        %v3561 = vunpack.c.l.b16 %v3480
        %v3562 = vunpack.c.l.b16 %v3481
        %v3563 = vunpack.c.l.b16 %v3482
        %v3564 = vpack.c.b16 %v3533, %v3532
        %v3565 = vpack.c.b16 %v3535, %v3534
        %v3566 = vpack.c.b16 %v3537, %v3536
        %v3567 = vpack.c.b16 %v3539, %v3538
        %v3568 = vpack.c.b16 %v3541, %v3540
        %v3569 = vpack.c.b16 %v3543, %v3542
        %v3570 = vpack.c.b16 %v3545, %v3544
        %v3571 = vpack.c.b16 %v3547, %v3546
        %v3572 = vpack.c.b16 %v3549, %v3548
        %v3573 = vpack.c.b16 %v3551, %v3550
        %v3574 = vpack.c.b16 %v3553, %v3552
        %v3575 = vpack.c.b16 %v3555, %v3554
        %v3576 = vpack.c.b16 %v3557, %v3556
        %v3577 = vpack.c.b16 %v3559, %v3558
        %v3578 = vpack.c.b16 %v3561, %v3560
        %v3579 = vpack.c.b16 %v3563, %v3562
        %v3612 = vunpack.c.l.b16 %v3484
        %v3613 = vunpack.c.l.b16 %v3485
        %v3614 = vunpack.c.l.b16 %v3486
        %v3615 = vunpack.c.l.b16 %v3487
        %v3616 = vunpack.c.l.b16 %v3488
        %v3617 = vunpack.c.l.b16 %v3489
        %v3618 = vunpack.c.l.b16 %v3490
        %v3619 = vunpack.c.l.b16 %v3491
        %v3620 = vunpack.c.l.b16 %v3492
        %v3621 = vunpack.c.l.b16 %v3493
        %v3622 = vunpack.c.l.b16 %v3494
        %v3623 = vunpack.c.l.b16 %v3495
        %v3624 = vunpack.c.l.b16 %v3496
        %v3625 = vunpack.c.l.b16 %v3497
        %v3626 = vunpack.c.l.b16 %v3498
        %v3627 = vunpack.c.l.b16 %v3499
        %v3628 = vpack.c.b16 %v3613, %v3612
        %v3629 = vpack.c.b16 %v3615, %v3614
        %v3630 = vpack.c.b16 %v3617, %v3616
        %v3631 = vpack.c.b16 %v3619, %v3618
        %v3632 = vpack.c.b16 %v3621, %v3620
        %v3633 = vpack.c.b16 %v3623, %v3622
        %v3634 = vpack.c.b16 %v3625, %v3624
        %v3635 = vpack.c.b16 %v3627, %v3626
        %3644 = vmatprep.subr.bf16.mxu0 0
        %3645 = vmatpush1.bf16.msra.mxu0 %v3635
        %3646 = vmatprep.subr.bf16.mxu0 0
        %3647 = vmatpush1.bf16.msra.mxu0 %v3634
        %3648 = vmatprep.subr.bf16.mxu0 0
        %3649 = vmatpush1.bf16.msra.mxu0 %v3633
        %3650 = vmatprep.subr.bf16.mxu0 0
        %3651 = vmatpush1.bf16.msra.mxu0 %v3632
        %3652 = vmatprep.subr.bf16.mxu0 0
        %3653 = vmatpush1.bf16.msra.mxu0 %v3631
        %3654 = vmatprep.subr.bf16.mxu0 0
        %3655 = vmatpush1.bf16.msra.mxu0 %v3630
        %3656 = vmatprep.subr.bf16.mxu0 0
        %3657 = vmatpush1.bf16.msra.mxu0 %v3629
        %3658 = vmatprep.subr.bf16.mxu0 0
        %3659 = vmatpush1.bf16.msra.mxu0 %v3628
        %3660 = vmatprep.subr.bf16.mxu0 0
        %3661 = vmatpush2.bf16.msra.mxu0 0
        %3662 = vmatprep.subr.bf16.mxu0 0
        %3663 = vmatpush2.bf16.msra.mxu0 0
        %3664 = vmatprep.subr.bf16.mxu0 0
        %3665 = vmatpush2.bf16.msra.mxu0 0
        %3666 = vmatprep.subr.bf16.mxu0 0
        %3667 = vmatpush2.bf16.msra.mxu0 0
        %3668 = vmatprep.subr.bf16.mxu0 0
        %3669 = vmatpush2.bf16.msra.mxu0 0
        %3670 = vmatprep.subr.bf16.mxu0 0
        %3671 = vmatpush2.bf16.msra.mxu0 0
        %3672 = vmatprep.subr.bf16.mxu0 0
        %3673 = vmatpush2.bf16.msra.mxu0 0
        %3674 = vmatprep.subr.bf16.mxu0 0
        %3675 = vmatpush2.bf16.msra.mxu0 0
        %3676 = vmatprep.mubr.bf16.mxu0 0
        %3677 = vmatmul.mubr.bf16.gmra.mxu0 %v3564
        %v3678 = vpop.f32.mrf.mxu0
        %v3679 = vadd.f32 0.0, %v3678
        %v3680 = vpop.f32.mrf.mxu0
        %v3681 = vpop.f32.mrf.mxu0
        %v3682 = vadd.f32 0.0, %v3681
        %v3683 = vpop.f32.mrf.mxu0
        %3684 = vmatprep.mubr.bf16.mxu0 0
        %3685 = vmatmul.mubr.bf16.gmra.mxu0 %v3565
        %v3686 = vpop.f32.mrf.mxu0
        %v3687 = vadd.f32 0.0, %v3686
        %v3688 = vpop.f32.mrf.mxu0
        %v3689 = vpop.f32.mrf.mxu0
        %v3690 = vadd.f32 0.0, %v3689
        %v3691 = vpop.f32.mrf.mxu0
        %3692 = vmatprep.mubr.bf16.mxu0 0
        %3693 = vmatmul.mubr.bf16.gmra.mxu0 %v3566
        %v3694 = vpop.f32.mrf.mxu0
        %v3695 = vadd.f32 0.0, %v3694
        %v3696 = vpop.f32.mrf.mxu0
        %v3697 = vpop.f32.mrf.mxu0
        %v3698 = vadd.f32 0.0, %v3697
        %v3699 = vpop.f32.mrf.mxu0
        %3700 = vmatprep.mubr.bf16.mxu0 0
        %3701 = vmatmul.mubr.bf16.gmra.mxu0 %v3567
        %v3702 = vpop.f32.mrf.mxu0
        %v3703 = vadd.f32 0.0, %v3702
        %v3704 = vpop.f32.mrf.mxu0
        %v3705 = vpop.f32.mrf.mxu0
        %v3706 = vadd.f32 0.0, %v3705
        %v3707 = vpop.f32.mrf.mxu0
        %3708 = vmatprep.mubr.bf16.mxu0 0
        %3709 = vmatmul.mubr.bf16.gmra.mxu0 %v3568
        %v3710 = vpop.f32.mrf.mxu0
        %v3711 = vadd.f32 0.0, %v3710
        %v3712 = vpop.f32.mrf.mxu0
        %v3713 = vpop.f32.mrf.mxu0
        %v3714 = vadd.f32 0.0, %v3713
        %v3715 = vpop.f32.mrf.mxu0
        %3716 = vmatprep.mubr.bf16.mxu0 0
        %3717 = vmatmul.mubr.bf16.gmra.mxu0 %v3569
        %v3718 = vpop.f32.mrf.mxu0
        %v3719 = vadd.f32 0.0, %v3718
        %v3720 = vpop.f32.mrf.mxu0
        %v3721 = vpop.f32.mrf.mxu0
        %v3722 = vadd.f32 0.0, %v3721
        %v3723 = vpop.f32.mrf.mxu0
        %3724 = vmatprep.mubr.bf16.mxu0 0
        %3725 = vmatmul.mubr.bf16.gmra.mxu0 %v3570
        %v3726 = vpop.f32.mrf.mxu0
        %v3727 = vadd.f32 0.0, %v3726
        %v3728 = vpop.f32.mrf.mxu0
        %v3729 = vpop.f32.mrf.mxu0
        %v3730 = vadd.f32 0.0, %v3729
        %v3731 = vpop.f32.mrf.mxu0
        %3732 = vmatprep.mubr.bf16.mxu0 0
        %3733 = vmatmul.mubr.bf16.gmra.mxu0 %v3571
        %v3734 = vpop.f32.mrf.mxu0
        %v3735 = vadd.f32 0.0, %v3734
        %v3736 = vpop.f32.mrf.mxu0
        %v3737 = vpop.f32.mrf.mxu0
        %v3738 = vadd.f32 0.0, %v3737
        %v3739 = vpop.f32.mrf.mxu0
        %3740 = vmatprep.mubr.bf16.mxu0 0
        %3741 = vmatmul.mubr.bf16.gmra.mxu0 %v3572
        %v3742 = vpop.f32.mrf.mxu0
        %v3743 = vadd.f32 0.0, %v3742
        %v3744 = vpop.f32.mrf.mxu0
        %v3745 = vpop.f32.mrf.mxu0
        %v3746 = vadd.f32 0.0, %v3745
        %v3747 = vpop.f32.mrf.mxu0
        %3748 = vmatprep.mubr.bf16.mxu0 0
        %3749 = vmatmul.mubr.bf16.gmra.mxu0 %v3573
        %v3750 = vpop.f32.mrf.mxu0
        %v3751 = vadd.f32 0.0, %v3750
        %v3752 = vpop.f32.mrf.mxu0
        %v3753 = vpop.f32.mrf.mxu0
        %v3754 = vadd.f32 0.0, %v3753
        %v3755 = vpop.f32.mrf.mxu0
        %3756 = vmatprep.mubr.bf16.mxu0 0
        %3757 = vmatmul.mubr.bf16.gmra.mxu0 %v3574
        %v3758 = vpop.f32.mrf.mxu0
        %v3759 = vadd.f32 0.0, %v3758
        %v3760 = vpop.f32.mrf.mxu0
        %v3761 = vpop.f32.mrf.mxu0
        %v3762 = vadd.f32 0.0, %v3761
        %v3763 = vpop.f32.mrf.mxu0
        %3764 = vmatprep.mubr.bf16.mxu0 0
        %3765 = vmatmul.mubr.bf16.gmra.mxu0 %v3575
        %v3766 = vpop.f32.mrf.mxu0
        %v3767 = vadd.f32 0.0, %v3766
        %v3768 = vpop.f32.mrf.mxu0
        %v3769 = vpop.f32.mrf.mxu0
        %v3770 = vadd.f32 0.0, %v3769
        %v3771 = vpop.f32.mrf.mxu0
        %3772 = vmatprep.mubr.bf16.mxu0 0
        %3773 = vmatmul.mubr.bf16.gmra.mxu0 %v3576
        %v3774 = vpop.f32.mrf.mxu0
        %v3775 = vadd.f32 0.0, %v3774
        %v3776 = vpop.f32.mrf.mxu0
        %v3777 = vpop.f32.mrf.mxu0
        %v3778 = vadd.f32 0.0, %v3777
        %v3779 = vpop.f32.mrf.mxu0
        %3780 = vmatprep.mubr.bf16.mxu0 0
        %3781 = vmatmul.mubr.bf16.gmra.mxu0 %v3577
        %v3782 = vpop.f32.mrf.mxu0
        %v3783 = vadd.f32 0.0, %v3782
        %v3784 = vpop.f32.mrf.mxu0
        %v3785 = vpop.f32.mrf.mxu0
        %v3786 = vadd.f32 0.0, %v3785
        %v3787 = vpop.f32.mrf.mxu0
        %3788 = vmatprep.mubr.bf16.mxu0 0
        %3789 = vmatmul.mubr.bf16.gmra.mxu0 %v3578
        %v3790 = vpop.f32.mrf.mxu0
        %v3791 = vadd.f32 0.0, %v3790
        %v3792 = vpop.f32.mrf.mxu0
        %v3793 = vpop.f32.mrf.mxu0
        %v3794 = vadd.f32 0.0, %v3793
        %v3795 = vpop.f32.mrf.mxu0
        %3796 = vmatprep.mubr.bf16.mxu0 0
        %3797 = vmatmul.mubr.bf16.gmra.mxu0 %v3579
        %v3798 = vpop.f32.mrf.mxu0
        %v3799 = vadd.f32 0.0, %v3798
        %v3800 = vpop.f32.mrf.mxu0
        %v3801 = vpop.f32.mrf.mxu0
        %v3802 = vadd.f32 0.0, %v3801
        %v3803 = vpop.f32.mrf.mxu0
        %3804 = vdwg.mxu0
        %v3805 = vadd.f32 %v3418, %v3679
        %v3806 = vadd.f32 %v3419, %v3682
        %v3807 = vadd.f32 %v3420, %v3687
        %v3808 = vadd.f32 %v3421, %v3690
        %v3809 = vadd.f32 %v3422, %v3695
        %v3810 = vadd.f32 %v3423, %v3698
        %v3811 = vadd.f32 %v3424, %v3703
        %v3812 = vadd.f32 %v3425, %v3706
        %v3813 = vadd.f32 %v3426, %v3711
        %v3814 = vadd.f32 %v3427, %v3714
        %v3815 = vadd.f32 %v3428, %v3719
        %v3816 = vadd.f32 %v3429, %v3722
        %v3817 = vadd.f32 %v3430, %v3727
        %v3818 = vadd.f32 %v3431, %v3730
        %v3819 = vadd.f32 %v3432, %v3735
        %v3820 = vadd.f32 %v3433, %v3738
        %v3821 = vadd.f32 %v3434, %v3743
        %v3822 = vadd.f32 %v3435, %v3746
        %v3823 = vadd.f32 %v3436, %v3751
        %v3824 = vadd.f32 %v3437, %v3754
        %v3825 = vadd.f32 %v3438, %v3759
        %v3826 = vadd.f32 %v3439, %v3762
        %v3827 = vadd.f32 %v3440, %v3767
        %v3828 = vadd.f32 %v3441, %v3770
        %v3829 = vadd.f32 %v3442, %v3775
        %v3830 = vadd.f32 %v3443, %v3778
        %v3831 = vadd.f32 %v3444, %v3783
        %v3832 = vadd.f32 %v3445, %v3786
        %v3833 = vadd.f32 %v3446, %v3791
        %v3834 = vadd.f32 %v3447, %v3794
        %v3835 = vadd.f32 %v3448, %v3799
        %v3836 = vadd.f32 %v3449, %v3802
        %v3837 = vld [vmem:[%s3450] sm:$0xf]
        %v3838 = vld [vmem:[%s3450 + $0x4] sm:$0xf]
        %v3839 = vld [vmem:[%s3450 + $0x8] sm:$0x1]
        %v3840 = vld [vmem:[%s3450 + $0xc] sm:$0xf]
        %v3841 = vld [vmem:[%s3450 + $0x10] sm:$0xf]
        %v3842 = vld [vmem:[%s3450 + $0x14] sm:$0x1]
        %v3843 = vld [vmem:[%s3450 + $0x18] sm:$0xf]
        %v3844 = vld [vmem:[%s3450 + $0x1c] sm:$0xf]
        %v3845 = vld [vmem:[%s3450 + $0x20] sm:$0x1]
        %v3846 = vld [vmem:[%s3450 + $0x24] sm:$0xf]
        %v3847 = vld [vmem:[%s3450 + $0x28] sm:$0xf]
        %v3848 = vld [vmem:[%s3450 + $0x2c] sm:$0x1]
        %v3849 = vld [vmem:[%s3450 + $0x30] sm:$0xf]
        %v3850 = vld [vmem:[%s3450 + $0x34] sm:$0xf]
        %v3851 = vld [vmem:[%s3450 + $0x38] sm:$0x1]
        %v3852 = vld [vmem:[%s3450 + $0x3c] sm:$0xf]
        %v3853 = vld [vmem:[%s3450 + $0x40] sm:$0xf]
        %v3854 = vld [vmem:[%s3450 + $0x44] sm:$0x1]
        %v3855 = vld [vmem:[%s3450 + $0x48] sm:$0xf]
        %v3856 = vld [vmem:[%s3450 + $0x4c] sm:$0xf]
        %v3857 = vld [vmem:[%s3450 + $0x50] sm:$0x1]
        %v3858 = vld [vmem:[%s3450 + $0x54] sm:$0xf]
        %v3859 = vld [vmem:[%s3450 + $0x58] sm:$0xf]
        %v3860 = vld [vmem:[%s3450 + $0x5c] sm:$0x1]
        %v3861 = vld [vmem:[%s3450 + $0x60] sm:$0xf]
        %v3862 = vld [vmem:[%s3450 + $0x64] sm:$0xf]
        %v3863 = vld [vmem:[%s3450 + $0x68] sm:$0x1]
        %v3864 = vld [vmem:[%s3450 + $0x6c] sm:$0xf]
        %v3865 = vld [vmem:[%s3450 + $0x70] sm:$0xf]
        %v3866 = vld [vmem:[%s3450 + $0x74] sm:$0x1]
        %v3867 = vld [vmem:[%s3450 + $0x78] sm:$0xf]
        %v3868 = vld [vmem:[%s3450 + $0x7c] sm:$0xf]
        %v3869 = vld [vmem:[%s3450 + $0x80] sm:$0x1]
        %v3870 = vld [vmem:[%s3450 + $0x84] sm:$0xf]
        %v3871 = vld [vmem:[%s3450 + $0x88] sm:$0xf]
        %v3872 = vld [vmem:[%s3450 + $0x8c] sm:$0x1]
        %v3873 = vld [vmem:[%s3450 + $0x90] sm:$0xf]
        %v3874 = vld [vmem:[%s3450 + $0x94] sm:$0xf]
        %v3875 = vld [vmem:[%s3450 + $0x98] sm:$0x1]
        %v3876 = vld [vmem:[%s3450 + $0x9c] sm:$0xf]
        %v3877 = vld [vmem:[%s3450 + $0xa0] sm:$0xf]
        %v3878 = vld [vmem:[%s3450 + $0xa4] sm:$0x1]
        %v3879 = vld [vmem:[%s3450 + $0xa8] sm:$0xf]
        %v3880 = vld [vmem:[%s3450 + $0xac] sm:$0xf]
        %v3881 = vld [vmem:[%s3450 + $0xb0] sm:$0x1]
        %v3882 = vld [vmem:[%s3450 + $0xb4] sm:$0xf]
        %v3883 = vld [vmem:[%s3450 + $0xb8] sm:$0xf]
        %v3884 = vld [vmem:[%s3450 + $0xbc] sm:$0x1]
        %v3886 = vshrl.u32 %v3837, 16
        %v3888 = vrot.slane %v3886, 4
        %v3889 = vshll.u32 %v3837, 16
        %v3891 = vrot.slane %v3889, 5
        %v3892 = vor.u32 %v3888, %v3891
        %v3893 = vrot.slane %v3892, 4
        %v3895 = vshll.u32 %v3838, 16
        %v3897 = vrot.slane %v3895, 5
        %v3898 = vsel %vm346, %v3893, %v3897
        %v3899 = vshrl.u32 %v3838, 16
        %v3901 = vrot.slane %v3899, 4
        %v3902 = vor.u32 %v3901, %v3897
        %v3903 = vrot.slane %v3902, 4
        %v3905 = vshll.u32 %v3839, 16
        %v3907 = vrot.slane %v3905, 5
        %v3908 = vsel %vm346, %v3903, %v3907
        %v3910 = vshrl.u32 %v3840, 16
        %v3912 = vrot.slane %v3910, 4
        %v3913 = vshll.u32 %v3840, 16
        %v3915 = vrot.slane %v3913, 5
        %v3916 = vor.u32 %v3912, %v3915
        %v3917 = vrot.slane %v3916, 4
        %v3919 = vshll.u32 %v3841, 16
        %v3921 = vrot.slane %v3919, 5
        %v3922 = vsel %vm346, %v3917, %v3921
        %v3923 = vshrl.u32 %v3841, 16
        %v3925 = vrot.slane %v3923, 4
        %v3926 = vor.u32 %v3925, %v3921
        %v3927 = vrot.slane %v3926, 4
        %v3929 = vshll.u32 %v3842, 16
        %v3931 = vrot.slane %v3929, 5
        %v3932 = vsel %vm346, %v3927, %v3931
        %v3934 = vshrl.u32 %v3843, 16
        %v3936 = vrot.slane %v3934, 4
        %v3937 = vshll.u32 %v3843, 16
        %v3939 = vrot.slane %v3937, 5
        %v3940 = vor.u32 %v3936, %v3939
        %v3941 = vrot.slane %v3940, 4
        %v3943 = vshll.u32 %v3844, 16
        %v3945 = vrot.slane %v3943, 5
        %v3946 = vsel %vm346, %v3941, %v3945
        %v3947 = vshrl.u32 %v3844, 16
        %v3949 = vrot.slane %v3947, 4
        %v3950 = vor.u32 %v3949, %v3945
        %v3951 = vrot.slane %v3950, 4
        %v3953 = vshll.u32 %v3845, 16
        %v3955 = vrot.slane %v3953, 5
        %v3956 = vsel %vm346, %v3951, %v3955
        %v3958 = vshrl.u32 %v3846, 16
        %v3960 = vrot.slane %v3958, 4
        %v3961 = vshll.u32 %v3846, 16
        %v3963 = vrot.slane %v3961, 5
        %v3964 = vor.u32 %v3960, %v3963
        %v3965 = vrot.slane %v3964, 4
        %v3967 = vshll.u32 %v3847, 16
        %v3969 = vrot.slane %v3967, 5
        %v3970 = vsel %vm346, %v3965, %v3969
        %v3971 = vshrl.u32 %v3847, 16
        %v3973 = vrot.slane %v3971, 4
        %v3974 = vor.u32 %v3973, %v3969
        %v3975 = vrot.slane %v3974, 4
        %v3977 = vshll.u32 %v3848, 16
        %v3979 = vrot.slane %v3977, 5
        %v3980 = vsel %vm346, %v3975, %v3979
        %v3982 = vshrl.u32 %v3849, 16
        %v3984 = vrot.slane %v3982, 4
        %v3985 = vshll.u32 %v3849, 16
        %v3987 = vrot.slane %v3985, 5
        %v3988 = vor.u32 %v3984, %v3987
        %v3989 = vrot.slane %v3988, 4
        %v3991 = vshll.u32 %v3850, 16
        %v3993 = vrot.slane %v3991, 5
        %v3994 = vsel %vm346, %v3989, %v3993
        %v3995 = vshrl.u32 %v3850, 16
        %v3997 = vrot.slane %v3995, 4
        %v3998 = vor.u32 %v3997, %v3993
        %v3999 = vrot.slane %v3998, 4
        %v4001 = vshll.u32 %v3851, 16
        %v4003 = vrot.slane %v4001, 5
        %v4004 = vsel %vm346, %v3999, %v4003
        %v4006 = vshrl.u32 %v3852, 16
        %v4008 = vrot.slane %v4006, 4
        %v4009 = vshll.u32 %v3852, 16
        %v4011 = vrot.slane %v4009, 5
        %v4012 = vor.u32 %v4008, %v4011
        %v4013 = vrot.slane %v4012, 4
        %v4015 = vshll.u32 %v3853, 16
        %v4017 = vrot.slane %v4015, 5
        %v4018 = vsel %vm346, %v4013, %v4017
        %v4019 = vshrl.u32 %v3853, 16
        %v4021 = vrot.slane %v4019, 4
        %v4022 = vor.u32 %v4021, %v4017
        %v4023 = vrot.slane %v4022, 4
        %v4025 = vshll.u32 %v3854, 16
        %v4027 = vrot.slane %v4025, 5
        %v4028 = vsel %vm346, %v4023, %v4027
        %v4030 = vshrl.u32 %v3855, 16
        %v4032 = vrot.slane %v4030, 4
        %v4033 = vshll.u32 %v3855, 16
        %v4035 = vrot.slane %v4033, 5
        %v4036 = vor.u32 %v4032, %v4035
        %v4037 = vrot.slane %v4036, 4
        %v4039 = vshll.u32 %v3856, 16
        %v4041 = vrot.slane %v4039, 5
        %v4042 = vsel %vm346, %v4037, %v4041
        %v4043 = vshrl.u32 %v3856, 16
        %v4045 = vrot.slane %v4043, 4
        %v4046 = vor.u32 %v4045, %v4041
        %v4047 = vrot.slane %v4046, 4
        %v4049 = vshll.u32 %v3857, 16
        %v4051 = vrot.slane %v4049, 5
        %v4052 = vsel %vm346, %v4047, %v4051
        %v4054 = vshrl.u32 %v3858, 16
        %v4056 = vrot.slane %v4054, 4
        %v4057 = vshll.u32 %v3858, 16
        %v4059 = vrot.slane %v4057, 5
        %v4060 = vor.u32 %v4056, %v4059
        %v4061 = vrot.slane %v4060, 4
        %v4063 = vshll.u32 %v3859, 16
        %v4065 = vrot.slane %v4063, 5
        %v4066 = vsel %vm346, %v4061, %v4065
        %v4067 = vshrl.u32 %v3859, 16
        %v4069 = vrot.slane %v4067, 4
        %v4070 = vor.u32 %v4069, %v4065
        %v4071 = vrot.slane %v4070, 4
        %v4073 = vshll.u32 %v3860, 16
        %v4075 = vrot.slane %v4073, 5
        %v4076 = vsel %vm346, %v4071, %v4075
        %v4078 = vshrl.u32 %v3861, 16
        %v4080 = vrot.slane %v4078, 4
        %v4081 = vshll.u32 %v3861, 16
        %v4083 = vrot.slane %v4081, 5
        %v4084 = vor.u32 %v4080, %v4083
        %v4085 = vrot.slane %v4084, 4
        %v4087 = vshll.u32 %v3862, 16
        %v4089 = vrot.slane %v4087, 5
        %v4090 = vsel %vm346, %v4085, %v4089
        %v4091 = vshrl.u32 %v3862, 16
        %v4093 = vrot.slane %v4091, 4
        %v4094 = vor.u32 %v4093, %v4089
        %v4095 = vrot.slane %v4094, 4
        %v4097 = vshll.u32 %v3863, 16
        %v4099 = vrot.slane %v4097, 5
        %v4100 = vsel %vm346, %v4095, %v4099
        %v4102 = vshrl.u32 %v3864, 16
        %v4104 = vrot.slane %v4102, 4
        %v4105 = vshll.u32 %v3864, 16
        %v4107 = vrot.slane %v4105, 5
        %v4108 = vor.u32 %v4104, %v4107
        %v4109 = vrot.slane %v4108, 4
        %v4111 = vshll.u32 %v3865, 16
        %v4113 = vrot.slane %v4111, 5
        %v4114 = vsel %vm346, %v4109, %v4113
        %v4115 = vshrl.u32 %v3865, 16
        %v4117 = vrot.slane %v4115, 4
        %v4118 = vor.u32 %v4117, %v4113
        %v4119 = vrot.slane %v4118, 4
        %v4121 = vshll.u32 %v3866, 16
        %v4123 = vrot.slane %v4121, 5
        %v4124 = vsel %vm346, %v4119, %v4123
        %v4126 = vshrl.u32 %v3867, 16
        %v4128 = vrot.slane %v4126, 4
        %v4129 = vshll.u32 %v3867, 16
        %v4131 = vrot.slane %v4129, 5
        %v4132 = vor.u32 %v4128, %v4131
        %v4133 = vrot.slane %v4132, 4
        %v4135 = vshll.u32 %v3868, 16
        %v4137 = vrot.slane %v4135, 5
        %v4138 = vsel %vm346, %v4133, %v4137
        %v4139 = vshrl.u32 %v3868, 16
        %v4141 = vrot.slane %v4139, 4
        %v4142 = vor.u32 %v4141, %v4137
        %v4143 = vrot.slane %v4142, 4
        %v4145 = vshll.u32 %v3869, 16
        %v4147 = vrot.slane %v4145, 5
        %v4148 = vsel %vm346, %v4143, %v4147
        %v4150 = vshrl.u32 %v3870, 16
        %v4152 = vrot.slane %v4150, 4
        %v4153 = vshll.u32 %v3870, 16
        %v4155 = vrot.slane %v4153, 5
        %v4156 = vor.u32 %v4152, %v4155
        %v4157 = vrot.slane %v4156, 4
        %v4159 = vshll.u32 %v3871, 16
        %v4161 = vrot.slane %v4159, 5
        %v4162 = vsel %vm346, %v4157, %v4161
        %v4163 = vshrl.u32 %v3871, 16
        %v4165 = vrot.slane %v4163, 4
        %v4166 = vor.u32 %v4165, %v4161
        %v4167 = vrot.slane %v4166, 4
        %v4169 = vshll.u32 %v3872, 16
        %v4171 = vrot.slane %v4169, 5
        %v4172 = vsel %vm346, %v4167, %v4171
        %v4174 = vshrl.u32 %v3873, 16
        %v4176 = vrot.slane %v4174, 4
        %v4177 = vshll.u32 %v3873, 16
        %v4179 = vrot.slane %v4177, 5
        %v4180 = vor.u32 %v4176, %v4179
        %v4181 = vrot.slane %v4180, 4
        %v4183 = vshll.u32 %v3874, 16
        %v4185 = vrot.slane %v4183, 5
        %v4186 = vsel %vm346, %v4181, %v4185
        %v4187 = vshrl.u32 %v3874, 16
        %v4189 = vrot.slane %v4187, 4
        %v4190 = vor.u32 %v4189, %v4185
        %v4191 = vrot.slane %v4190, 4
        %v4193 = vshll.u32 %v3875, 16
        %v4195 = vrot.slane %v4193, 5
        %v4196 = vsel %vm346, %v4191, %v4195
        %v4198 = vshrl.u32 %v3876, 16
        %v4200 = vrot.slane %v4198, 4
        %v4201 = vshll.u32 %v3876, 16
        %v4203 = vrot.slane %v4201, 5
        %v4204 = vor.u32 %v4200, %v4203
        %v4205 = vrot.slane %v4204, 4
        %v4207 = vshll.u32 %v3877, 16
        %v4209 = vrot.slane %v4207, 5
        %v4210 = vsel %vm346, %v4205, %v4209
        %v4211 = vshrl.u32 %v3877, 16
        %v4213 = vrot.slane %v4211, 4
        %v4214 = vor.u32 %v4213, %v4209
        %v4215 = vrot.slane %v4214, 4
        %v4217 = vshll.u32 %v3878, 16
        %v4219 = vrot.slane %v4217, 5
        %v4220 = vsel %vm346, %v4215, %v4219
        %v4222 = vshrl.u32 %v3879, 16
        %v4224 = vrot.slane %v4222, 4
        %v4225 = vshll.u32 %v3879, 16
        %v4227 = vrot.slane %v4225, 5
        %v4228 = vor.u32 %v4224, %v4227
        %v4229 = vrot.slane %v4228, 4
        %v4231 = vshll.u32 %v3880, 16
        %v4233 = vrot.slane %v4231, 5
        %v4234 = vsel %vm346, %v4229, %v4233
        %v4235 = vshrl.u32 %v3880, 16
        %v4237 = vrot.slane %v4235, 4
        %v4238 = vor.u32 %v4237, %v4233
        %v4239 = vrot.slane %v4238, 4
        %v4241 = vshll.u32 %v3881, 16
        %v4243 = vrot.slane %v4241, 5
        %v4244 = vsel %vm346, %v4239, %v4243
        %v4246 = vshrl.u32 %v3882, 16
        %v4248 = vrot.slane %v4246, 4
        %v4249 = vshll.u32 %v3882, 16
        %v4251 = vrot.slane %v4249, 5
        %v4252 = vor.u32 %v4248, %v4251
        %v4253 = vrot.slane %v4252, 4
        %v4255 = vshll.u32 %v3883, 16
        %v4257 = vrot.slane %v4255, 5
        %v4258 = vsel %vm346, %v4253, %v4257
        %v4259 = vshrl.u32 %v3883, 16
        %v4261 = vrot.slane %v4259, 4
        %v4262 = vor.u32 %v4261, %v4257
        %v4263 = vrot.slane %v4262, 4
        %v4265 = vshll.u32 %v3884, 16
        %v4267 = vrot.slane %v4265, 5
        %v4268 = vsel %vm346, %v4263, %v4267
        %s4269 = scalar_lea.vmem %s271, 448
        %v4270 = vld [vmem:[%s4269] sm:$0xf]
        %v4271 = vld [vmem:[%s4269 + $0x4] sm:$0xf]
        %v4272 = vld [vmem:[%s4269 + $0x8] sm:$0xf]
        %v4273 = vld [vmem:[%s4269 + $0xc] sm:$0xf]
        %v4274 = vld [vmem:[%s4269 + $0x10] sm:$0xf]
        %v4275 = vld [vmem:[%s4269 + $0x14] sm:$0xf]
        %v4276 = vld [vmem:[%s4269 + $0x18] sm:$0xf]
        %v4277 = vld [vmem:[%s4269 + $0x1c] sm:$0xf]
        %v4278 = vld [vmem:[%s4269 + $0x20] sm:$0xf]
        %v4279 = vld [vmem:[%s4269 + $0x24] sm:$0xf]
        %v4280 = vld [vmem:[%s4269 + $0x28] sm:$0xf]
        %v4281 = vld [vmem:[%s4269 + $0x2c] sm:$0xf]
        %v4282 = vld [vmem:[%s4269 + $0x30] sm:$0xf]
        %v4283 = vld [vmem:[%s4269 + $0x34] sm:$0xf]
        %v4284 = vld [vmem:[%s4269 + $0x38] sm:$0xf]
        %v4285 = vld [vmem:[%s4269 + $0x3c] sm:$0xf]
        %v4286 = vunpack.c.l.b16 %v3898
        %v4287 = vunpack.c.l.b16 %v3908
        %v4288 = vunpack.c.l.b16 %v3922
        %v4289 = vunpack.c.l.b16 %v3932
        %v4290 = vunpack.c.l.b16 %v3946
        %v4291 = vunpack.c.l.b16 %v3956
        %v4292 = vunpack.c.l.b16 %v3970
        %v4293 = vunpack.c.l.b16 %v3980
        %v4294 = vunpack.c.l.b16 %v3994
        %v4295 = vunpack.c.l.b16 %v4004
        %v4296 = vunpack.c.l.b16 %v4018
        %v4297 = vunpack.c.l.b16 %v4028
        %v4298 = vunpack.c.l.b16 %v4042
        %v4299 = vunpack.c.l.b16 %v4052
        %v4300 = vunpack.c.l.b16 %v4066
        %v4301 = vunpack.c.l.b16 %v4076
        %v4302 = vunpack.c.l.b16 %v4090
        %v4303 = vunpack.c.l.b16 %v4100
        %v4304 = vunpack.c.l.b16 %v4114
        %v4305 = vunpack.c.l.b16 %v4124
        %v4306 = vunpack.c.l.b16 %v4138
        %v4307 = vunpack.c.l.b16 %v4148
        %v4308 = vunpack.c.l.b16 %v4162
        %v4309 = vunpack.c.l.b16 %v4172
        %v4310 = vunpack.c.l.b16 %v4186
        %v4311 = vunpack.c.l.b16 %v4196
        %v4312 = vunpack.c.l.b16 %v4210
        %v4313 = vunpack.c.l.b16 %v4220
        %v4314 = vunpack.c.l.b16 %v4234
        %v4315 = vunpack.c.l.b16 %v4244
        %v4316 = vunpack.c.l.b16 %v4258
        %v4317 = vunpack.c.l.b16 %v4268
        %v4318 = vpack.c.b16 %v4287, %v4286
        %v4319 = vpack.c.b16 %v4289, %v4288
        %v4320 = vpack.c.b16 %v4291, %v4290
        %v4321 = vpack.c.b16 %v4293, %v4292
        %v4322 = vpack.c.b16 %v4295, %v4294
        %v4323 = vpack.c.b16 %v4297, %v4296
        %v4324 = vpack.c.b16 %v4299, %v4298
        %v4325 = vpack.c.b16 %v4301, %v4300
        %v4326 = vpack.c.b16 %v4303, %v4302
        %v4327 = vpack.c.b16 %v4305, %v4304
        %v4328 = vpack.c.b16 %v4307, %v4306
        %v4329 = vpack.c.b16 %v4309, %v4308
        %v4330 = vpack.c.b16 %v4311, %v4310
        %v4331 = vpack.c.b16 %v4313, %v4312
        %v4332 = vpack.c.b16 %v4315, %v4314
        %v4333 = vpack.c.b16 %v4317, %v4316
        %v4366 = vunpack.c.l.b16 %v4270
        %v4367 = vunpack.c.l.b16 %v4271
        %v4368 = vunpack.c.l.b16 %v4272
        %v4369 = vunpack.c.l.b16 %v4273
        %v4370 = vunpack.c.l.b16 %v4274
        %v4371 = vunpack.c.l.b16 %v4275
        %v4372 = vunpack.c.l.b16 %v4276
        %v4373 = vunpack.c.l.b16 %v4277
        %v4374 = vunpack.c.l.b16 %v4278
        %v4375 = vunpack.c.l.b16 %v4279
        %v4376 = vunpack.c.l.b16 %v4280
        %v4377 = vunpack.c.l.b16 %v4281
        %v4378 = vunpack.c.l.b16 %v4282
        %v4379 = vunpack.c.l.b16 %v4283
        %v4380 = vunpack.c.l.b16 %v4284
        %v4381 = vunpack.c.l.b16 %v4285
        %v4382 = vpack.c.b16 %v4367, %v4366
        %v4383 = vpack.c.b16 %v4369, %v4368
        %v4384 = vpack.c.b16 %v4371, %v4370
        %v4385 = vpack.c.b16 %v4373, %v4372
        %v4386 = vpack.c.b16 %v4375, %v4374
        %v4387 = vpack.c.b16 %v4377, %v4376
        %v4388 = vpack.c.b16 %v4379, %v4378
        %v4389 = vpack.c.b16 %v4381, %v4380
        %4398 = vmatprep.subr.bf16.mxu0 0
        %4399 = vmatpush1.bf16.msra.mxu0 %v4389
        %4400 = vmatprep.subr.bf16.mxu0 0
        %4401 = vmatpush1.bf16.msra.mxu0 %v4388
        %4402 = vmatprep.subr.bf16.mxu0 0
        %4403 = vmatpush1.bf16.msra.mxu0 %v4387
        %4404 = vmatprep.subr.bf16.mxu0 0
        %4405 = vmatpush1.bf16.msra.mxu0 %v4386
        %4406 = vmatprep.subr.bf16.mxu0 0
        %4407 = vmatpush1.bf16.msra.mxu0 %v4385
        %4408 = vmatprep.subr.bf16.mxu0 0
        %4409 = vmatpush1.bf16.msra.mxu0 %v4384
        %4410 = vmatprep.subr.bf16.mxu0 0
        %4411 = vmatpush1.bf16.msra.mxu0 %v4383
        %4412 = vmatprep.subr.bf16.mxu0 0
        %4413 = vmatpush1.bf16.msra.mxu0 %v4382
        %4414 = vmatprep.subr.bf16.mxu0 0
        %4415 = vmatpush2.bf16.msra.mxu0 0
        %4416 = vmatprep.subr.bf16.mxu0 0
        %4417 = vmatpush2.bf16.msra.mxu0 0
        %4418 = vmatprep.subr.bf16.mxu0 0
        %4419 = vmatpush2.bf16.msra.mxu0 0
        %4420 = vmatprep.subr.bf16.mxu0 0
        %4421 = vmatpush2.bf16.msra.mxu0 0
        %4422 = vmatprep.subr.bf16.mxu0 0
        %4423 = vmatpush2.bf16.msra.mxu0 0
        %4424 = vmatprep.subr.bf16.mxu0 0
        %4425 = vmatpush2.bf16.msra.mxu0 0
        %4426 = vmatprep.subr.bf16.mxu0 0
        %4427 = vmatpush2.bf16.msra.mxu0 0
        %4428 = vmatprep.subr.bf16.mxu0 0
        %4429 = vmatpush2.bf16.msra.mxu0 0
        %4430 = vmatprep.mubr.bf16.mxu0 0
        %4431 = vmatmul.mubr.bf16.gmra.mxu0 %v4318
        %v4432 = vpop.f32.mrf.mxu0
        %v4433 = vadd.f32 0.0, %v4432
        %v4434 = vpop.f32.mrf.mxu0
        %v4435 = vpop.f32.mrf.mxu0
        %v4436 = vadd.f32 0.0, %v4435
        %v4437 = vpop.f32.mrf.mxu0
        %4438 = vmatprep.mubr.bf16.mxu0 0
        %4439 = vmatmul.mubr.bf16.gmra.mxu0 %v4319
        %v4440 = vpop.f32.mrf.mxu0
        %v4441 = vadd.f32 0.0, %v4440
        %v4442 = vpop.f32.mrf.mxu0
        %v4443 = vpop.f32.mrf.mxu0
        %v4444 = vadd.f32 0.0, %v4443
        %v4445 = vpop.f32.mrf.mxu0
        %4446 = vmatprep.mubr.bf16.mxu0 0
        %4447 = vmatmul.mubr.bf16.gmra.mxu0 %v4320
        %v4448 = vpop.f32.mrf.mxu0
        %v4449 = vadd.f32 0.0, %v4448
        %v4450 = vpop.f32.mrf.mxu0
        %v4451 = vpop.f32.mrf.mxu0
        %v4452 = vadd.f32 0.0, %v4451
        %v4453 = vpop.f32.mrf.mxu0
        %4454 = vmatprep.mubr.bf16.mxu0 0
        %4455 = vmatmul.mubr.bf16.gmra.mxu0 %v4321
        %v4456 = vpop.f32.mrf.mxu0
        %v4457 = vadd.f32 0.0, %v4456
        %v4458 = vpop.f32.mrf.mxu0
        %v4459 = vpop.f32.mrf.mxu0
        %v4460 = vadd.f32 0.0, %v4459
        %v4461 = vpop.f32.mrf.mxu0
        %4462 = vmatprep.mubr.bf16.mxu0 0
        %4463 = vmatmul.mubr.bf16.gmra.mxu0 %v4322
        %v4464 = vpop.f32.mrf.mxu0
        %v4465 = vadd.f32 0.0, %v4464
        %v4466 = vpop.f32.mrf.mxu0
        %v4467 = vpop.f32.mrf.mxu0
        %v4468 = vadd.f32 0.0, %v4467
        %v4469 = vpop.f32.mrf.mxu0
        %4470 = vmatprep.mubr.bf16.mxu0 0
        %4471 = vmatmul.mubr.bf16.gmra.mxu0 %v4323
        %v4472 = vpop.f32.mrf.mxu0
        %v4473 = vadd.f32 0.0, %v4472
        %v4474 = vpop.f32.mrf.mxu0
        %v4475 = vpop.f32.mrf.mxu0
        %v4476 = vadd.f32 0.0, %v4475
        %v4477 = vpop.f32.mrf.mxu0
        %4478 = vmatprep.mubr.bf16.mxu0 0
        %4479 = vmatmul.mubr.bf16.gmra.mxu0 %v4324
        %v4480 = vpop.f32.mrf.mxu0
        %v4481 = vadd.f32 0.0, %v4480
        %v4482 = vpop.f32.mrf.mxu0
        %v4483 = vpop.f32.mrf.mxu0
        %v4484 = vadd.f32 0.0, %v4483
        %v4485 = vpop.f32.mrf.mxu0
        %4486 = vmatprep.mubr.bf16.mxu0 0
        %4487 = vmatmul.mubr.bf16.gmra.mxu0 %v4325
        %v4488 = vpop.f32.mrf.mxu0
        %v4489 = vadd.f32 0.0, %v4488
        %v4490 = vpop.f32.mrf.mxu0
        %v4491 = vpop.f32.mrf.mxu0
        %v4492 = vadd.f32 0.0, %v4491
        %v4493 = vpop.f32.mrf.mxu0
        %4494 = vmatprep.mubr.bf16.mxu0 0
        %4495 = vmatmul.mubr.bf16.gmra.mxu0 %v4326
        %v4496 = vpop.f32.mrf.mxu0
        %v4497 = vadd.f32 0.0, %v4496
        %v4498 = vpop.f32.mrf.mxu0
        %v4499 = vpop.f32.mrf.mxu0
        %v4500 = vadd.f32 0.0, %v4499
        %v4501 = vpop.f32.mrf.mxu0
        %4502 = vmatprep.mubr.bf16.mxu0 0
        %4503 = vmatmul.mubr.bf16.gmra.mxu0 %v4327
        %v4504 = vpop.f32.mrf.mxu0
        %v4505 = vadd.f32 0.0, %v4504
        %v4506 = vpop.f32.mrf.mxu0
        %v4507 = vpop.f32.mrf.mxu0
        %v4508 = vadd.f32 0.0, %v4507
        %v4509 = vpop.f32.mrf.mxu0
        %4510 = vmatprep.mubr.bf16.mxu0 0
        %4511 = vmatmul.mubr.bf16.gmra.mxu0 %v4328
        %v4512 = vpop.f32.mrf.mxu0
        %v4513 = vadd.f32 0.0, %v4512
        %v4514 = vpop.f32.mrf.mxu0
        %v4515 = vpop.f32.mrf.mxu0
        %v4516 = vadd.f32 0.0, %v4515
        %v4517 = vpop.f32.mrf.mxu0
        %4518 = vmatprep.mubr.bf16.mxu0 0
        %4519 = vmatmul.mubr.bf16.gmra.mxu0 %v4329
        %v4520 = vpop.f32.mrf.mxu0
        %v4521 = vadd.f32 0.0, %v4520
        %v4522 = vpop.f32.mrf.mxu0
        %v4523 = vpop.f32.mrf.mxu0
        %v4524 = vadd.f32 0.0, %v4523
        %v4525 = vpop.f32.mrf.mxu0
        %4526 = vmatprep.mubr.bf16.mxu0 0
        %4527 = vmatmul.mubr.bf16.gmra.mxu0 %v4330
        %v4528 = vpop.f32.mrf.mxu0
        %v4529 = vadd.f32 0.0, %v4528
        %v4530 = vpop.f32.mrf.mxu0
        %v4531 = vpop.f32.mrf.mxu0
        %v4532 = vadd.f32 0.0, %v4531
        %v4533 = vpop.f32.mrf.mxu0
        %4534 = vmatprep.mubr.bf16.mxu0 0
        %4535 = vmatmul.mubr.bf16.gmra.mxu0 %v4331
        %v4536 = vpop.f32.mrf.mxu0
        %v4537 = vadd.f32 0.0, %v4536
        %v4538 = vpop.f32.mrf.mxu0
        %v4539 = vpop.f32.mrf.mxu0
        %v4540 = vadd.f32 0.0, %v4539
        %v4541 = vpop.f32.mrf.mxu0
        %4542 = vmatprep.mubr.bf16.mxu0 0
        %4543 = vmatmul.mubr.bf16.gmra.mxu0 %v4332
        %v4544 = vpop.f32.mrf.mxu0
        %v4545 = vadd.f32 0.0, %v4544
        %v4546 = vpop.f32.mrf.mxu0
        %v4547 = vpop.f32.mrf.mxu0
        %v4548 = vadd.f32 0.0, %v4547
        %v4549 = vpop.f32.mrf.mxu0
        %4550 = vmatprep.mubr.bf16.mxu0 0
        %4551 = vmatmul.mubr.bf16.gmra.mxu0 %v4333
        %v4552 = vpop.f32.mrf.mxu0
        %v4553 = vadd.f32 0.0, %v4552
        %v4554 = vpop.f32.mrf.mxu0
        %v4555 = vpop.f32.mrf.mxu0
        %v4556 = vadd.f32 0.0, %v4555
        %v4557 = vpop.f32.mrf.mxu0
        %4558 = vdwg.mxu0
        %v4559 = vadd.f32 %v3805, %v4433
        %v4560 = vadd.f32 %v3806, %v4436
        %v4561 = vadd.f32 %v3807, %v4441
        %v4562 = vadd.f32 %v3808, %v4444
        %v4563 = vadd.f32 %v3809, %v4449
        %v4564 = vadd.f32 %v3810, %v4452
        %v4565 = vadd.f32 %v3811, %v4457
        %v4566 = vadd.f32 %v3812, %v4460
        %v4567 = vadd.f32 %v3813, %v4465
        %v4568 = vadd.f32 %v3814, %v4468
        %v4569 = vadd.f32 %v3815, %v4473
        %v4570 = vadd.f32 %v3816, %v4476
        %v4571 = vadd.f32 %v3817, %v4481
        %v4572 = vadd.f32 %v3818, %v4484
        %v4573 = vadd.f32 %v3819, %v4489
        %v4574 = vadd.f32 %v3820, %v4492
        %v4575 = vadd.f32 %v3821, %v4497
        %v4576 = vadd.f32 %v3822, %v4500
        %v4577 = vadd.f32 %v3823, %v4505
        %v4578 = vadd.f32 %v3824, %v4508
        %v4579 = vadd.f32 %v3825, %v4513
        %v4580 = vadd.f32 %v3826, %v4516
        %v4581 = vadd.f32 %v3827, %v4521
        %v4582 = vadd.f32 %v3828, %v4524
        %v4583 = vadd.f32 %v3829, %v4529
        %v4584 = vadd.f32 %v3830, %v4532
        %v4585 = vadd.f32 %v3831, %v4537
        %v4586 = vadd.f32 %v3832, %v4540
        %v4587 = vadd.f32 %v3833, %v4545
        %v4588 = vadd.f32 %v3834, %v4548
        %v4589 = vadd.f32 %v3835, %v4553
        %v4590 = vadd.f32 %v3836, %v4556
        %v4591 = vld [vmem:[%s3450] sm:$0xe]
        %v4592 = vld [vmem:[%s3450 + $0xc] sm:$0xe]
        %v4593 = vld [vmem:[%s3450 + $0x18] sm:$0xe]
        %v4594 = vld [vmem:[%s3450 + $0x24] sm:$0xe]
        %v4595 = vld [vmem:[%s3450 + $0x30] sm:$0xe]
        %v4596 = vld [vmem:[%s3450 + $0x3c] sm:$0xe]
        %v4597 = vld [vmem:[%s3450 + $0x48] sm:$0xe]
        %v4598 = vld [vmem:[%s3450 + $0x54] sm:$0xe]
        %v4599 = vld [vmem:[%s3450 + $0x60] sm:$0xe]
        %v4600 = vld [vmem:[%s3450 + $0x6c] sm:$0xe]
        %v4601 = vld [vmem:[%s3450 + $0x78] sm:$0xe]
        %v4602 = vld [vmem:[%s3450 + $0x84] sm:$0xe]
        %v4603 = vld [vmem:[%s3450 + $0x90] sm:$0xe]
        %v4604 = vld [vmem:[%s3450 + $0x9c] sm:$0xe]
        %v4605 = vld [vmem:[%s3450 + $0xa8] sm:$0xe]
        %v4606 = vld [vmem:[%s3450 + $0xb4] sm:$0xe]
        %v4655 = vrot.slane %v4591, 5
        %v4656 = vrot.slane %v4655, 4
        %v4657 = vrot.slane %v3838, 5
        %v4658 = vsel %vm1376, %v4656, %v4657
        %v4659 = vrot.slane %v4657, 4
        %v4660 = vrot.slane %v3839, 5
        %v4661 = vsel %vm1376, %v4659, %v4660
        %v4662 = vrot.slane %v4592, 5
        %v4663 = vrot.slane %v4662, 4
        %v4664 = vrot.slane %v3841, 5
        %v4665 = vsel %vm1376, %v4663, %v4664
        %v4666 = vrot.slane %v4664, 4
        %v4667 = vrot.slane %v3842, 5
        %v4668 = vsel %vm1376, %v4666, %v4667
        %v4669 = vrot.slane %v4593, 5
        %v4670 = vrot.slane %v4669, 4
        %v4671 = vrot.slane %v3844, 5
        %v4672 = vsel %vm1376, %v4670, %v4671
        %v4673 = vrot.slane %v4671, 4
        %v4674 = vrot.slane %v3845, 5
        %v4675 = vsel %vm1376, %v4673, %v4674
        %v4676 = vrot.slane %v4594, 5
        %v4677 = vrot.slane %v4676, 4
        %v4678 = vrot.slane %v3847, 5
        %v4679 = vsel %vm1376, %v4677, %v4678
        %v4680 = vrot.slane %v4678, 4
        %v4681 = vrot.slane %v3848, 5
        %v4682 = vsel %vm1376, %v4680, %v4681
        %v4683 = vrot.slane %v4595, 5
        %v4684 = vrot.slane %v4683, 4
        %v4685 = vrot.slane %v3850, 5
        %v4686 = vsel %vm1376, %v4684, %v4685
        %v4687 = vrot.slane %v4685, 4
        %v4688 = vrot.slane %v3851, 5
        %v4689 = vsel %vm1376, %v4687, %v4688
        %v4690 = vrot.slane %v4596, 5
        %v4691 = vrot.slane %v4690, 4
        %v4692 = vrot.slane %v3853, 5
        %v4693 = vsel %vm1376, %v4691, %v4692
        %v4694 = vrot.slane %v4692, 4
        %v4695 = vrot.slane %v3854, 5
        %v4696 = vsel %vm1376, %v4694, %v4695
        %v4697 = vrot.slane %v4597, 5
        %v4698 = vrot.slane %v4697, 4
        %v4699 = vrot.slane %v3856, 5
        %v4700 = vsel %vm1376, %v4698, %v4699
        %v4701 = vrot.slane %v4699, 4
        %v4702 = vrot.slane %v3857, 5
        %v4703 = vsel %vm1376, %v4701, %v4702
        %v4704 = vrot.slane %v4598, 5
        %v4705 = vrot.slane %v4704, 4
        %v4706 = vrot.slane %v3859, 5
        %v4707 = vsel %vm1376, %v4705, %v4706
        %v4708 = vrot.slane %v4706, 4
        %v4709 = vrot.slane %v3860, 5
        %v4710 = vsel %vm1376, %v4708, %v4709
        %v4711 = vrot.slane %v4599, 5
        %v4712 = vrot.slane %v4711, 4
        %v4713 = vrot.slane %v3862, 5
        %v4714 = vsel %vm1376, %v4712, %v4713
        %v4715 = vrot.slane %v4713, 4
        %v4716 = vrot.slane %v3863, 5
        %v4717 = vsel %vm1376, %v4715, %v4716
        %v4718 = vrot.slane %v4600, 5
        %v4719 = vrot.slane %v4718, 4
        %v4720 = vrot.slane %v3865, 5
        %v4721 = vsel %vm1376, %v4719, %v4720
        %v4722 = vrot.slane %v4720, 4
        %v4723 = vrot.slane %v3866, 5
        %v4724 = vsel %vm1376, %v4722, %v4723
        %v4725 = vrot.slane %v4601, 5
        %v4726 = vrot.slane %v4725, 4
        %v4727 = vrot.slane %v3868, 5
        %v4728 = vsel %vm1376, %v4726, %v4727
        %v4729 = vrot.slane %v4727, 4
        %v4730 = vrot.slane %v3869, 5
        %v4731 = vsel %vm1376, %v4729, %v4730
        %v4732 = vrot.slane %v4602, 5
        %v4733 = vrot.slane %v4732, 4
        %v4734 = vrot.slane %v3871, 5
        %v4735 = vsel %vm1376, %v4733, %v4734
        %v4736 = vrot.slane %v4734, 4
        %v4737 = vrot.slane %v3872, 5
        %v4738 = vsel %vm1376, %v4736, %v4737
        %v4739 = vrot.slane %v4603, 5
        %v4740 = vrot.slane %v4739, 4
        %v4741 = vrot.slane %v3874, 5
        %v4742 = vsel %vm1376, %v4740, %v4741
        %v4743 = vrot.slane %v4741, 4
        %v4744 = vrot.slane %v3875, 5
        %v4745 = vsel %vm1376, %v4743, %v4744
        %v4746 = vrot.slane %v4604, 5
        %v4747 = vrot.slane %v4746, 4
        %v4748 = vrot.slane %v3877, 5
        %v4749 = vsel %vm1376, %v4747, %v4748
        %v4750 = vrot.slane %v4748, 4
        %v4751 = vrot.slane %v3878, 5
        %v4752 = vsel %vm1376, %v4750, %v4751
        %v4753 = vrot.slane %v4605, 5
        %v4754 = vrot.slane %v4753, 4
        %v4755 = vrot.slane %v3880, 5
        %v4756 = vsel %vm1376, %v4754, %v4755
        %v4757 = vrot.slane %v4755, 4
        %v4758 = vrot.slane %v3881, 5
        %v4759 = vsel %vm1376, %v4757, %v4758
        %v4760 = vrot.slane %v4606, 5
        %v4761 = vrot.slane %v4760, 4
        %v4762 = vrot.slane %v3883, 5
        %v4763 = vsel %vm1376, %v4761, %v4762
        %v4764 = vrot.slane %v4762, 4
        %v4765 = vrot.slane %v3884, 5
        %v4766 = vsel %vm1376, %v4764, %v4765
        %s4767 = scalar_lea.vmem %s271, 512
        %v4768 = vld [vmem:[%s4767] sm:$0xf]
        %v4769 = vld [vmem:[%s4767 + $0x4] sm:$0xf]
        %v4770 = vld [vmem:[%s4767 + $0x8] sm:$0xf]
        %v4771 = vld [vmem:[%s4767 + $0xc] sm:$0xf]
        %v4772 = vld [vmem:[%s4767 + $0x10] sm:$0xf]
        %v4773 = vld [vmem:[%s4767 + $0x14] sm:$0xf]
        %v4774 = vld [vmem:[%s4767 + $0x18] sm:$0xf]
        %v4775 = vld [vmem:[%s4767 + $0x1c] sm:$0xf]
        %v4776 = vld [vmem:[%s4767 + $0x20] sm:$0xf]
        %v4777 = vld [vmem:[%s4767 + $0x24] sm:$0xf]
        %v4778 = vld [vmem:[%s4767 + $0x28] sm:$0xf]
        %v4779 = vld [vmem:[%s4767 + $0x2c] sm:$0xf]
        %v4780 = vld [vmem:[%s4767 + $0x30] sm:$0xf]
        %v4781 = vld [vmem:[%s4767 + $0x34] sm:$0xf]
        %v4782 = vld [vmem:[%s4767 + $0x38] sm:$0xf]
        %v4783 = vld [vmem:[%s4767 + $0x3c] sm:$0xf]
        %v4784 = vunpack.c.l.b16 %v4658
        %v4785 = vunpack.c.l.b16 %v4661
        %v4786 = vunpack.c.l.b16 %v4665
        %v4787 = vunpack.c.l.b16 %v4668
        %v4788 = vunpack.c.l.b16 %v4672
        %v4789 = vunpack.c.l.b16 %v4675
        %v4790 = vunpack.c.l.b16 %v4679
        %v4791 = vunpack.c.l.b16 %v4682
        %v4792 = vunpack.c.l.b16 %v4686
        %v4793 = vunpack.c.l.b16 %v4689
        %v4794 = vunpack.c.l.b16 %v4693
        %v4795 = vunpack.c.l.b16 %v4696
        %v4796 = vunpack.c.l.b16 %v4700
        %v4797 = vunpack.c.l.b16 %v4703
        %v4798 = vunpack.c.l.b16 %v4707
        %v4799 = vunpack.c.l.b16 %v4710
        %v4800 = vunpack.c.l.b16 %v4714
        %v4801 = vunpack.c.l.b16 %v4717
        %v4802 = vunpack.c.l.b16 %v4721
        %v4803 = vunpack.c.l.b16 %v4724
        %v4804 = vunpack.c.l.b16 %v4728
        %v4805 = vunpack.c.l.b16 %v4731
        %v4806 = vunpack.c.l.b16 %v4735
        %v4807 = vunpack.c.l.b16 %v4738
        %v4808 = vunpack.c.l.b16 %v4742
        %v4809 = vunpack.c.l.b16 %v4745
        %v4810 = vunpack.c.l.b16 %v4749
        %v4811 = vunpack.c.l.b16 %v4752
        %v4812 = vunpack.c.l.b16 %v4756
        %v4813 = vunpack.c.l.b16 %v4759
        %v4814 = vunpack.c.l.b16 %v4763
        %v4815 = vunpack.c.l.b16 %v4766
        %v4816 = vpack.c.b16 %v4785, %v4784
        %v4817 = vpack.c.b16 %v4787, %v4786
        %v4818 = vpack.c.b16 %v4789, %v4788
        %v4819 = vpack.c.b16 %v4791, %v4790
        %v4820 = vpack.c.b16 %v4793, %v4792
        %v4821 = vpack.c.b16 %v4795, %v4794
        %v4822 = vpack.c.b16 %v4797, %v4796
        %v4823 = vpack.c.b16 %v4799, %v4798
        %v4824 = vpack.c.b16 %v4801, %v4800
        %v4825 = vpack.c.b16 %v4803, %v4802
        %v4826 = vpack.c.b16 %v4805, %v4804
        %v4827 = vpack.c.b16 %v4807, %v4806
        %v4828 = vpack.c.b16 %v4809, %v4808
        %v4829 = vpack.c.b16 %v4811, %v4810
        %v4830 = vpack.c.b16 %v4813, %v4812
        %v4831 = vpack.c.b16 %v4815, %v4814
        %v4864 = vunpack.c.l.b16 %v4768
        %v4865 = vunpack.c.l.b16 %v4769
        %v4866 = vunpack.c.l.b16 %v4770
        %v4867 = vunpack.c.l.b16 %v4771
        %v4868 = vunpack.c.l.b16 %v4772
        %v4869 = vunpack.c.l.b16 %v4773
        %v4870 = vunpack.c.l.b16 %v4774
        %v4871 = vunpack.c.l.b16 %v4775
        %v4872 = vunpack.c.l.b16 %v4776
        %v4873 = vunpack.c.l.b16 %v4777
        %v4874 = vunpack.c.l.b16 %v4778
        %v4875 = vunpack.c.l.b16 %v4779
        %v4876 = vunpack.c.l.b16 %v4780
        %v4877 = vunpack.c.l.b16 %v4781
        %v4878 = vunpack.c.l.b16 %v4782
        %v4879 = vunpack.c.l.b16 %v4783
        %v4880 = vpack.c.b16 %v4865, %v4864
        %v4881 = vpack.c.b16 %v4867, %v4866
        %v4882 = vpack.c.b16 %v4869, %v4868
        %v4883 = vpack.c.b16 %v4871, %v4870
        %v4884 = vpack.c.b16 %v4873, %v4872
        %v4885 = vpack.c.b16 %v4875, %v4874
        %v4886 = vpack.c.b16 %v4877, %v4876
        %v4887 = vpack.c.b16 %v4879, %v4878
        %4896 = vmatprep.subr.bf16.mxu0 0
        %4897 = vmatpush1.bf16.msra.mxu0 %v4887
        %4898 = vmatprep.subr.bf16.mxu0 0
        %4899 = vmatpush1.bf16.msra.mxu0 %v4886
        %4900 = vmatprep.subr.bf16.mxu0 0
        %4901 = vmatpush1.bf16.msra.mxu0 %v4885
        %4902 = vmatprep.subr.bf16.mxu0 0
        %4903 = vmatpush1.bf16.msra.mxu0 %v4884
        %4904 = vmatprep.subr.bf16.mxu0 0
        %4905 = vmatpush1.bf16.msra.mxu0 %v4883
        %4906 = vmatprep.subr.bf16.mxu0 0
        %4907 = vmatpush1.bf16.msra.mxu0 %v4882
        %4908 = vmatprep.subr.bf16.mxu0 0
        %4909 = vmatpush1.bf16.msra.mxu0 %v4881
        %4910 = vmatprep.subr.bf16.mxu0 0
        %4911 = vmatpush1.bf16.msra.mxu0 %v4880
        %4912 = vmatprep.subr.bf16.mxu0 0
        %4913 = vmatpush2.bf16.msra.mxu0 0
        %4914 = vmatprep.subr.bf16.mxu0 0
        %4915 = vmatpush2.bf16.msra.mxu0 0
        %4916 = vmatprep.subr.bf16.mxu0 0
        %4917 = vmatpush2.bf16.msra.mxu0 0
        %4918 = vmatprep.subr.bf16.mxu0 0
        %4919 = vmatpush2.bf16.msra.mxu0 0
        %4920 = vmatprep.subr.bf16.mxu0 0
        %4921 = vmatpush2.bf16.msra.mxu0 0
        %4922 = vmatprep.subr.bf16.mxu0 0
        %4923 = vmatpush2.bf16.msra.mxu0 0
        %4924 = vmatprep.subr.bf16.mxu0 0
        %4925 = vmatpush2.bf16.msra.mxu0 0
        %4926 = vmatprep.subr.bf16.mxu0 0
        %4927 = vmatpush2.bf16.msra.mxu0 0
        %4928 = vmatprep.mubr.bf16.mxu0 0
        %4929 = vmatmul.mubr.bf16.gmra.mxu0 %v4816
        %v4930 = vpop.f32.mrf.mxu0
        %v4931 = vadd.f32 0.0, %v4930
        %v4932 = vpop.f32.mrf.mxu0
        %v4933 = vpop.f32.mrf.mxu0
        %v4934 = vadd.f32 0.0, %v4933
        %v4935 = vpop.f32.mrf.mxu0
        %4936 = vmatprep.mubr.bf16.mxu0 0
        %4937 = vmatmul.mubr.bf16.gmra.mxu0 %v4817
        %v4938 = vpop.f32.mrf.mxu0
        %v4939 = vadd.f32 0.0, %v4938
        %v4940 = vpop.f32.mrf.mxu0
        %v4941 = vpop.f32.mrf.mxu0
        %v4942 = vadd.f32 0.0, %v4941
        %v4943 = vpop.f32.mrf.mxu0
        %4944 = vmatprep.mubr.bf16.mxu0 0
        %4945 = vmatmul.mubr.bf16.gmra.mxu0 %v4818
        %v4946 = vpop.f32.mrf.mxu0
        %v4947 = vadd.f32 0.0, %v4946
        %v4948 = vpop.f32.mrf.mxu0
        %v4949 = vpop.f32.mrf.mxu0
        %v4950 = vadd.f32 0.0, %v4949
        %v4951 = vpop.f32.mrf.mxu0
        %4952 = vmatprep.mubr.bf16.mxu0 0
        %4953 = vmatmul.mubr.bf16.gmra.mxu0 %v4819
        %v4954 = vpop.f32.mrf.mxu0
        %v4955 = vadd.f32 0.0, %v4954
        %v4956 = vpop.f32.mrf.mxu0
        %v4957 = vpop.f32.mrf.mxu0
        %v4958 = vadd.f32 0.0, %v4957
        %v4959 = vpop.f32.mrf.mxu0
        %4960 = vmatprep.mubr.bf16.mxu0 0
        %4961 = vmatmul.mubr.bf16.gmra.mxu0 %v4820
        %v4962 = vpop.f32.mrf.mxu0
        %v4963 = vadd.f32 0.0, %v4962
        %v4964 = vpop.f32.mrf.mxu0
        %v4965 = vpop.f32.mrf.mxu0
        %v4966 = vadd.f32 0.0, %v4965
        %v4967 = vpop.f32.mrf.mxu0
        %4968 = vmatprep.mubr.bf16.mxu0 0
        %4969 = vmatmul.mubr.bf16.gmra.mxu0 %v4821
        %v4970 = vpop.f32.mrf.mxu0
        %v4971 = vadd.f32 0.0, %v4970
        %v4972 = vpop.f32.mrf.mxu0
        %v4973 = vpop.f32.mrf.mxu0
        %v4974 = vadd.f32 0.0, %v4973
        %v4975 = vpop.f32.mrf.mxu0
        %4976 = vmatprep.mubr.bf16.mxu0 0
        %4977 = vmatmul.mubr.bf16.gmra.mxu0 %v4822
        %v4978 = vpop.f32.mrf.mxu0
        %v4979 = vadd.f32 0.0, %v4978
        %v4980 = vpop.f32.mrf.mxu0
        %v4981 = vpop.f32.mrf.mxu0
        %v4982 = vadd.f32 0.0, %v4981
        %v4983 = vpop.f32.mrf.mxu0
        %4984 = vmatprep.mubr.bf16.mxu0 0
        %4985 = vmatmul.mubr.bf16.gmra.mxu0 %v4823
        %v4986 = vpop.f32.mrf.mxu0
        %v4987 = vadd.f32 0.0, %v4986
        %v4988 = vpop.f32.mrf.mxu0
        %v4989 = vpop.f32.mrf.mxu0
        %v4990 = vadd.f32 0.0, %v4989
        %v4991 = vpop.f32.mrf.mxu0
        %4992 = vmatprep.mubr.bf16.mxu0 0
        %4993 = vmatmul.mubr.bf16.gmra.mxu0 %v4824
        %v4994 = vpop.f32.mrf.mxu0
        %v4995 = vadd.f32 0.0, %v4994
        %v4996 = vpop.f32.mrf.mxu0
        %v4997 = vpop.f32.mrf.mxu0
        %v4998 = vadd.f32 0.0, %v4997
        %v4999 = vpop.f32.mrf.mxu0
        %5000 = vmatprep.mubr.bf16.mxu0 0
        %5001 = vmatmul.mubr.bf16.gmra.mxu0 %v4825
        %v5002 = vpop.f32.mrf.mxu0
        %v5003 = vadd.f32 0.0, %v5002
        %v5004 = vpop.f32.mrf.mxu0
        %v5005 = vpop.f32.mrf.mxu0
        %v5006 = vadd.f32 0.0, %v5005
        %v5007 = vpop.f32.mrf.mxu0
        %5008 = vmatprep.mubr.bf16.mxu0 0
        %5009 = vmatmul.mubr.bf16.gmra.mxu0 %v4826
        %v5010 = vpop.f32.mrf.mxu0
        %v5011 = vadd.f32 0.0, %v5010
        %v5012 = vpop.f32.mrf.mxu0
        %v5013 = vpop.f32.mrf.mxu0
        %v5014 = vadd.f32 0.0, %v5013
        %v5015 = vpop.f32.mrf.mxu0
        %5016 = vmatprep.mubr.bf16.mxu0 0
        %5017 = vmatmul.mubr.bf16.gmra.mxu0 %v4827
        %v5018 = vpop.f32.mrf.mxu0
        %v5019 = vadd.f32 0.0, %v5018
        %v5020 = vpop.f32.mrf.mxu0
        %v5021 = vpop.f32.mrf.mxu0
        %v5022 = vadd.f32 0.0, %v5021
        %v5023 = vpop.f32.mrf.mxu0
        %5024 = vmatprep.mubr.bf16.mxu0 0
        %5025 = vmatmul.mubr.bf16.gmra.mxu0 %v4828
        %v5026 = vpop.f32.mrf.mxu0
        %v5027 = vadd.f32 0.0, %v5026
        %v5028 = vpop.f32.mrf.mxu0
        %v5029 = vpop.f32.mrf.mxu0
        %v5030 = vadd.f32 0.0, %v5029
        %v5031 = vpop.f32.mrf.mxu0
        %5032 = vmatprep.mubr.bf16.mxu0 0
        %5033 = vmatmul.mubr.bf16.gmra.mxu0 %v4829
        %v5034 = vpop.f32.mrf.mxu0
        %v5035 = vadd.f32 0.0, %v5034
        %v5036 = vpop.f32.mrf.mxu0
        %v5037 = vpop.f32.mrf.mxu0
        %v5038 = vadd.f32 0.0, %v5037
        %v5039 = vpop.f32.mrf.mxu0
        %5040 = vmatprep.mubr.bf16.mxu0 0
        %5041 = vmatmul.mubr.bf16.gmra.mxu0 %v4830
        %v5042 = vpop.f32.mrf.mxu0
        %v5043 = vadd.f32 0.0, %v5042
        %v5044 = vpop.f32.mrf.mxu0
        %v5045 = vpop.f32.mrf.mxu0
        %v5046 = vadd.f32 0.0, %v5045
        %v5047 = vpop.f32.mrf.mxu0
        %5048 = vmatprep.mubr.bf16.mxu0 0
        %5049 = vmatmul.mubr.bf16.gmra.mxu0 %v4831
        %v5050 = vpop.f32.mrf.mxu0
        %v5051 = vadd.f32 0.0, %v5050
        %v5052 = vpop.f32.mrf.mxu0
        %v5053 = vpop.f32.mrf.mxu0
        %v5054 = vadd.f32 0.0, %v5053
        %v5055 = vpop.f32.mrf.mxu0
        %5056 = vdwg.mxu0
        %v5057 = vadd.f32 %v4559, %v4931
        %v5058 = vadd.f32 %v4560, %v4934
        %v5059 = vadd.f32 %v4561, %v4939
        %v5060 = vadd.f32 %v4562, %v4942
        %v5061 = vadd.f32 %v4563, %v4947
        %v5062 = vadd.f32 %v4564, %v4950
        %v5063 = vadd.f32 %v4565, %v4955
        %v5064 = vadd.f32 %v4566, %v4958
        %v5065 = vadd.f32 %v4567, %v4963
        %v5066 = vadd.f32 %v4568, %v4966
        %v5067 = vadd.f32 %v4569, %v4971
        %v5068 = vadd.f32 %v4570, %v4974
        %v5069 = vadd.f32 %v4571, %v4979
        %v5070 = vadd.f32 %v4572, %v4982
        %v5071 = vadd.f32 %v4573, %v4987
        %v5072 = vadd.f32 %v4574, %v4990
        %v5073 = vadd.f32 %v4575, %v4995
        %v5074 = vadd.f32 %v4576, %v4998
        %v5075 = vadd.f32 %v4577, %v5003
        %v5076 = vadd.f32 %v4578, %v5006
        %v5077 = vadd.f32 %v4579, %v5011
        %v5078 = vadd.f32 %v4580, %v5014
        %v5079 = vadd.f32 %v4581, %v5019
        %v5080 = vadd.f32 %v4582, %v5022
        %v5081 = vadd.f32 %v4583, %v5027
        %v5082 = vadd.f32 %v4584, %v5030
        %v5083 = vadd.f32 %v4585, %v5035
        %v5084 = vadd.f32 %v4586, %v5038
        %v5085 = vadd.f32 %v4587, %v5043
        %v5086 = vadd.f32 %v4588, %v5046
        %v5087 = vadd.f32 %v4589, %v5051
        %v5088 = vadd.f32 %v4590, %v5054
        %v5089 = vld [vmem:[%s274] sm:$0x1]
        %v5091 = vlaneseq
        %v5092 = vshrl.u32 %v5091, 7
        %v5093 = vsub.s32 0, %v5092
        %v5094 = vrot.slane %v5089, %v5093
        %v5096 = vmul.f32 %v5057, %v5094
        %v5097 = vmul.f32 %v5058, %v5094
        %v5098 = vmul.f32 %v5059, %v5094
        %v5099 = vmul.f32 %v5060, %v5094
        %v5100 = vmul.f32 %v5061, %v5094
        %v5101 = vmul.f32 %v5062, %v5094
        %v5102 = vmul.f32 %v5063, %v5094
        %v5103 = vmul.f32 %v5064, %v5094
        %v5104 = vmul.f32 %v5065, %v5094
        %v5105 = vmul.f32 %v5066, %v5094
        %v5106 = vmul.f32 %v5067, %v5094
        %v5107 = vmul.f32 %v5068, %v5094
        %v5108 = vmul.f32 %v5069, %v5094
        %v5109 = vmul.f32 %v5070, %v5094
        %v5110 = vmul.f32 %v5071, %v5094
        %v5111 = vmul.f32 %v5072, %v5094
        %v5112 = vmul.f32 %v5073, %v5094
        %v5113 = vmul.f32 %v5074, %v5094
        %v5114 = vmul.f32 %v5075, %v5094
        %v5115 = vmul.f32 %v5076, %v5094
        %v5116 = vmul.f32 %v5077, %v5094
        %v5117 = vmul.f32 %v5078, %v5094
        %v5118 = vmul.f32 %v5079, %v5094
        %v5119 = vmul.f32 %v5080, %v5094
        %v5120 = vmul.f32 %v5081, %v5094
        %v5121 = vmul.f32 %v5082, %v5094
        %v5122 = vmul.f32 %v5083, %v5094
        %v5123 = vmul.f32 %v5084, %v5094
        %v5124 = vmul.f32 %v5085, %v5094
        %v5125 = vmul.f32 %v5086, %v5094
        %v5126 = vmul.f32 %v5087, %v5094
        %v5127 = vmul.f32 %v5088, %v5094
        %v5128 = vld [vmem:[%s277] sm:$0x1]
        %v5130 = vlaneseq
        %v5131 = vshrl.u32 %v5130, 7
        %v5132 = vsub.s32 0, %v5131
        %v5133 = vrot.slane %v5128, %v5132
        %v5135 = vadd.f32 %v5096, %v5133
        %v5136 = vadd.f32 %v5097, %v5133
        %v5137 = vadd.f32 %v5098, %v5133
        %v5138 = vadd.f32 %v5099, %v5133
        %v5139 = vadd.f32 %v5100, %v5133
        %v5140 = vadd.f32 %v5101, %v5133
        %v5141 = vadd.f32 %v5102, %v5133
        %v5142 = vadd.f32 %v5103, %v5133
        %v5143 = vadd.f32 %v5104, %v5133
        %v5144 = vadd.f32 %v5105, %v5133
        %v5145 = vadd.f32 %v5106, %v5133
        %v5146 = vadd.f32 %v5107, %v5133
        %v5147 = vadd.f32 %v5108, %v5133
        %v5148 = vadd.f32 %v5109, %v5133
        %v5149 = vadd.f32 %v5110, %v5133
        %v5150 = vadd.f32 %v5111, %v5133
        %v5151 = vadd.f32 %v5112, %v5133
        %v5152 = vadd.f32 %v5113, %v5133
        %v5153 = vadd.f32 %v5114, %v5133
        %v5154 = vadd.f32 %v5115, %v5133
        %v5155 = vadd.f32 %v5116, %v5133
        %v5156 = vadd.f32 %v5117, %v5133
        %v5157 = vadd.f32 %v5118, %v5133
        %v5158 = vadd.f32 %v5119, %v5133
        %v5159 = vadd.f32 %v5120, %v5133
        %v5160 = vadd.f32 %v5121, %v5133
        %v5161 = vadd.f32 %v5122, %v5133
        %v5162 = vadd.f32 %v5123, %v5133
        %v5163 = vadd.f32 %v5124, %v5133
        %v5164 = vadd.f32 %v5125, %v5133
        %v5165 = vadd.f32 %v5126, %v5133
        %v5166 = vadd.f32 %v5127, %v5133
        %v5167 = vmax.f32 %v5135, 0.0
        %v5168 = vmax.f32 %v5136, 0.0
        %v5169 = vmax.f32 %v5137, 0.0
        %v5170 = vmax.f32 %v5138, 0.0
        %v5171 = vmax.f32 %v5139, 0.0
        %v5172 = vmax.f32 %v5140, 0.0
        %v5173 = vmax.f32 %v5141, 0.0
        %v5174 = vmax.f32 %v5142, 0.0
        %v5175 = vmax.f32 %v5143, 0.0
        %v5176 = vmax.f32 %v5144, 0.0
        %v5177 = vmax.f32 %v5145, 0.0
        %v5178 = vmax.f32 %v5146, 0.0
        %v5179 = vmax.f32 %v5147, 0.0
        %v5180 = vmax.f32 %v5148, 0.0
        %v5181 = vmax.f32 %v5149, 0.0
        %v5182 = vmax.f32 %v5150, 0.0
        %v5183 = vmax.f32 %v5151, 0.0
        %v5184 = vmax.f32 %v5152, 0.0
        %v5185 = vmax.f32 %v5153, 0.0
        %v5186 = vmax.f32 %v5154, 0.0
        %v5187 = vmax.f32 %v5155, 0.0
        %v5188 = vmax.f32 %v5156, 0.0
        %v5189 = vmax.f32 %v5157, 0.0
        %v5190 = vmax.f32 %v5158, 0.0
        %v5191 = vmax.f32 %v5159, 0.0
        %v5192 = vmax.f32 %v5160, 0.0
        %v5193 = vmax.f32 %v5161, 0.0
        %v5194 = vmax.f32 %v5162, 0.0
        %v5195 = vmax.f32 %v5163, 0.0
        %v5196 = vmax.f32 %v5164, 0.0
        %v5197 = vmax.f32 %v5165, 0.0
        %v5198 = vmax.f32 %v5166, 0.0
        %v5199 = vpack.c.bf16 %v5168, %v5167
        %v5200 = vpack.c.bf16 %v5170, %v5169
        %v5201 = vpack.c.bf16 %v5172, %v5171
        %v5202 = vpack.c.bf16 %v5174, %v5173
        %v5203 = vpack.c.bf16 %v5176, %v5175
        %v5204 = vpack.c.bf16 %v5178, %v5177
        %v5205 = vpack.c.bf16 %v5180, %v5179
        %v5206 = vpack.c.bf16 %v5182, %v5181
        %v5207 = vpack.c.bf16 %v5184, %v5183
        %v5208 = vpack.c.bf16 %v5186, %v5185
        %v5209 = vpack.c.bf16 %v5188, %v5187
        %v5210 = vpack.c.bf16 %v5190, %v5189
        %v5211 = vpack.c.bf16 %v5192, %v5191
        %v5212 = vpack.c.bf16 %v5194, %v5193
        %v5213 = vpack.c.bf16 %v5196, %v5195
        %v5214 = vpack.c.bf16 %v5198, %v5197
        %v5231 = vunpack.c.l.b16 %v5199
        %v5232 = vunpack.c.h.b16 %v5199
        %v5233 = vunpack.c.l.b16 %v5200
        %v5234 = vunpack.c.h.b16 %v5200
        %v5235 = vunpack.c.l.b16 %v5201
        %v5236 = vunpack.c.h.b16 %v5201
        %v5237 = vunpack.c.l.b16 %v5202
        %v5238 = vunpack.c.h.b16 %v5202
        %v5239 = vunpack.c.l.b16 %v5203
        %v5240 = vunpack.c.h.b16 %v5203
        %v5241 = vunpack.c.l.b16 %v5204
        %v5242 = vunpack.c.h.b16 %v5204
        %v5243 = vunpack.c.l.b16 %v5205
        %v5244 = vunpack.c.h.b16 %v5205
        %v5245 = vunpack.c.l.b16 %v5206
        %v5246 = vunpack.c.h.b16 %v5206
        %v5247 = vunpack.c.l.b16 %v5207
        %v5248 = vunpack.c.h.b16 %v5207
        %v5249 = vunpack.c.l.b16 %v5208
        %v5250 = vunpack.c.h.b16 %v5208
        %v5251 = vunpack.c.l.b16 %v5209
        %v5252 = vunpack.c.h.b16 %v5209
        %v5253 = vunpack.c.l.b16 %v5210
        %v5254 = vunpack.c.h.b16 %v5210
        %v5255 = vunpack.c.l.b16 %v5211
        %v5256 = vunpack.c.h.b16 %v5211
        %v5257 = vunpack.c.l.b16 %v5212
        %v5258 = vunpack.c.h.b16 %v5212
        %v5259 = vunpack.c.l.b16 %v5213
        %v5260 = vunpack.c.h.b16 %v5213
        %v5261 = vunpack.c.l.b16 %v5214
        %v5262 = vunpack.c.h.b16 %v5214
        %v5263 = vpack.c.b16 %v5231, %v5231
        %v5264 = vpack.c.b16 %v5232, %v5232
        %v5265 = vpack.c.b16 %v5233, %v5233
        %v5266 = vpack.c.b16 %v5234, %v5234
        %v5267 = vpack.c.b16 %v5235, %v5235
        %v5268 = vpack.c.b16 %v5236, %v5236
        %v5269 = vpack.c.b16 %v5237, %v5237
        %v5270 = vpack.c.b16 %v5238, %v5238
        %v5271 = vpack.c.b16 %v5239, %v5239
        %v5272 = vpack.c.b16 %v5240, %v5240
        %v5273 = vpack.c.b16 %v5241, %v5241
        %v5274 = vpack.c.b16 %v5242, %v5242
        %v5275 = vpack.c.b16 %v5243, %v5243
        %v5276 = vpack.c.b16 %v5244, %v5244
        %v5277 = vpack.c.b16 %v5245, %v5245
        %v5278 = vpack.c.b16 %v5246, %v5246
        %v5279 = vpack.c.b16 %v5247, %v5247
        %v5280 = vpack.c.b16 %v5248, %v5248
        %v5281 = vpack.c.b16 %v5249, %v5249
        %v5282 = vpack.c.b16 %v5250, %v5250
        %v5283 = vpack.c.b16 %v5251, %v5251
        %v5284 = vpack.c.b16 %v5252, %v5252
        %v5285 = vpack.c.b16 %v5253, %v5253
        %v5286 = vpack.c.b16 %v5254, %v5254
        %v5287 = vpack.c.b16 %v5255, %v5255
        %v5288 = vpack.c.b16 %v5256, %v5256
        %v5289 = vpack.c.b16 %v5257, %v5257
        %v5290 = vpack.c.b16 %v5258, %v5258
        %v5291 = vpack.c.b16 %v5259, %v5259
        %v5292 = vpack.c.b16 %v5260, %v5260
        %v5293 = vpack.c.b16 %v5261, %v5261
        %v5294 = vpack.c.b16 %v5262, %v5262
        %5327 = vst [vmem:[%s258] sm:$0xf] %v5263
        %5328 = vst [vmem:[%s258 + $0x4] sm:$0xf] %v5264
        %5329 = vst [vmem:[%s258 + $0x8] sm:$0xf] %v5265
        %5330 = vst [vmem:[%s258 + $0xc] sm:$0xf] %v5266
        %5331 = vst [vmem:[%s258 + $0x10] sm:$0xf] %v5267
        %5332 = vst [vmem:[%s258 + $0x14] sm:$0xf] %v5268
        %5333 = vst [vmem:[%s258 + $0x18] sm:$0xf] %v5269
        %5334 = vst [vmem:[%s258 + $0x1c] sm:$0xf] %v5270
        %5335 = vst [vmem:[%s258 + $0x20] sm:$0xf] %v5271
        %5336 = vst [vmem:[%s258 + $0x24] sm:$0xf] %v5272
        %5337 = vst [vmem:[%s258 + $0x28] sm:$0xf] %v5273
        %5338 = vst [vmem:[%s258 + $0x2c] sm:$0xf] %v5274
        %5339 = vst [vmem:[%s258 + $0x30] sm:$0xf] %v5275
        %5340 = vst [vmem:[%s258 + $0x34] sm:$0xf] %v5276
        %5341 = vst [vmem:[%s258 + $0x38] sm:$0xf] %v5277
        %5342 = vst [vmem:[%s258 + $0x3c] sm:$0xf] %v5278
        %5343 = vst [vmem:[%s258 + $0x40] sm:$0xf] %v5279
        %5344 = vst [vmem:[%s258 + $0x44] sm:$0xf] %v5280
        %5345 = vst [vmem:[%s258 + $0x48] sm:$0xf] %v5281
        %5346 = vst [vmem:[%s258 + $0x4c] sm:$0xf] %v5282
        %5347 = vst [vmem:[%s258 + $0x50] sm:$0xf] %v5283
        %5348 = vst [vmem:[%s258 + $0x54] sm:$0xf] %v5284
        %5349 = vst [vmem:[%s258 + $0x58] sm:$0xf] %v5285
        %5350 = vst [vmem:[%s258 + $0x5c] sm:$0xf] %v5286
        %5351 = vst [vmem:[%s258 + $0x60] sm:$0xf] %v5287
        %5352 = vst [vmem:[%s258 + $0x64] sm:$0xf] %v5288
        %5353 = vst [vmem:[%s258 + $0x68] sm:$0xf] %v5289
        %5354 = vst [vmem:[%s258 + $0x6c] sm:$0xf] %v5290
        %5355 = vst [vmem:[%s258 + $0x70] sm:$0xf] %v5291
        %5356 = vst [vmem:[%s258 + $0x74] sm:$0xf] %v5292
        %5357 = vst [vmem:[%s258 + $0x78] sm:$0xf] %v5293
        %5358 = vst [vmem:[%s258 + $0x7c] sm:$0xf] %v5294
        %s5359 = sand.u32 %s155, 1
        %s5360 = scalar_lea.sflag [#allocation3], %s5359
        %s5361 = sand.u32 %s155, 1
        %s5362 = smul.addr %s5361, 128
        %s5363 = scalar_lea.vmem [#allocation2], %s5362
        // Predicated region
        $region37: #{tpu_custom_call.1} parent=35 // pred_check
          %p5364 = pneg %p165
        $region38: #{tpu_custom_call.1} parent=35 // pred_check_branch
          %5366 = sbr.rel (%p5364) target = $region40
        $region39: #{tpu_custom_call.1} parent=35 // pred_region
          %s5367 = smul.u32 32, %s24
          %s5369 = ssub.s32 2048, 2048
          %5370 = vsyncadd %s5360, %s5369
          %s5371 = sadd.s32 %s25, %s5367
          %s5372 = smul.addr %s23, 32
          %s5373 = sadd.s32 %s5371, %s5372
          %s5374 = smul.addr %s5373, 64
          %s5375 = scalar_lea.hbm %s4, %s5374
          %s5376 = sshll.u32 %s5363, 4
          %s5377 = int_to_ptr.vmem [resolvable:$true] %s5376
          %5382 = dma.vmem_to_hbm [thread:$0]  %s5377, 2048, %s5375, %s5360, 64, 64, 4
        $region40: #{tpu_custom_call.1} parent=35 // pred_fallthru
          _
      $region36: #{tpu_custom_call.1} parent=5 // pred_fallthru
        _
      %p5383 = scmp.le.s32.totalorder 2, %s13
      // Predicated region
      $region41: #{tpu_custom_call.1} parent=5 // pred_check
        %p5384 = pneg %p5383
      $region42: #{tpu_custom_call.1} parent=5 // pred_check_branch
        %5386 = sbr.rel (%p5384) target = $region44
      $region43: #{tpu_custom_call.1} parent=5 // pred_region
        %s5387 = ssub.s32 %s13, 2
        // Predicated region
        $region45: #{tpu_custom_call.1} parent=43 // pred_check
          %p5388 = pneg %p171
        $region46: #{tpu_custom_call.1} parent=43 // pred_check_branch
          %5390 = sbr.rel (%p5388) target = $region48
        $region47: #{tpu_custom_call.1} parent=43 // pred_region
          %s5391 = sand.u32 %s156, 1
          %s5392 = scalar_lea.sflag [#allocation3], %s5391
          %s5393 = sand.u32 %s156, 1
          %s5394 = smul.addr %s5393, 128
          %s5395 = scalar_lea.vmem [#allocation2], %s5394
          %5396 = dma.done %s5392, 2048
        $region48: #{tpu_custom_call.1} parent=43 // pred_fallthru
          _
      $region44: #{tpu_custom_call.1} parent=5 // pred_fallthru
        _
    $region6: #{tpu_custom_call.1} parent=1 // loop_footer
      %s17 = sadd.s32 1, %s13
    $region7: #{tpu_custom_call.1} parent=1 // loop_footer_branch
      %12 = sbr.rel target = $region3
    $region8: #{tpu_custom_call.1} parent=1 // loop_exit
      _
    %5397 = vsyncpa [#allocation3], 1
    %s5398 = scalar_lea.sflag [#allocation3], 1
    %5399 = vsyncpa %s5398, 1

</llo_original>
